<compile_context>
chip_gen: v6e
topology: v6e:2x2x1
jax: 0.10.0
libtpu: 0.0.40
codegen_flags: <defaults>
</compile_context>

<pallas_src>
import functools

import numpy as np
import jax
import jax.numpy as jnp
from jax.experimental import pallas as pl
from jax.experimental.pallas import tpu as pltpu

# --------------------------- configuration ----------------------------------
DIM = 8
BATCH = 2
HEIGHT = WIDTH = 16
REDUCTION = 4
SPLIT_SIZE = 2
NUM_HEADS = 4
BN_EPS = 1e-5

# --------------------------- db1 wavelet (zero mode) -------------------------
_SQ2 = 0.7071067811865476
_DEC_LO = (_SQ2, _SQ2)
_DEC_HI = (-_SQ2, _SQ2)
_REC_LO = (_SQ2, _SQ2)
_REC_HI = (_SQ2, -_SQ2)


def _afb1d(x, h0, h1, axis):
    """1-D analysis filter bank, zero-padding mode (pytorch_wavelets lowlevel.afb1d)."""
    x = jnp.moveaxis(x, axis, -1)
    n = x.shape[-1]
    L = len(h0)
    w0, w1 = h0[::-1], h1[::-1]
    outsize = (n + L - 1) // 2
    p = 2 * (outsize - 1) - n + L
    pad = [(0, 0)] * (x.ndim - 1)
    if p % 2 == 1:
        x = jnp.pad(x, pad + [(0, 1)])
    if p // 2 > 0:
        x = jnp.pad(x, pad + [(p // 2, p // 2)])
    nout = (x.shape[-1] - L) // 2 + 1

    def corr(w):
        return sum(w[i] * x[..., i:i + 2 * nout - 1:2] for i in range(L))

    return jnp.moveaxis(corr(w0), -1, axis), jnp.moveaxis(corr(w1), -1, axis)


def _sfb1d(lo, hi, g0, g1, axis):
    """1-D synthesis filter bank, zero-padding mode (pytorch_wavelets lowlevel.sfb1d)."""
    lo = jnp.moveaxis(lo, axis, -1)
    hi = jnp.moveaxis(hi, axis, -1)
    nin = lo.shape[-1]
    L = len(g0)
    full = 2 * nin + L - 2
    y = jnp.zeros(lo.shape[:-1] + (full,), lo.dtype)
    for j in range(L):
        y = y.at[..., j:j + 2 * nin - 1:2].add(lo * g0[j] + hi * g1[j])
    if L > 2:
        y = y[..., L - 2:full - (L - 2)]
    return jnp.moveaxis(y, -1, axis)


def dwt2d_nhwc(x):
    lo_w, hi_w = _afb1d(x, _DEC_LO, _DEC_HI, axis=2)        # along W
    ll, lh = _afb1d(lo_w, _DEC_LO, _DEC_HI, axis=1)         # along H
    hl, hh = _afb1d(hi_w, _DEC_LO, _DEC_HI, axis=1)
    return ll, lh, hl, hh


def idwt2d_nhwc(ll, lh, hl, hh):
    lo = _sfb1d(ll, lh, _REC_LO, _REC_HI, axis=1)
    hi = _sfb1d(hl, hh, _REC_LO, _REC_HI, axis=1)
    return _sfb1d(lo, hi, _REC_LO, _REC_HI, axis=2)


# --------------------------- Pallas kernels ----------------------------------
def _conv3x3_bn_relu(x, mask_ref, wtap_ref, bias_ref, gamma_ref, beta_ref, W2):
    """Block-diag 3x3 same-pad conv + train-mode BN + ReLU on a channels-last slab.

    x: (M, C4) with row = flattened (b, i, j).  The 3x3 conv is realised as 9
    row-shifted dot-accumulates with border masks (no im2col, 1x HBM traffic).
    MXU operands bf16, f32 accumulation; all VPU/EUP epilogue math stays f32.
    """
    M, C4 = x.shape
    acc = jnp.zeros((M, C4), jnp.float32)
    t = 0
    for di in range(3):
        for dj in range(3):
            delta = (di - 1) * W2 + (dj - 1)
            if delta == 0:
                xs = x
            elif delta > 0:
                xs = jnp.concatenate(
                    [x[delta:, :], jnp.zeros((delta, C4), jnp.float32)], axis=0)
            else:
                xs = jnp.concatenate(
                    [jnp.zeros((-delta, C4), jnp.float32), x[:M + delta, :]], axis=0)
            xs = xs * mask_ref[t]                              # zero-pad borders
            acc = acc + jnp.dot(xs.astype(jnp.bfloat16), wtap_ref[t],
                                preferred_element_type=jnp.float32)
            t += 1
    acc = acc + bias_ref[...]
    # train-mode BatchNorm2d: per-channel batch stats over all B*H*W rows
    mean = jnp.mean(acc, axis=0, keepdims=True)
    var = jnp.mean(jnp.square(acc - mean), axis=0, keepdims=True)
    y = (acc - mean) * jax.lax.rsqrt(var + BN_EPS)
    return jnp.maximum(y * gamma_ref[...] + beta_ref[...], 0.0)


def _stage1_kernel(x_ref, mask_ref, wtap_ref, bias_ref, gamma_ref, beta_ref,
                   wqkv_ref, out_ref, *, W2):
    """First body conv (low|mid|high fused) + CA_global qkv 1x1 conv, one launch."""
    x = x_ref[...]
    y = _conv3x3_bn_relu(x, mask_ref, wtap_ref, bias_ref, gamma_ref, beta_ref, W2)
    qkv = jnp.dot(x.astype(jnp.bfloat16), wqkv_ref[...],
                  preferred_element_type=jnp.float32)
    # single lane-dense (M, 4C + 12C) = (128, 128) store (unmasked vst)
    out_ref[...] = jnp.concatenate([y, qkv], axis=1)


def _stage2_kernel(x_ref, mask_ref, wtap_ref, bias_ref, gamma_ref, beta_ref,
                   caw1_ref, cab1_ref, caw2_ref, cab2_ref, out_ref, *, W2, B):
    """Second body conv fused with the CA squeeze-excitation (pool+MLP+gate)."""
    x = x_ref[...]
    M, C4 = x.shape
    HW = M // B
    y = _conv3x3_bn_relu(x, mask_ref, wtap_ref, bias_ref, gamma_ref, beta_ref, W2)
    # global max/avg pool per batch element, stacked as (2B, C4) rows so both
    # MLP branches (shared weights) run in one pair of matmuls.
    pooled = ([jnp.max(y[b * HW:(b + 1) * HW, :], axis=0, keepdims=True)
               for b in range(B)]
              + [jnp.mean(y[b * HW:(b + 1) * HW, :], axis=0, keepdims=True)
                 for b in range(B)])
    p = jnp.concatenate(pooled, axis=0)                                  # (2B, C4)
    h = jnp.dot(p.astype(jnp.bfloat16), caw1_ref[...],
                preferred_element_type=jnp.float32)
    h = jnp.maximum(h + cab1_ref[...], 0.0)
    o = jnp.dot(h.astype(jnp.bfloat16), caw2_ref[...],
                preferred_element_type=jnp.float32) + cab2_ref[...]
    gate = jax.nn.sigmoid(o[:B, :] + o[B:, :])                           # (B, C4)
    gate_rows = jnp.concatenate(
        [jnp.broadcast_to(gate[b:b + 1, :], (HW, C4)) for b in range(B)], axis=0)
    out_ref[...] = y * gate_rows


def _vmem_spec(shape):
    zeros = (0,) * len(shape)
    return pl.BlockSpec(shape, lambda i, _z=zeros: _z)


def _single_block_call(kernel, args, out_shape):
    # grid=(1,): BN batch stats need the whole M slab and the working set is
    # ~100 KB, far below v7x's scoped VMEM; tiling would only add step overhead.
    return pl.pallas_call(
        kernel,
        out_shape=jax.ShapeDtypeStruct(out_shape, jnp.float32),
        grid=(1,),
        in_specs=[_vmem_spec(a.shape) for a in args],
        out_specs=_vmem_spec(out_shape),
        compiler_params=pltpu.CompilerParams(dimension_semantics=("arbitrary",)),
    )(*args)


# --------------------------- weight packing ----------------------------------
def _block_diag(blocks):
    rows = sum(b.shape[0] for b in blocks)
    cols = sum(b.shape[1] for b in blocks)
    out = jnp.zeros((rows, cols), jnp.float32)
    r = c = 0
    for b in blocks:
        out = out.at[r:r + b.shape[0], c:c + b.shape[1]].set(b)
        r += b.shape[0]
        c += b.shape[1]
    return out


def _conv_border_masks(B, H, W):
    """(9, M, 1) validity masks for the 9 row-shift taps (zero padding)."""
    r = np.arange(B * H * W)
    i = (r % (H * W)) // W
    j = r % W
    masks = []
    for di in range(3):
        for dj in range(3):
            ok = ((i + di - 1 >= 0) & (i + di - 1 < H) &
                  (j + dj - 1 >= 0) & (j + dj - 1 < W))
            masks.append(ok.astype(np.float32))
    return np.stack(masks)[:, :, None]


def _assemble_weights(params):
    """Pack per-branch (low|mid|high) weights into block-diagonal slabs so the
    three branches run as one lane-denser matmul each (channel order matches the
    [ll, lh, hl, hh] concat the reference uses before IDWT)."""
    blh, bm = params["body_lh"], params["body_m"]
    taps = []
    for di in range(3):
        for dj in range(3):
            taps.append(_block_diag([blh["w"][:, :, di, dj].T,
                                     bm["w"][:, :, di, dj].T,
                                     blh["w"][:, :, di, dj].T]))
    wtap = jnp.stack(taps).astype(jnp.bfloat16)                      # (9, 4C, 4C)

    def cat3(a, b):
        return jnp.concatenate([a, b, a]).reshape(1, -1)

    bias = cat3(blh["b"], bm["b"])
    gamma = cat3(blh["gamma"], bm["gamma"])
    beta = cat3(blh["beta"], bm["beta"])

    ca_lh, ca_m = params["ca_lh"], params["ca_m"]
    caw1 = _block_diag([ca_lh["w1"].T, ca_m["w1"].T, ca_lh["w1"].T]).astype(jnp.bfloat16)
    cab1 = cat3(ca_lh["b1"], ca_m["b1"])
    caw2 = _block_diag([ca_lh["w2"].T, ca_m["w2"].T, ca_lh["w2"].T]).astype(jnp.bfloat16)
    cab2 = cat3(ca_lh["b2"], ca_m["b2"])

    wqkv = _block_diag([params["w_qkv_lh"].T, params["w_qkv_m"].T,
                        params["w_qkv_lh"].T]).astype(jnp.bfloat16)  # (4C, 12C)
    return wtap, bias, gamma, beta, caw1, cab1, caw2, cab2, wqkv


# --------------------------- windowed channel attention (XLA) ----------------
def _window_channel_attention(q, k, v, heads, sp, scale):
    """'b (c head) (h hsp) (w wsp) -> (b h w) head c (hsp wsp)' channel attention.
    2x2 / 4x4 attention matrices: left to XLA einsum (a Pallas kernel is pure
    launch/layout overhead at these shapes — see perf review)."""
    B, H2, W2, Cb = q.shape
    c = Cb // heads
    h, w = H2 // sp, W2 // sp
    S = sp * sp

    def to_windows(z):
        z = z.reshape(B, h, sp, w, sp, c, heads)
        return jnp.transpose(z, (0, 1, 3, 6, 5, 2, 4)).reshape(B, h, w, heads, c, S)

    qw, kw, vw = to_windows(q), to_windows(k), to_windows(v)
    attn = jnp.einsum("...cs,...ds->...cd", qw * scale, kw)
    attn = jax.nn.softmax(attn, axis=-1)
    # TODO(synk): attn_drop is nn.Dropout(0.0) in the reference -> identity.
    ow = jnp.einsum("...cd,...ds->...cs", attn, vw)
    ow = ow.reshape(B, h, w, heads, c, sp, sp)
    ow = jnp.transpose(ow, (0, 1, 5, 2, 6, 4, 3))
    return ow.reshape(B, H2, W2, Cb)


# --------------------------- forward ------------------------------------------
@jax.jit
def ca_local_global_forward(x, params):
    B, C, H, W = x.shape
    H2, W2 = H // 2, W // 2
    C4 = 4 * C
    M = B * H2 * W2
    lh_scale = float((C // NUM_HEADS) ** -0.5)
    m_scale = float((2 * C // NUM_HEADS) ** -0.5)

    (wtap, bias, gamma, beta, caw1, cab1, caw2, cab2, wqkv) = _assemble_weights(params)
    masks = jnp.asarray(_conv_border_masks(B, H2, W2))

    # shared DWT: CA_local and CA_global both DWT the same input with the same wave.
    x_nhwc = jnp.transpose(x, (0, 2, 3, 1))
    ll, lh, hl, hh = dwt2d_nhwc(x_nhwc)
    xflat = jnp.concatenate([ll, lh, hl, hh], axis=-1).reshape(M, C4)

    # Pallas launch 1: body conv3x3+BN+ReLU (all 3 branches) + qkv 1x1 conv.
    s1 = _single_block_call(
        functools.partial(_stage1_kernel, W2=W2),
        (xflat, masks, wtap, bias, gamma, beta, wqkv),
        (M, C4 + wqkv.shape[1]))
    y1, qkv = s1[:, :C4], s1[:, C4:]

    # Pallas launch 2: second body conv + CA squeeze-excitation.
    y2 = _single_block_call(
        functools.partial(_stage2_kernel, W2=W2, B=B),
        (y1, masks, wtap, bias, gamma, beta, caw1, cab1, caw2, cab2),
        (M, C4))

    # CA_global windowed channel attention on the fused qkv output.
    qkv = qkv.reshape(B, H2, W2, 12 * C)
    xg_low = _window_channel_attention(qkv[..., 0:C], qkv[..., C:2 * C],
                                       qkv[..., 2 * C:3 * C],
                                       NUM_HEADS, SPLIT_SIZE, lh_scale)
    xg_mid = _window_channel_attention(qkv[..., 3 * C:5 * C], qkv[..., 5 * C:7 * C],
                                       qkv[..., 7 * C:9 * C],
                                       NUM_HEADS, SPLIT_SIZE, m_scale)
    xg_high = _window_channel_attention(qkv[..., 9 * C:10 * C], qkv[..., 10 * C:11 * C],
                                        qkv[..., 11 * C:12 * C],
                                        NUM_HEADS, SPLIT_SIZE, lh_scale)

    # IDWT is linear: idwt(local) + idwt(global) == idwt(local + global).
    comb = (y2.reshape(B, H2, W2, C4)
            + jnp.concatenate([xg_low, xg_mid, xg_high], axis=-1))
    out = idwt2d_nhwc(comb[..., 0:C], comb[..., C:2 * C],
                      comb[..., 2 * C:3 * C], comb[..., 3 * C:4 * C])
    return jnp.transpose(out, (0, 3, 1, 2))


# --------------------------- parameter init ----------------------------------
def _conv_init(key, cout, cin, k=1, bias=True):
    fan_in = cin * k * k
    bound = 1.0 / np.sqrt(fan_in)
    kw, kb = jax.random.split(key)
    shape = (cout, cin) if k == 1 else (cout, cin, k, k)
    w = jax.random.uniform(kw, shape, jnp.float32, -bound, bound)
    b = jax.random.uniform(kb, (cout,), jnp.float32, -bound, bound) if bias else None
    return w, b


def init_params(key, dim=DIM, reduction=REDUCTION):
    ks = jax.random.split(key, 8)
    w_blh, b_blh = _conv_init(ks[0], dim, dim, 3)
    w_bm, b_bm = _conv_init(ks[1], 2 * dim, 2 * dim, 3)
    w1_lh, b1_lh = _conv_init(ks[2], dim // reduction, dim)
    w2_lh, b2_lh = _conv_init(ks[3], dim, dim // reduction)
    w1_m, b1_m = _conv_init(ks[4], 2 * dim // reduction, 2 * dim)
    w2_m, b2_m = _conv_init(ks[5], 2 * dim, 2 * dim // reduction)
    w_qkv_lh, _ = _conv_init(ks[6], 3 * dim, dim, bias=False)
    w_qkv_m, _ = _conv_init(ks[7], 3 * 2 * dim, 2 * dim, bias=False)
    ones = lambda c: jnp.ones((c,), jnp.float32)
    zeros = lambda c: jnp.zeros((c,), jnp.float32)
    # TODO(synk): CA_local.cat_conv / idwt_conv exist in __init__ but are never
    # used in the reference forward, so they are not instantiated here.
    return {
        "body_lh": {"w": w_blh, "b": b_blh, "gamma": ones(dim), "beta": zeros(dim)},
        "body_m": {"w": w_bm, "b": b_bm, "gamma": ones(2 * dim), "beta": zeros(2 * dim)},
        "ca_lh": {"w1": w1_lh, "b1": b1_lh, "w2": w2_lh, "b2": b2_lh},
        "ca_m": {"w1": w1_m, "b1": b1_m, "w2": w2_m, "b2": b2_m},
        "w_qkv_lh": w_qkv_lh,
        "w_qkv_m": w_qkv_m,
    }


# --------------------------- main ---------------------------------------------
if __name__ == "__main__":
    root = jax.random.PRNGKey(0)
    kx, kp = jax.random.split(root)
    x = jax.random.normal(kx, (BATCH, DIM, HEIGHT, WIDTH), jnp.float32)
    params = init_params(kp)

    out = ca_local_global_forward(x, params)
    out = jax.block_until_ready(out)

    assert out.shape == (BATCH, DIM, HEIGHT, WIDTH), out.shape
    assert bool(jnp.all(jnp.isfinite(out)))
    print("KERNEL_OK")
</pallas_src>

<mosaic_0001>
module attributes {stable_mosaic.version = 11 : i64} {
  func.func @_stage1_kernel(%arg0: i32, %arg1: memref<128x32xf32, #tpu.memory_space<vmem>>, %arg2: memref<9x128x1xf32, #tpu.memory_space<vmem>>, %arg3: memref<9x32x32xbf16, #tpu.memory_space<vmem>>, %arg4: memref<1x32xf32, #tpu.memory_space<vmem>>, %arg5: memref<1x32xf32, #tpu.memory_space<vmem>>, %arg6: memref<1x32xf32, #tpu.memory_space<vmem>>, %arg7: memref<32x96xbf16, #tpu.memory_space<vmem>>, %arg8: memref<128x128xf32, #tpu.memory_space<vmem>>) attributes {dimension_semantics = [#tpu.dimension_semantics<arbitrary>], iteration_bounds = array<i64: 1>, scalar_prefetch = 0 : i64, scratch_operands = 0 : i64, tpu.core_type = #tpu.core_type<tc>, window_params = [{pipeline_mode = #tpu.pipeline_mode<synchronous>, transform_indices = @transform_0, window_bounds = array<i64: 128, 32>}, {pipeline_mode = #tpu.pipeline_mode<synchronous>, transform_indices = @transform_1, window_bounds = array<i64: 9, 128, 1>}, {pipeline_mode = #tpu.pipeline_mode<synchronous>, transform_indices = @transform_2, window_bounds = array<i64: 9, 32, 32>}, {pipeline_mode = #tpu.pipeline_mode<synchronous>, transform_indices = @transform_3, window_bounds = array<i64: 1, 32>}, {pipeline_mode = #tpu.pipeline_mode<synchronous>, transform_indices = @transform_4, window_bounds = array<i64: 1, 32>}, {pipeline_mode = #tpu.pipeline_mode<synchronous>, transform_indices = @transform_5, window_bounds = array<i64: 1, 32>}, {pipeline_mode = #tpu.pipeline_mode<synchronous>, transform_indices = @transform_6, window_bounds = array<i64: 32, 96>}, {pipeline_mode = #tpu.pipeline_mode<synchronous>, transform_indices = @transform_7, window_bounds = array<i64: 128, 128>}]} {
    %c0 = arith.constant 0 : index
    %c0_0 = arith.constant 0 : index
    %0 = vector.load %arg1[%c0, %c0_0] : memref<128x32xf32, #tpu.memory_space<vmem>>, vector<128x32xf32>
    %cst = arith.constant 0.000000e+00 : f32
    %1 = vector.broadcast %cst : f32 to vector<128x32xf32>
    %cst_1 = arith.constant 0.000000e+00 : f32
    %2 = vector.broadcast %cst_1 : f32 to vector<9x32xf32>
    %3 = vector.extract_strided_slice %0 {offsets = [0, 0], sizes = [119, 32], strides = [1, 1]} : vector<128x32xf32> to vector<119x32xf32>
    %4 = tpu.concatenate %2, %3 in 0 : vector<9x32xf32>, vector<119x32xf32> -> vector<128x32xf32>
    %c0_2 = arith.constant 0 : index
    %c0_3 = arith.constant 0 : index
    %c0_4 = arith.constant 0 : index
    %5 = vector.load %arg2[%c0_2, %c0_3, %c0_4] : memref<9x128x1xf32, #tpu.memory_space<vmem>>, vector<1x128x1xf32>
    %6 = vector.shape_cast %5 : vector<1x128x1xf32> to vector<128x1xf32>
    %7 = vector.broadcast %6 : vector<128x1xf32> to vector<128x32xf32>
    %8 = arith.mulf %4, %7 : vector<128x32xf32>
    %9 = arith.truncf %8 : vector<128x32xf32> to vector<128x32xbf16>
    %c0_5 = arith.constant 0 : index
    %c0_6 = arith.constant 0 : index
    %c0_7 = arith.constant 0 : index
    %10 = vector.load %arg3[%c0_5, %c0_6, %c0_7] : memref<9x32x32xbf16, #tpu.memory_space<vmem>>, vector<1x32x32xbf16>
    %11 = vector.shape_cast %10 : vector<1x32x32xbf16> to vector<32x32xbf16>
    %cst_8 = arith.constant dense<0.000000e+00> : vector<128x32xf32>
    %12 = tpu.matmul %9, %11, %cst_8 {dimension_numbers = #tpu.dot_dimension_numbers<[1], [0], [0], [1], [0, 0, 1, 1], [], []>} : vector<128x32xbf16>, vector<32x32xbf16>, vector<128x32xf32> -> vector<128x32xf32>
    %13 = arith.addf %1, %12 : vector<128x32xf32>
    %cst_9 = arith.constant 0.000000e+00 : f32
    %14 = vector.broadcast %cst_9 : f32 to vector<8x32xf32>
    %15 = vector.extract_strided_slice %0 {offsets = [0, 0], sizes = [120, 32], strides = [1, 1]} : vector<128x32xf32> to vector<120x32xf32>
    %16 = tpu.concatenate %14, %15 in 0 : vector<8x32xf32>, vector<120x32xf32> -> vector<128x32xf32>
    %c1 = arith.constant 1 : index
    %c0_10 = arith.constant 0 : index
    %c0_11 = arith.constant 0 : index
    %17 = vector.load %arg2[%c1, %c0_10, %c0_11] : memref<9x128x1xf32, #tpu.memory_space<vmem>>, vector<1x128x1xf32>
    %18 = vector.shape_cast %17 : vector<1x128x1xf32> to vector<128x1xf32>
    %19 = vector.broadcast %18 : vector<128x1xf32> to vector<128x32xf32>
    %20 = arith.mulf %16, %19 : vector<128x32xf32>
    %21 = arith.truncf %20 : vector<128x32xf32> to vector<128x32xbf16>
    %c1_12 = arith.constant 1 : index
    %c0_13 = arith.constant 0 : index
    %c0_14 = arith.constant 0 : index
    %22 = vector.load %arg3[%c1_12, %c0_13, %c0_14] : memref<9x32x32xbf16, #tpu.memory_space<vmem>>, vector<1x32x32xbf16>
    %23 = vector.shape_cast %22 : vector<1x32x32xbf16> to vector<32x32xbf16>
    %cst_15 = arith.constant dense<0.000000e+00> : vector<128x32xf32>
    %24 = tpu.matmul %21, %23, %cst_15 {dimension_numbers = #tpu.dot_dimension_numbers<[1], [0], [0], [1], [0, 0, 1, 1], [], []>} : vector<128x32xbf16>, vector<32x32xbf16>, vector<128x32xf32> -> vector<128x32xf32>
    %25 = arith.addf %13, %24 : vector<128x32xf32>
    %cst_16 = arith.constant 0.000000e+00 : f32
    %26 = vector.broadcast %cst_16 : f32 to vector<7x32xf32>
    %27 = vector.extract_strided_slice %0 {offsets = [0, 0], sizes = [121, 32], strides = [1, 1]} : vector<128x32xf32> to vector<121x32xf32>
    %28 = tpu.concatenate %26, %27 in 0 : vector<7x32xf32>, vector<121x32xf32> -> vector<128x32xf32>
    %c2 = arith.constant 2 : index
    %c0_17 = arith.constant 0 : index
    %c0_18 = arith.constant 0 : index
    %29 = vector.load %arg2[%c2, %c0_17, %c0_18] : memref<9x128x1xf32, #tpu.memory_space<vmem>>, vector<1x128x1xf32>
    %30 = vector.shape_cast %29 : vector<1x128x1xf32> to vector<128x1xf32>
    %31 = vector.broadcast %30 : vector<128x1xf32> to vector<128x32xf32>
    %32 = arith.mulf %28, %31 : vector<128x32xf32>
    %33 = arith.truncf %32 : vector<128x32xf32> to vector<128x32xbf16>
    %c2_19 = arith.constant 2 : index
    %c0_20 = arith.constant 0 : index
    %c0_21 = arith.constant 0 : index
    %34 = vector.load %arg3[%c2_19, %c0_20, %c0_21] : memref<9x32x32xbf16, #tpu.memory_space<vmem>>, vector<1x32x32xbf16>
    %35 = vector.shape_cast %34 : vector<1x32x32xbf16> to vector<32x32xbf16>
    %cst_22 = arith.constant dense<0.000000e+00> : vector<128x32xf32>
    %36 = tpu.matmul %33, %35, %cst_22 {dimension_numbers = #tpu.dot_dimension_numbers<[1], [0], [0], [1], [0, 0, 1, 1], [], []>} : vector<128x32xbf16>, vector<32x32xbf16>, vector<128x32xf32> -> vector<128x32xf32>
    %37 = arith.addf %25, %36 : vector<128x32xf32>
    %cst_23 = arith.constant 0.000000e+00 : f32
    %38 = vector.broadcast %cst_23 : f32 to vector<1x32xf32>
    %39 = vector.extract_strided_slice %0 {offsets = [0, 0], sizes = [127, 32], strides = [1, 1]} : vector<128x32xf32> to vector<127x32xf32>
    %40 = tpu.concatenate %38, %39 in 0 : vector<1x32xf32>, vector<127x32xf32> -> vector<128x32xf32>
    %c3 = arith.constant 3 : index
    %c0_24 = arith.constant 0 : index
    %c0_25 = arith.constant 0 : index
    %41 = vector.load %arg2[%c3, %c0_24, %c0_25] : memref<9x128x1xf32, #tpu.memory_space<vmem>>, vector<1x128x1xf32>
    %42 = vector.shape_cast %41 : vector<1x128x1xf32> to vector<128x1xf32>
    %43 = vector.broadcast %42 : vector<128x1xf32> to vector<128x32xf32>
    %44 = arith.mulf %40, %43 : vector<128x32xf32>
    %45 = arith.truncf %44 : vector<128x32xf32> to vector<128x32xbf16>
    %c3_26 = arith.constant 3 : index
    %c0_27 = arith.constant 0 : index
    %c0_28 = arith.constant 0 : index
    %46 = vector.load %arg3[%c3_26, %c0_27, %c0_28] : memref<9x32x32xbf16, #tpu.memory_space<vmem>>, vector<1x32x32xbf16>
    %47 = vector.shape_cast %46 : vector<1x32x32xbf16> to vector<32x32xbf16>
    %cst_29 = arith.constant dense<0.000000e+00> : vector<128x32xf32>
    %48 = tpu.matmul %45, %47, %cst_29 {dimension_numbers = #tpu.dot_dimension_numbers<[1], [0], [0], [1], [0, 0, 1, 1], [], []>} : vector<128x32xbf16>, vector<32x32xbf16>, vector<128x32xf32> -> vector<128x32xf32>
    %49 = arith.addf %37, %48 : vector<128x32xf32>
    %c4 = arith.constant 4 : index
    %c0_30 = arith.constant 0 : index
    %c0_31 = arith.constant 0 : index
    %50 = vector.load %arg2[%c4, %c0_30, %c0_31] : memref<9x128x1xf32, #tpu.memory_space<vmem>>, vector<1x128x1xf32>
    %51 = vector.shape_cast %50 : vector<1x128x1xf32> to vector<128x1xf32>
    %52 = vector.broadcast %51 : vector<128x1xf32> to vector<128x32xf32>
    %53 = arith.mulf %0, %52 : vector<128x32xf32>
    %54 = arith.truncf %53 : vector<128x32xf32> to vector<128x32xbf16>
    %c4_32 = arith.constant 4 : index
    %c0_33 = arith.constant 0 : index
    %c0_34 = arith.constant 0 : index
    %55 = vector.load %arg3[%c4_32, %c0_33, %c0_34] : memref<9x32x32xbf16, #tpu.memory_space<vmem>>, vector<1x32x32xbf16>
    %56 = vector.shape_cast %55 : vector<1x32x32xbf16> to vector<32x32xbf16>
    %cst_35 = arith.constant dense<0.000000e+00> : vector<128x32xf32>
    %57 = tpu.matmul %54, %56, %cst_35 {dimension_numbers = #tpu.dot_dimension_numbers<[1], [0], [0], [1], [0, 0, 1, 1], [], []>} : vector<128x32xbf16>, vector<32x32xbf16>, vector<128x32xf32> -> vector<128x32xf32>
    %58 = arith.addf %49, %57 : vector<128x32xf32>
    %59 = vector.extract_strided_slice %0 {offsets = [1, 0], sizes = [127, 32], strides = [1, 1]} : vector<128x32xf32> to vector<127x32xf32>
    %cst_36 = arith.constant 0.000000e+00 : f32
    %60 = vector.broadcast %cst_36 : f32 to vector<1x32xf32>
    %61 = tpu.concatenate %59, %60 in 0 : vector<127x32xf32>, vector<1x32xf32> -> vector<128x32xf32>
    %c5 = arith.constant 5 : index
    %c0_37 = arith.constant 0 : index
    %c0_38 = arith.constant 0 : index
    %62 = vector.load %arg2[%c5, %c0_37, %c0_38] : memref<9x128x1xf32, #tpu.memory_space<vmem>>, vector<1x128x1xf32>
    %63 = vector.shape_cast %62 : vector<1x128x1xf32> to vector<128x1xf32>
    %64 = vector.broadcast %63 : vector<128x1xf32> to vector<128x32xf32>
    %65 = arith.mulf %61, %64 : vector<128x32xf32>
    %66 = arith.truncf %65 : vector<128x32xf32> to vector<128x32xbf16>
    %c5_39 = arith.constant 5 : index
    %c0_40 = arith.constant 0 : index
    %c0_41 = arith.constant 0 : index
    %67 = vector.load %arg3[%c5_39, %c0_40, %c0_41] : memref<9x32x32xbf16, #tpu.memory_space<vmem>>, vector<1x32x32xbf16>
    %68 = vector.shape_cast %67 : vector<1x32x32xbf16> to vector<32x32xbf16>
    %cst_42 = arith.constant dense<0.000000e+00> : vector<128x32xf32>
    %69 = tpu.matmul %66, %68, %cst_42 {dimension_numbers = #tpu.dot_dimension_numbers<[1], [0], [0], [1], [0, 0, 1, 1], [], []>} : vector<128x32xbf16>, vector<32x32xbf16>, vector<128x32xf32> -> vector<128x32xf32>
    %70 = arith.addf %58, %69 : vector<128x32xf32>
    %71 = vector.extract_strided_slice %0 {offsets = [7, 0], sizes = [121, 32], strides = [1, 1]} : vector<128x32xf32> to vector<121x32xf32>
    %cst_43 = arith.constant 0.000000e+00 : f32
    %72 = vector.broadcast %cst_43 : f32 to vector<7x32xf32>
    %73 = tpu.concatenate %71, %72 in 0 : vector<121x32xf32>, vector<7x32xf32> -> vector<128x32xf32>
    %c6 = arith.constant 6 : index
    %c0_44 = arith.constant 0 : index
    %c0_45 = arith.constant 0 : index
    %74 = vector.load %arg2[%c6, %c0_44, %c0_45] : memref<9x128x1xf32, #tpu.memory_space<vmem>>, vector<1x128x1xf32>
    %75 = vector.shape_cast %74 : vector<1x128x1xf32> to vector<128x1xf32>
    %76 = vector.broadcast %75 : vector<128x1xf32> to vector<128x32xf32>
    %77 = arith.mulf %73, %76 : vector<128x32xf32>
    %78 = arith.truncf %77 : vector<128x32xf32> to vector<128x32xbf16>
    %c6_46 = arith.constant 6 : index
    %c0_47 = arith.constant 0 : index
    %c0_48 = arith.constant 0 : index
    %79 = vector.load %arg3[%c6_46, %c0_47, %c0_48] : memref<9x32x32xbf16, #tpu.memory_space<vmem>>, vector<1x32x32xbf16>
    %80 = vector.shape_cast %79 : vector<1x32x32xbf16> to vector<32x32xbf16>
    %cst_49 = arith.constant dense<0.000000e+00> : vector<128x32xf32>
    %81 = tpu.matmul %78, %80, %cst_49 {dimension_numbers = #tpu.dot_dimension_numbers<[1], [0], [0], [1], [0, 0, 1, 1], [], []>} : vector<128x32xbf16>, vector<32x32xbf16>, vector<128x32xf32> -> vector<128x32xf32>
    %82 = arith.addf %70, %81 : vector<128x32xf32>
    %83 = vector.extract_strided_slice %0 {offsets = [8, 0], sizes = [120, 32], strides = [1, 1]} : vector<128x32xf32> to vector<120x32xf32>
    %cst_50 = arith.constant 0.000000e+00 : f32
    %84 = vector.broadcast %cst_50 : f32 to vector<8x32xf32>
    %85 = tpu.concatenate %83, %84 in 0 : vector<120x32xf32>, vector<8x32xf32> -> vector<128x32xf32>
    %c7 = arith.constant 7 : index
    %c0_51 = arith.constant 0 : index
    %c0_52 = arith.constant 0 : index
    %86 = vector.load %arg2[%c7, %c0_51, %c0_52] : memref<9x128x1xf32, #tpu.memory_space<vmem>>, vector<1x128x1xf32>
    %87 = vector.shape_cast %86 : vector<1x128x1xf32> to vector<128x1xf32>
    %88 = vector.broadcast %87 : vector<128x1xf32> to vector<128x32xf32>
    %89 = arith.mulf %85, %88 : vector<128x32xf32>
    %90 = arith.truncf %89 : vector<128x32xf32> to vector<128x32xbf16>
    %c7_53 = arith.constant 7 : index
    %c0_54 = arith.constant 0 : index
    %c0_55 = arith.constant 0 : index
    %91 = vector.load %arg3[%c7_53, %c0_54, %c0_55] : memref<9x32x32xbf16, #tpu.memory_space<vmem>>, vector<1x32x32xbf16>
    %92 = vector.shape_cast %91 : vector<1x32x32xbf16> to vector<32x32xbf16>
    %cst_56 = arith.constant dense<0.000000e+00> : vector<128x32xf32>
    %93 = tpu.matmul %90, %92, %cst_56 {dimension_numbers = #tpu.dot_dimension_numbers<[1], [0], [0], [1], [0, 0, 1, 1], [], []>} : vector<128x32xbf16>, vector<32x32xbf16>, vector<128x32xf32> -> vector<128x32xf32>
    %94 = arith.addf %82, %93 : vector<128x32xf32>
    %95 = vector.extract_strided_slice %0 {offsets = [9, 0], sizes = [119, 32], strides = [1, 1]} : vector<128x32xf32> to vector<119x32xf32>
    %cst_57 = arith.constant 0.000000e+00 : f32
    %96 = vector.broadcast %cst_57 : f32 to vector<9x32xf32>
    %97 = tpu.concatenate %95, %96 in 0 : vector<119x32xf32>, vector<9x32xf32> -> vector<128x32xf32>
    %c8 = arith.constant 8 : index
    %c0_58 = arith.constant 0 : index
    %c0_59 = arith.constant 0 : index
    %98 = vector.load %arg2[%c8, %c0_58, %c0_59] : memref<9x128x1xf32, #tpu.memory_space<vmem>>, vector<1x128x1xf32>
    %99 = vector.shape_cast %98 : vector<1x128x1xf32> to vector<128x1xf32>
    %100 = vector.broadcast %99 : vector<128x1xf32> to vector<128x32xf32>
    %101 = arith.mulf %97, %100 : vector<128x32xf32>
    %102 = arith.truncf %101 : vector<128x32xf32> to vector<128x32xbf16>
    %c8_60 = arith.constant 8 : index
    %c0_61 = arith.constant 0 : index
    %c0_62 = arith.constant 0 : index
    %103 = vector.load %arg3[%c8_60, %c0_61, %c0_62] : memref<9x32x32xbf16, #tpu.memory_space<vmem>>, vector<1x32x32xbf16>
    %104 = vector.shape_cast %103 : vector<1x32x32xbf16> to vector<32x32xbf16>
    %cst_63 = arith.constant dense<0.000000e+00> : vector<128x32xf32>
    %105 = tpu.matmul %102, %104, %cst_63 {dimension_numbers = #tpu.dot_dimension_numbers<[1], [0], [0], [1], [0, 0, 1, 1], [], []>} : vector<128x32xbf16>, vector<32x32xbf16>, vector<128x32xf32> -> vector<128x32xf32>
    %106 = arith.addf %94, %105 : vector<128x32xf32>
    %c0_64 = arith.constant 0 : index
    %c0_65 = arith.constant 0 : index
    %107 = vector.load %arg4[%c0_64, %c0_65] : memref<1x32xf32, #tpu.memory_space<vmem>>, vector<1x32xf32>
    %108 = vector.broadcast %107 : vector<1x32xf32> to vector<128x32xf32>
    %109 = arith.addf %106, %108 : vector<128x32xf32>
    %cst_66 = arith.constant dense<0.000000e+00> : vector<32xf32>
    %110 = vector.multi_reduction <add>, %109, %cst_66 [0] : vector<128x32xf32> to vector<32xf32>
    %111 = vector.shape_cast %110 : vector<32xf32> to vector<1x32xf32>
    %cst_67 = arith.constant 1.280000e+02 : f32
    %112 = vector.broadcast %cst_67 : f32 to vector<1x32xf32>
    %113 = arith.divf %111, %112 : vector<1x32xf32>
    %114 = vector.broadcast %113 : vector<1x32xf32> to vector<128x32xf32>
    %115 = arith.subf %109, %114 : vector<128x32xf32>
    %116 = arith.mulf %115, %115 : vector<128x32xf32>
    %cst_68 = arith.constant dense<0.000000e+00> : vector<32xf32>
    %117 = vector.multi_reduction <add>, %116, %cst_68 [0] : vector<128x32xf32> to vector<32xf32>
    %118 = vector.shape_cast %117 : vector<32xf32> to vector<1x32xf32>
    %cst_69 = arith.constant 1.280000e+02 : f32
    %119 = vector.broadcast %cst_69 : f32 to vector<1x32xf32>
    %120 = arith.divf %118, %119 : vector<1x32xf32>
    %121 = vector.broadcast %113 : vector<1x32xf32> to vector<128x32xf32>
    %122 = arith.subf %109, %121 : vector<128x32xf32>
    %cst_70 = arith.constant 9.99999974E-6 : f32
    %123 = vector.broadcast %cst_70 : f32 to vector<1x32xf32>
    %124 = arith.addf %120, %123 : vector<1x32xf32>
    %125 = math.rsqrt %124 : vector<1x32xf32>
    %126 = vector.broadcast %125 : vector<1x32xf32> to vector<128x32xf32>
    %127 = arith.mulf %122, %126 : vector<128x32xf32>
    %c0_71 = arith.constant 0 : index
    %c0_72 = arith.constant 0 : index
    %128 = vector.load %arg5[%c0_71, %c0_72] : memref<1x32xf32, #tpu.memory_space<vmem>>, vector<1x32xf32>
    %129 = vector.broadcast %128 : vector<1x32xf32> to vector<128x32xf32>
    %130 = arith.mulf %127, %129 : vector<128x32xf32>
    %c0_73 = arith.constant 0 : index
    %c0_74 = arith.constant 0 : index
    %131 = vector.load %arg6[%c0_73, %c0_74] : memref<1x32xf32, #tpu.memory_space<vmem>>, vector<1x32xf32>
    %132 = vector.broadcast %131 : vector<1x32xf32> to vector<128x32xf32>
    %133 = arith.addf %130, %132 : vector<128x32xf32>
    %cst_75 = arith.constant 0.000000e+00 : f32
    %134 = vector.broadcast %cst_75 : f32 to vector<128x32xf32>
    %135 = arith.maximumf %133, %134 : vector<128x32xf32>
    %136 = arith.truncf %0 : vector<128x32xf32> to vector<128x32xbf16>
    %c0_76 = arith.constant 0 : index
    %c0_77 = arith.constant 0 : index
    %137 = vector.load %arg7[%c0_76, %c0_77] : memref<32x96xbf16, #tpu.memory_space<vmem>>, vector<32x96xbf16>
    %cst_78 = arith.constant dense<0.000000e+00> : vector<128x96xf32>
    %138 = tpu.matmul %136, %137, %cst_78 {dimension_numbers = #tpu.dot_dimension_numbers<[1], [0], [0], [1], [0, 0, 1, 1], [], []>} : vector<128x32xbf16>, vector<32x96xbf16>, vector<128x96xf32> -> vector<128x96xf32>
    %139 = tpu.concatenate %135, %138 in 1 : vector<128x32xf32>, vector<128x96xf32> -> vector<128x128xf32>
    %c0_79 = arith.constant 0 : index
    %c0_80 = arith.constant 0 : index
    %140 = vector.load %arg8[%c0_79, %c0_80] : memref<128x128xf32, #tpu.memory_space<vmem>>, vector<128x128xf32>
    tpu.vector_store %arg8[%c0_79, %c0_80], %139 {strides = array<i32>} : memref<128x128xf32, #tpu.memory_space<vmem>>, vector<128x128xf32>,
    return
  }
  func.func @transform_0(%arg0: i32) -> (i32, i32) {
    %c0_i32 = arith.constant 0 : i32
    %c0_i32_0 = arith.constant 0 : i32
    %c0_i32_1 = arith.constant 0 : i32
    return %c0_i32, %c0_i32_0 : i32, i32
  }
  func.func @transform_1(%arg0: i32) -> (i32, i32, i32) {
    %c0_i32 = arith.constant 0 : i32
    %c0_i32_0 = arith.constant 0 : i32
    %c0_i32_1 = arith.constant 0 : i32
    %c0_i32_2 = arith.constant 0 : i32
    return %c0_i32, %c0_i32_0, %c0_i32_1 : i32, i32, i32
  }
  func.func @transform_2(%arg0: i32) -> (i32, i32, i32) {
    %c0_i32 = arith.constant 0 : i32
    %c0_i32_0 = arith.constant 0 : i32
    %c0_i32_1 = arith.constant 0 : i32
    %c0_i32_2 = arith.constant 0 : i32
    return %c0_i32, %c0_i32_0, %c0_i32_1 : i32, i32, i32
  }
  func.func @transform_3(%arg0: i32) -> (i32, i32) {
    %c0_i32 = arith.constant 0 : i32
    %c0_i32_0 = arith.constant 0 : i32
    %c0_i32_1 = arith.constant 0 : i32
    return %c0_i32, %c0_i32_0 : i32, i32
  }
  func.func @transform_4(%arg0: i32) -> (i32, i32) {
    %c0_i32 = arith.constant 0 : i32
    %c0_i32_0 = arith.constant 0 : i32
    %c0_i32_1 = arith.constant 0 : i32
    return %c0_i32, %c0_i32_0 : i32, i32
  }
  func.func @transform_5(%arg0: i32) -> (i32, i32) {
    %c0_i32 = arith.constant 0 : i32
    %c0_i32_0 = arith.constant 0 : i32
    %c0_i32_1 = arith.constant 0 : i32
    return %c0_i32, %c0_i32_0 : i32, i32
  }
  func.func @transform_6(%arg0: i32) -> (i32, i32) {
    %c0_i32 = arith.constant 0 : i32
    %c0_i32_0 = arith.constant 0 : i32
    %c0_i32_1 = arith.constant 0 : i32
    return %c0_i32, %c0_i32_0 : i32, i32
  }
  func.func @transform_7(%arg0: i32) -> (i32, i32) {
    %c0_i32 = arith.constant 0 : i32
    %c0_i32_0 = arith.constant 0 : i32
    %c0_i32_1 = arith.constant 0 : i32
    return %c0_i32, %c0_i32_0 : i32, i32
  }
}

module attributes {stable_mosaic.version = 11 : i64} {
  func.func @_stage2_kernel(%arg0: i32, %arg1: memref<128x32xf32, #tpu.memory_space<vmem>>, %arg2: memref<9x128x1xf32, #tpu.memory_space<vmem>>, %arg3: memref<9x32x32xbf16, #tpu.memory_space<vmem>>, %arg4: memref<1x32xf32, #tpu.memory_space<vmem>>, %arg5: memref<1x32xf32, #tpu.memory_space<vmem>>, %arg6: memref<1x32xf32, #tpu.memory_space<vmem>>, %arg7: memref<32x8xbf16, #tpu.memory_space<vmem>>, %arg8: memref<1x8xf32, #tpu.memory_space<vmem>>, %arg9: memref<8x32xbf16, #tpu.memory_space<vmem>>, %arg10: memref<1x32xf32, #tpu.memory_space<vmem>>, %arg11: memref<128x32xf32, #tpu.memory_space<vmem>>) attributes {dimension_semantics = [#tpu.dimension_semantics<arbitrary>], iteration_bounds = array<i64: 1>, scalar_prefetch = 0 : i64, scratch_operands = 0 : i64, tpu.core_type = #tpu.core_type<tc>, window_params = [{pipeline_mode = #tpu.pipeline_mode<synchronous>, transform_indices = @transform_0, window_bounds = array<i64: 128, 32>}, {pipeline_mode = #tpu.pipeline_mode<synchronous>, transform_indices = @transform_1, window_bounds = array<i64: 9, 128, 1>}, {pipeline_mode = #tpu.pipeline_mode<synchronous>, transform_indices = @transform_2, window_bounds = array<i64: 9, 32, 32>}, {pipeline_mode = #tpu.pipeline_mode<synchronous>, transform_indices = @transform_3, window_bounds = array<i64: 1, 32>}, {pipeline_mode = #tpu.pipeline_mode<synchronous>, transform_indices = @transform_4, window_bounds = array<i64: 1, 32>}, {pipeline_mode = #tpu.pipeline_mode<synchronous>, transform_indices = @transform_5, window_bounds = array<i64: 1, 32>}, {pipeline_mode = #tpu.pipeline_mode<synchronous>, transform_indices = @transform_6, window_bounds = array<i64: 32, 8>}, {pipeline_mode = #tpu.pipeline_mode<synchronous>, transform_indices = @transform_7, window_bounds = array<i64: 1, 8>}, {pipeline_mode = #tpu.pipeline_mode<synchronous>, transform_indices = @transform_8, window_bounds = array<i64: 8, 32>}, {pipeline_mode = #tpu.pipeline_mode<synchronous>, transform_indices = @transform_9, window_bounds = array<i64: 1, 32>}, {pipeline_mode = #tpu.pipeline_mode<synchronous>, transform_indices = @transform_10, window_bounds = array<i64: 128, 32>}]} {
    %c0 = arith.constant 0 : index
    %c0_0 = arith.constant 0 : index
    %0 = vector.load %arg1[%c0, %c0_0] : memref<128x32xf32, #tpu.memory_space<vmem>>, vector<128x32xf32>
    %cst = arith.constant 0.000000e+00 : f32
    %1 = vector.broadcast %cst : f32 to vector<128x32xf32>
    %cst_1 = arith.constant 0.000000e+00 : f32
    %2 = vector.broadcast %cst_1 : f32 to vector<9x32xf32>
    %3 = vector.extract_strided_slice %0 {offsets = [0, 0], sizes = [119, 32], strides = [1, 1]} : vector<128x32xf32> to vector<119x32xf32>
    %4 = tpu.concatenate %2, %3 in 0 : vector<9x32xf32>, vector<119x32xf32> -> vector<128x32xf32>
    %c0_2 = arith.constant 0 : index
    %c0_3 = arith.constant 0 : index
    %c0_4 = arith.constant 0 : index
    %5 = vector.load %arg2[%c0_2, %c0_3, %c0_4] : memref<9x128x1xf32, #tpu.memory_space<vmem>>, vector<1x128x1xf32>
    %6 = vector.shape_cast %5 : vector<1x128x1xf32> to vector<128x1xf32>
    %7 = vector.broadcast %6 : vector<128x1xf32> to vector<128x32xf32>
    %8 = arith.mulf %4, %7 : vector<128x32xf32>
    %9 = arith.truncf %8 : vector<128x32xf32> to vector<128x32xbf16>
    %c0_5 = arith.constant 0 : index
    %c0_6 = arith.constant 0 : index
    %c0_7 = arith.constant 0 : index
    %10 = vector.load %arg3[%c0_5, %c0_6, %c0_7] : memref<9x32x32xbf16, #tpu.memory_space<vmem>>, vector<1x32x32xbf16>
    %11 = vector.shape_cast %10 : vector<1x32x32xbf16> to vector<32x32xbf16>
    %cst_8 = arith.constant dense<0.000000e+00> : vector<128x32xf32>
    %12 = tpu.matmul %9, %11, %cst_8 {dimension_numbers = #tpu.dot_dimension_numbers<[1], [0], [0], [1], [0, 0, 1, 1], [], []>} : vector<128x32xbf16>, vector<32x32xbf16>, vector<128x32xf32> -> vector<128x32xf32>
    %13 = arith.addf %1, %12 : vector<128x32xf32>
    %cst_9 = arith.constant 0.000000e+00 : f32
    %14 = vector.broadcast %cst_9 : f32 to vector<8x32xf32>
    %15 = vector.extract_strided_slice %0 {offsets = [0, 0], sizes = [120, 32], strides = [1, 1]} : vector<128x32xf32> to vector<120x32xf32>
    %16 = tpu.concatenate %14, %15 in 0 : vector<8x32xf32>, vector<120x32xf32> -> vector<128x32xf32>
    %c1 = arith.constant 1 : index
    %c0_10 = arith.constant 0 : index
    %c0_11 = arith.constant 0 : index
    %17 = vector.load %arg2[%c1, %c0_10, %c0_11] : memref<9x128x1xf32, #tpu.memory_space<vmem>>, vector<1x128x1xf32>
    %18 = vector.shape_cast %17 : vector<1x128x1xf32> to vector<128x1xf32>
    %19 = vector.broadcast %18 : vector<128x1xf32> to vector<128x32xf32>
    %20 = arith.mulf %16, %19 : vector<128x32xf32>
    %21 = arith.truncf %20 : vector<128x32xf32> to vector<128x32xbf16>
    %c1_12 = arith.constant 1 : index
    %c0_13 = arith.constant 0 : index
    %c0_14 = arith.constant 0 : index
    %22 = vector.load %arg3[%c1_12, %c0_13, %c0_14] : memref<9x32x32xbf16, #tpu.memory_space<vmem>>, vector<1x32x32xbf16>
    %23 = vector.shape_cast %22 : vector<1x32x32xbf16> to vector<32x32xbf16>
    %cst_15 = arith.constant dense<0.000000e+00> : vector<128x32xf32>
    %24 = tpu.matmul %21, %23, %cst_15 {dimension_numbers = #tpu.dot_dimension_numbers<[1], [0], [0], [1], [0, 0, 1, 1], [], []>} : vector<128x32xbf16>, vector<32x32xbf16>, vector<128x32xf32> -> vector<128x32xf32>
    %25 = arith.addf %13, %24 : vector<128x32xf32>
    %cst_16 = arith.constant 0.000000e+00 : f32
    %26 = vector.broadcast %cst_16 : f32 to vector<7x32xf32>
    %27 = vector.extract_strided_slice %0 {offsets = [0, 0], sizes = [121, 32], strides = [1, 1]} : vector<128x32xf32> to vector<121x32xf32>
    %28 = tpu.concatenate %26, %27 in 0 : vector<7x32xf32>, vector<121x32xf32> -> vector<128x32xf32>
    %c2 = arith.constant 2 : index
    %c0_17 = arith.constant 0 : index
    %c0_18 = arith.constant 0 : index
    %29 = vector.load %arg2[%c2, %c0_17, %c0_18] : memref<9x128x1xf32, #tpu.memory_space<vmem>>, vector<1x128x1xf32>
    %30 = vector.shape_cast %29 : vector<1x128x1xf32> to vector<128x1xf32>
    %31 = vector.broadcast %30 : vector<128x1xf32> to vector<128x32xf32>
    %32 = arith.mulf %28, %31 : vector<128x32xf32>
    %33 = arith.truncf %32 : vector<128x32xf32> to vector<128x32xbf16>
    %c2_19 = arith.constant 2 : index
    %c0_20 = arith.constant 0 : index
    %c0_21 = arith.constant 0 : index
    %34 = vector.load %arg3[%c2_19, %c0_20, %c0_21] : memref<9x32x32xbf16, #tpu.memory_space<vmem>>, vector<1x32x32xbf16>
    %35 = vector.shape_cast %34 : vector<1x32x32xbf16> to vector<32x32xbf16>
    %cst_22 = arith.constant dense<0.000000e+00> : vector<128x32xf32>
    %36 = tpu.matmul %33, %35, %cst_22 {dimension_numbers = #tpu.dot_dimension_numbers<[1], [0], [0], [1], [0, 0, 1, 1], [], []>} : vector<128x32xbf16>, vector<32x32xbf16>, vector<128x32xf32> -> vector<128x32xf32>
    %37 = arith.addf %25, %36 : vector<128x32xf32>
    %cst_23 = arith.constant 0.000000e+00 : f32
    %38 = vector.broadcast %cst_23 : f32 to vector<1x32xf32>
    %39 = vector.extract_strided_slice %0 {offsets = [0, 0], sizes = [127, 32], strides = [1, 1]} : vector<128x32xf32> to vector<127x32xf32>
    %40 = tpu.concatenate %38, %39 in 0 : vector<1x32xf32>, vector<127x32xf32> -> vector<128x32xf32>
    %c3 = arith.constant 3 : index
    %c0_24 = arith.constant 0 : index
    %c0_25 = arith.constant 0 : index
    %41 = vector.load %arg2[%c3, %c0_24, %c0_25] : memref<9x128x1xf32, #tpu.memory_space<vmem>>, vector<1x128x1xf32>
    %42 = vector.shape_cast %41 : vector<1x128x1xf32> to vector<128x1xf32>
    %43 = vector.broadcast %42 : vector<128x1xf32> to vector<128x32xf32>
    %44 = arith.mulf %40, %43 : vector<128x32xf32>
    %45 = arith.truncf %44 : vector<128x32xf32> to vector<128x32xbf16>
    %c3_26 = arith.constant 3 : index
    %c0_27 = arith.constant 0 : index
    %c0_28 = arith.constant 0 : index
    %46 = vector.load %arg3[%c3_26, %c0_27, %c0_28] : memref<9x32x32xbf16, #tpu.memory_space<vmem>>, vector<1x32x32xbf16>
    %47 = vector.shape_cast %46 : vector<1x32x32xbf16> to vector<32x32xbf16>
    %cst_29 = arith.constant dense<0.000000e+00> : vector<128x32xf32>
    %48 = tpu.matmul %45, %47, %cst_29 {dimension_numbers = #tpu.dot_dimension_numbers<[1], [0], [0], [1], [0, 0, 1, 1], [], []>} : vector<128x32xbf16>, vector<32x32xbf16>, vector<128x32xf32> -> vector<128x32xf32>
    %49 = arith.addf %37, %48 : vector<128x32xf32>
    %c4 = arith.constant 4 : index
    %c0_30 = arith.constant 0 : index
    %c0_31 = arith.constant 0 : index
    %50 = vector.load %arg2[%c4, %c0_30, %c0_31] : memref<9x128x1xf32, #tpu.memory_space<vmem>>, vector<1x128x1xf32>
    %51 = vector.shape_cast %50 : vector<1x128x1xf32> to vector<128x1xf32>
    %52 = vector.broadcast %51 : vector<128x1xf32> to vector<128x32xf32>
    %53 = arith.mulf %0, %52 : vector<128x32xf32>
    %54 = arith.truncf %53 : vector<128x32xf32> to vector<128x32xbf16>
    %c4_32 = arith.constant 4 : index
    %c0_33 = arith.constant 0 : index
    %c0_34 = arith.constant 0 : index
    %55 = vector.load %arg3[%c4_32, %c0_33, %c0_34] : memref<9x32x32xbf16, #tpu.memory_space<vmem>>, vector<1x32x32xbf16>
    %56 = vector.shape_cast %55 : vector<1x32x32xbf16> to vector<32x32xbf16>
    %cst_35 = arith.constant dense<0.000000e+00> : vector<128x32xf32>
    %57 = tpu.matmul %54, %56, %cst_35 {dimension_numbers = #tpu.dot_dimension_numbers<[1], [0], [0], [1], [0, 0, 1, 1], [], []>} : vector<128x32xbf16>, vector<32x32xbf16>, vector<128x32xf32> -> vector<128x32xf32>
    %58 = arith.addf %49, %57 : vector<128x32xf32>
    %59 = vector.extract_strided_slice %0 {offsets = [1, 0], sizes = [127, 32], strides = [1, 1]} : vector<128x32xf32> to vector<127x32xf32>
    %cst_36 = arith.constant 0.000000e+00 : f32
    %60 = vector.broadcast %cst_36 : f32 to vector<1x32xf32>
    %61 = tpu.concatenate %59, %60 in 0 : vector<127x32xf32>, vector<1x32xf32> -> vector<128x32xf32>
    %c5 = arith.constant 5 : index
    %c0_37 = arith.constant 0 : index
    %c0_38 = arith.constant 0 : index
    %62 = vector.load %arg2[%c5, %c0_37, %c0_38] : memref<9x128x1xf32, #tpu.memory_space<vmem>>, vector<1x128x1xf32>
    %63 = vector.shape_cast %62 : vector<1x128x1xf32> to vector<128x1xf32>
    %64 = vector.broadcast %63 : vector<128x1xf32> to vector<128x32xf32>
    %65 = arith.mulf %61, %64 : vector<128x32xf32>
    %66 = arith.truncf %65 : vector<128x32xf32> to vector<128x32xbf16>
    %c5_39 = arith.constant 5 : index
    %c0_40 = arith.constant 0 : index
    %c0_41 = arith.constant 0 : index
    %67 = vector.load %arg3[%c5_39, %c0_40, %c0_41] : memref<9x32x32xbf16, #tpu.memory_space<vmem>>, vector<1x32x32xbf16>
    %68 = vector.shape_cast %67 : vector<1x32x32xbf16> to vector<32x32xbf16>
    %cst_42 = arith.constant dense<0.000000e+00> : vector<128x32xf32>
    %69 = tpu.matmul %66, %68, %cst_42 {dimension_numbers = #tpu.dot_dimension_numbers<[1], [0], [0], [1], [0, 0, 1, 1], [], []>} : vector<128x32xbf16>, vector<32x32xbf16>, vector<128x32xf32> -> vector<128x32xf32>
    %70 = arith.addf %58, %69 : vector<128x32xf32>
    %71 = vector.extract_strided_slice %0 {offsets = [7, 0], sizes = [121, 32], strides = [1, 1]} : vector<128x32xf32> to vector<121x32xf32>
    %cst_43 = arith.constant 0.000000e+00 : f32
    %72 = vector.broadcast %cst_43 : f32 to vector<7x32xf32>
    %73 = tpu.concatenate %71, %72 in 0 : vector<121x32xf32>, vector<7x32xf32> -> vector<128x32xf32>
    %c6 = arith.constant 6 : index
    %c0_44 = arith.constant 0 : index
    %c0_45 = arith.constant 0 : index
    %74 = vector.load %arg2[%c6, %c0_44, %c0_45] : memref<9x128x1xf32, #tpu.memory_space<vmem>>, vector<1x128x1xf32>
    %75 = vector.shape_cast %74 : vector<1x128x1xf32> to vector<128x1xf32>
    %76 = vector.broadcast %75 : vector<128x1xf32> to vector<128x32xf32>
    %77 = arith.mulf %73, %76 : vector<128x32xf32>
    %78 = arith.truncf %77 : vector<128x32xf32> to vector<128x32xbf16>
    %c6_46 = arith.constant 6 : index
    %c0_47 = arith.constant 0 : index
    %c0_48 = arith.constant 0 : index
    %79 = vector.load %arg3[%c6_46, %c0_47, %c0_48] : memref<9x32x32xbf16, #tpu.memory_space<vmem>>, vector<1x32x32xbf16>
    %80 = vector.shape_cast %79 : vector<1x32x32xbf16> to vector<32x32xbf16>
    %cst_49 = arith.constant dense<0.000000e+00> : vector<128x32xf32>
    %81 = tpu.matmul %78, %80, %cst_49 {dimension_numbers = #tpu.dot_dimension_numbers<[1], [0], [0], [1], [0, 0, 1, 1], [], []>} : vector<128x32xbf16>, vector<32x32xbf16>, vector<128x32xf32> -> vector<128x32xf32>
    %82 = arith.addf %70, %81 : vector<128x32xf32>
    %83 = vector.extract_strided_slice %0 {offsets = [8, 0], sizes = [120, 32], strides = [1, 1]} : vector<128x32xf32> to vector<120x32xf32>
    %cst_50 = arith.constant 0.000000e+00 : f32
    %84 = vector.broadcast %cst_50 : f32 to vector<8x32xf32>
    %85 = tpu.concatenate %83, %84 in 0 : vector<120x32xf32>, vector<8x32xf32> -> vector<128x32xf32>
    %c7 = arith.constant 7 : index
    %c0_51 = arith.constant 0 : index
    %c0_52 = arith.constant 0 : index
    %86 = vector.load %arg2[%c7, %c0_51, %c0_52] : memref<9x128x1xf32, #tpu.memory_space<vmem>>, vector<1x128x1xf32>
    %87 = vector.shape_cast %86 : vector<1x128x1xf32> to vector<128x1xf32>
    %88 = vector.broadcast %87 : vector<128x1xf32> to vector<128x32xf32>
    %89 = arith.mulf %85, %88 : vector<128x32xf32>
    %90 = arith.truncf %89 : vector<128x32xf32> to vector<128x32xbf16>
    %c7_53 = arith.constant 7 : index
    %c0_54 = arith.constant 0 : index
    %c0_55 = arith.constant 0 : index
    %91 = vector.load %arg3[%c7_53, %c0_54, %c0_55] : memref<9x32x32xbf16, #tpu.memory_space<vmem>>, vector<1x32x32xbf16>
    %92 = vector.shape_cast %91 : vector<1x32x32xbf16> to vector<32x32xbf16>
    %cst_56 = arith.constant dense<0.000000e+00> : vector<128x32xf32>
    %93 = tpu.matmul %90, %92, %cst_56 {dimension_numbers = #tpu.dot_dimension_numbers<[1], [0], [0], [1], [0, 0, 1, 1], [], []>} : vector<128x32xbf16>, vector<32x32xbf16>, vector<128x32xf32> -> vector<128x32xf32>
    %94 = arith.addf %82, %93 : vector<128x32xf32>
    %95 = vector.extract_strided_slice %0 {offsets = [9, 0], sizes = [119, 32], strides = [1, 1]} : vector<128x32xf32> to vector<119x32xf32>
    %cst_57 = arith.constant 0.000000e+00 : f32
    %96 = vector.broadcast %cst_57 : f32 to vector<9x32xf32>
    %97 = tpu.concatenate %95, %96 in 0 : vector<119x32xf32>, vector<9x32xf32> -> vector<128x32xf32>
    %c8 = arith.constant 8 : index
    %c0_58 = arith.constant 0 : index
    %c0_59 = arith.constant 0 : index
    %98 = vector.load %arg2[%c8, %c0_58, %c0_59] : memref<9x128x1xf32, #tpu.memory_space<vmem>>, vector<1x128x1xf32>
    %99 = vector.shape_cast %98 : vector<1x128x1xf32> to vector<128x1xf32>
    %100 = vector.broadcast %99 : vector<128x1xf32> to vector<128x32xf32>
    %101 = arith.mulf %97, %100 : vector<128x32xf32>
    %102 = arith.truncf %101 : vector<128x32xf32> to vector<128x32xbf16>
    %c8_60 = arith.constant 8 : index
    %c0_61 = arith.constant 0 : index
    %c0_62 = arith.constant 0 : index
    %103 = vector.load %arg3[%c8_60, %c0_61, %c0_62] : memref<9x32x32xbf16, #tpu.memory_space<vmem>>, vector<1x32x32xbf16>
    %104 = vector.shape_cast %103 : vector<1x32x32xbf16> to vector<32x32xbf16>
    %cst_63 = arith.constant dense<0.000000e+00> : vector<128x32xf32>
    %105 = tpu.matmul %102, %104, %cst_63 {dimension_numbers = #tpu.dot_dimension_numbers<[1], [0], [0], [1], [0, 0, 1, 1], [], []>} : vector<128x32xbf16>, vector<32x32xbf16>, vector<128x32xf32> -> vector<128x32xf32>
    %106 = arith.addf %94, %105 : vector<128x32xf32>
    %c0_64 = arith.constant 0 : index
    %c0_65 = arith.constant 0 : index
    %107 = vector.load %arg4[%c0_64, %c0_65] : memref<1x32xf32, #tpu.memory_space<vmem>>, vector<1x32xf32>
    %108 = vector.broadcast %107 : vector<1x32xf32> to vector<128x32xf32>
    %109 = arith.addf %106, %108 : vector<128x32xf32>
    %cst_66 = arith.constant dense<0.000000e+00> : vector<32xf32>
    %110 = vector.multi_reduction <add>, %109, %cst_66 [0] : vector<128x32xf32> to vector<32xf32>
    %111 = vector.shape_cast %110 : vector<32xf32> to vector<1x32xf32>
    %cst_67 = arith.constant 1.280000e+02 : f32
    %112 = vector.broadcast %cst_67 : f32 to vector<1x32xf32>
    %113 = arith.divf %111, %112 : vector<1x32xf32>
    %114 = vector.broadcast %113 : vector<1x32xf32> to vector<128x32xf32>
    %115 = arith.subf %109, %114 : vector<128x32xf32>
    %116 = arith.mulf %115, %115 : vector<128x32xf32>
    %cst_68 = arith.constant dense<0.000000e+00> : vector<32xf32>
    %117 = vector.multi_reduction <add>, %116, %cst_68 [0] : vector<128x32xf32> to vector<32xf32>
    %118 = vector.shape_cast %117 : vector<32xf32> to vector<1x32xf32>
    %cst_69 = arith.constant 1.280000e+02 : f32
    %119 = vector.broadcast %cst_69 : f32 to vector<1x32xf32>
    %120 = arith.divf %118, %119 : vector<1x32xf32>
    %121 = vector.broadcast %113 : vector<1x32xf32> to vector<128x32xf32>
    %122 = arith.subf %109, %121 : vector<128x32xf32>
    %cst_70 = arith.constant 9.99999974E-6 : f32
    %123 = vector.broadcast %cst_70 : f32 to vector<1x32xf32>
    %124 = arith.addf %120, %123 : vector<1x32xf32>
    %125 = math.rsqrt %124 : vector<1x32xf32>
    %126 = vector.broadcast %125 : vector<1x32xf32> to vector<128x32xf32>
    %127 = arith.mulf %122, %126 : vector<128x32xf32>
    %c0_71 = arith.constant 0 : index
    %c0_72 = arith.constant 0 : index
    %128 = vector.load %arg5[%c0_71, %c0_72] : memref<1x32xf32, #tpu.memory_space<vmem>>, vector<1x32xf32>
    %129 = vector.broadcast %128 : vector<1x32xf32> to vector<128x32xf32>
    %130 = arith.mulf %127, %129 : vector<128x32xf32>
    %c0_73 = arith.constant 0 : index
    %c0_74 = arith.constant 0 : index
    %131 = vector.load %arg6[%c0_73, %c0_74] : memref<1x32xf32, #tpu.memory_space<vmem>>, vector<1x32xf32>
    %132 = vector.broadcast %131 : vector<1x32xf32> to vector<128x32xf32>
    %133 = arith.addf %130, %132 : vector<128x32xf32>
    %cst_75 = arith.constant 0.000000e+00 : f32
    %134 = vector.broadcast %cst_75 : f32 to vector<128x32xf32>
    %135 = arith.maximumf %133, %134 : vector<128x32xf32>
    %136 = vector.extract_strided_slice %135 {offsets = [0, 0], sizes = [64, 32], strides = [1, 1]} : vector<128x32xf32> to vector<64x32xf32>
    %cst_76 = arith.constant dense<0xFF800000> : vector<32xf32>
    %137 = vector.multi_reduction <maximumf>, %136, %cst_76 [0] : vector<64x32xf32> to vector<32xf32>
    %138 = vector.shape_cast %137 : vector<32xf32> to vector<1x32xf32>
    %139 = vector.extract_strided_slice %135 {offsets = [64, 0], sizes = [64, 32], strides = [1, 1]} : vector<128x32xf32> to vector<64x32xf32>
    %cst_77 = arith.constant dense<0xFF800000> : vector<32xf32>
    %140 = vector.multi_reduction <maximumf>, %139, %cst_77 [0] : vector<64x32xf32> to vector<32xf32>
    %141 = vector.shape_cast %140 : vector<32xf32> to vector<1x32xf32>
    %142 = vector.extract_strided_slice %135 {offsets = [0, 0], sizes = [64, 32], strides = [1, 1]} : vector<128x32xf32> to vector<64x32xf32>
    %cst_78 = arith.constant dense<0.000000e+00> : vector<32xf32>
    %143 = vector.multi_reduction <add>, %142, %cst_78 [0] : vector<64x32xf32> to vector<32xf32>
    %144 = vector.shape_cast %143 : vector<32xf32> to vector<1x32xf32>
    %cst_79 = arith.constant 6.400000e+01 : f32
    %145 = vector.broadcast %cst_79 : f32 to vector<1x32xf32>
    %146 = arith.divf %144, %145 : vector<1x32xf32>
    %147 = vector.extract_strided_slice %135 {offsets = [64, 0], sizes = [64, 32], strides = [1, 1]} : vector<128x32xf32> to vector<64x32xf32>
    %cst_80 = arith.constant dense<0.000000e+00> : vector<32xf32>
    %148 = vector.multi_reduction <add>, %147, %cst_80 [0] : vector<64x32xf32> to vector<32xf32>
    %149 = vector.shape_cast %148 : vector<32xf32> to vector<1x32xf32>
    %cst_81 = arith.constant 6.400000e+01 : f32
    %150 = vector.broadcast %cst_81 : f32 to vector<1x32xf32>
    %151 = arith.divf %149, %150 : vector<1x32xf32>
    %152 = tpu.concatenate %138, %141, %146, %151 in 0 : vector<1x32xf32>, vector<1x32xf32>, vector<1x32xf32>, vector<1x32xf32> -> vector<4x32xf32>
    %153 = arith.truncf %152 : vector<4x32xf32> to vector<4x32xbf16>
    %c0_82 = arith.constant 0 : index
    %c0_83 = arith.constant 0 : index
    %154 = vector.load %arg7[%c0_82, %c0_83] : memref<32x8xbf16, #tpu.memory_space<vmem>>, vector<32x8xbf16>
    %cst_84 = arith.constant dense<0.000000e+00> : vector<4x8xf32>
    %155 = tpu.matmul %153, %154, %cst_84 {dimension_numbers = #tpu.dot_dimension_numbers<[1], [0], [0], [1], [0, 0, 1, 1], [], []>} : vector<4x32xbf16>, vector<32x8xbf16>, vector<4x8xf32> -> vector<4x8xf32>
    %c0_85 = arith.constant 0 : index
    %c0_86 = arith.constant 0 : index
    %156 = vector.load %arg8[%c0_85, %c0_86] : memref<1x8xf32, #tpu.memory_space<vmem>>, vector<1x8xf32>
    %157 = vector.broadcast %156 : vector<1x8xf32> to vector<4x8xf32>
    %158 = arith.addf %155, %157 : vector<4x8xf32>
    %cst_87 = arith.constant 0.000000e+00 : f32
    %159 = vector.broadcast %cst_87 : f32 to vector<4x8xf32>
    %160 = arith.maximumf %158, %159 : vector<4x8xf32>
    %161 = arith.truncf %160 : vector<4x8xf32> to vector<4x8xbf16>
    %c0_88 = arith.constant 0 : index
    %c0_89 = arith.constant 0 : index
    %162 = vector.load %arg9[%c0_88, %c0_89] : memref<8x32xbf16, #tpu.memory_space<vmem>>, vector<8x32xbf16>
    %cst_90 = arith.constant dense<0.000000e+00> : vector<4x32xf32>
    %163 = tpu.matmul %161, %162, %cst_90 {dimension_numbers = #tpu.dot_dimension_numbers<[1], [0], [0], [1], [0, 0, 1, 1], [], []>} : vector<4x8xbf16>, vector<8x32xbf16>, vector<4x32xf32> -> vector<4x32xf32>
    %c0_91 = arith.constant 0 : index
    %c0_92 = arith.constant 0 : index
    %164 = vector.load %arg10[%c0_91, %c0_92] : memref<1x32xf32, #tpu.memory_space<vmem>>, vector<1x32xf32>
    %165 = vector.broadcast %164 : vector<1x32xf32> to vector<4x32xf32>
    %166 = arith.addf %163, %165 : vector<4x32xf32>
    %167 = vector.extract_strided_slice %166 {offsets = [0, 0], sizes = [2, 32], strides = [1, 1]} : vector<4x32xf32> to vector<2x32xf32>
    %168 = vector.extract_strided_slice %166 {offsets = [2, 0], sizes = [2, 32], strides = [1, 1]} : vector<4x32xf32> to vector<2x32xf32>
    %169 = arith.addf %167, %168 : vector<2x32xf32>
    %170 = arith.negf %169 : vector<2x32xf32>
    %171 = math.exp %170 : vector<2x32xf32>
    %cst_93 = arith.constant 1.000000e+00 : f32
    %172 = vector.broadcast %cst_93 : f32 to vector<2x32xf32>
    %173 = arith.addf %172, %171 : vector<2x32xf32>
    %174 = arith.divf %172, %173 : vector<2x32xf32>
    %175 = vector.extract_strided_slice %174 {offsets = [0, 0], sizes = [1, 32], strides = [1, 1]} : vector<2x32xf32> to vector<1x32xf32>
    %176 = vector.shape_cast %175 : vector<1x32xf32> to vector<1x32xf32>
    %177 = vector.broadcast %176 : vector<1x32xf32> to vector<64x32xf32>
    %178 = vector.extract_strided_slice %174 {offsets = [1, 0], sizes = [1, 32], strides = [1, 1]} : vector<2x32xf32> to vector<1x32xf32>
    %179 = vector.shape_cast %178 : vector<1x32xf32> to vector<1x32xf32>
    %180 = vector.broadcast %179 : vector<1x32xf32> to vector<64x32xf32>
    %181 = tpu.concatenate %177, %180 in 0 : vector<64x32xf32>, vector<64x32xf32> -> vector<128x32xf32>
    %182 = arith.mulf %135, %181 : vector<128x32xf32>
    %c0_94 = arith.constant 0 : index
    %c0_95 = arith.constant 0 : index
    %183 = vector.load %arg11[%c0_94, %c0_95] : memref<128x32xf32, #tpu.memory_space<vmem>>, vector<128x32xf32>
    tpu.vector_store %arg11[%c0_94, %c0_95], %182 {strides = array<i32>} : memref<128x32xf32, #tpu.memory_space<vmem>>, vector<128x32xf32>,
    return
  }
  func.func @transform_0(%arg0: i32) -> (i32, i32) {
    %c0_i32 = arith.constant 0 : i32
    %c0_i32_0 = arith.constant 0 : i32
    %c0_i32_1 = arith.constant 0 : i32
    return %c0_i32, %c0_i32_0 : i32, i32
  }
  func.func @transform_1(%arg0: i32) -> (i32, i32, i32) {
    %c0_i32 = arith.constant 0 : i32
    %c0_i32_0 = arith.constant 0 : i32
    %c0_i32_1 = arith.constant 0 : i32
    %c0_i32_2 = arith.constant 0 : i32
    return %c0_i32, %c0_i32_0, %c0_i32_1 : i32, i32, i32
  }
  func.func @transform_2(%arg0: i32) -> (i32, i32, i32) {
    %c0_i32 = arith.constant 0 : i32
    %c0_i32_0 = arith.constant 0 : i32
    %c0_i32_1 = arith.constant 0 : i32
    %c0_i32_2 = arith.constant 0 : i32
    return %c0_i32, %c0_i32_0, %c0_i32_1 : i32, i32, i32
  }
  func.func @transform_3(%arg0: i32) -> (i32, i32) {
    %c0_i32 = arith.constant 0 : i32
    %c0_i32_0 = arith.constant 0 : i32
    %c0_i32_1 = arith.constant 0 : i32
    return %c0_i32, %c0_i32_0 : i32, i32
  }
  func.func @transform_4(%arg0: i32) -> (i32, i32) {
    %c0_i32 = arith.constant 0 : i32
    %c0_i32_0 = arith.constant 0 : i32
    %c0_i32_1 = arith.constant 0 : i32
    return %c0_i32, %c0_i32_0 : i32, i32
  }
  func.func @transform_5(%arg0: i32) -> (i32, i32) {
    %c0_i32 = arith.constant 0 : i32
    %c0_i32_0 = arith.constant 0 : i32
    %c0_i32_1 = arith.constant 0 : i32
    return %c0_i32, %c0_i32_0 : i32, i32
  }
  func.func @transform_6(%arg0: i32) -> (i32, i32) {
    %c0_i32 = arith.constant 0 : i32
    %c0_i32_0 = arith.constant 0 : i32
    %c0_i32_1 = arith.constant 0 : i32
    return %c0_i32, %c0_i32_0 : i32, i32
  }
  func.func @transform_7(%arg0: i32) -> (i32, i32) {
    %c0_i32 = arith.constant 0 : i32
    %c0_i32_0 = arith.constant 0 : i32
    %c0_i32_1 = arith.constant 0 : i32
    return %c0_i32, %c0_i32_0 : i32, i32
  }
  func.func @transform_8(%arg0: i32) -> (i32, i32) {
    %c0_i32 = arith.constant 0 : i32
    %c0_i32_0 = arith.constant 0 : i32
    %c0_i32_1 = arith.constant 0 : i32
    return %c0_i32, %c0_i32_0 : i32, i32
  }
  func.func @transform_9(%arg0: i32) -> (i32, i32) {
    %c0_i32 = arith.constant 0 : i32
    %c0_i32_0 = arith.constant 0 : i32
    %c0_i32_1 = arith.constant 0 : i32
    return %c0_i32, %c0_i32_0 : i32, i32
  }
  func.func @transform_10(%arg0: i32) -> (i32, i32) {
    %c0_i32 = arith.constant 0 : i32
    %c0_i32_0 = arith.constant 0 : i32
    %c0_i32_1 = arith.constant 0 : i32
    return %c0_i32, %c0_i32_0 : i32, i32
  }
}

</mosaic_0001>

<llo_original>
// kernel: ca_local_global_forward.2
$region0: #{ca_local_global_forward.2}
  #allocation0 [shape = 'u32[]', space=smem, size = 0x4, offset = 0x4, fixed_abs, tag = 'smem constant byte address 0x4 - core index']
  #allocation1 [shape = 'u32[144,128]{1,0:T(1,128)}', space=vmem, size = 0x12000, scoped, tag = 'internal scratch']
  %s0 = inlined_call_operand.vmem [shape: f32[128,32], index: 0, kind: input, shape index: {}]
  %s1 = inlined_call_operand.vmem [shape: f32[9,128,1], index: 1, kind: input, shape index: {}]
  %s2 = inlined_call_operand.vmem [shape: bf16[9,32,32], index: 2, kind: input, shape index: {}]
  %s3 = inlined_call_operand.vmem [shape: f32[1,32], index: 3, kind: input, shape index: {}]
  %s4 = inlined_call_operand.vmem [shape: f32[1,32], index: 4, kind: input, shape index: {}]
  %s5 = inlined_call_operand.vmem [shape: f32[1,32], index: 5, kind: input, shape index: {}]
  %s6 = inlined_call_operand.vmem [shape: bf16[32,96], index: 6, kind: input, shape index: {}]
  %s7 = inlined_call_operand.vmem [shape: f32[128,128], index: 7, kind: output, shape index: {}]
  %s8 = sld [smem:[#allocation0]]
  $region38: #{ca_local_global_forward.2} parent=0
    _
  %s10 = ssub.s32 1, %s8
  %s11 = scalar_select 0, %s10, %s8
  // Predicated region
  $region2: #{ca_local_global_forward.2} parent=0 // pred_check
    _
  $region3: #{ca_local_global_forward.2} parent=0 // pred_check_branch
    %13 = sbr.rel (0) target = $region5
  $region4: #{ca_local_global_forward.2} parent=0 // pred_region
    _
  $region5: #{ca_local_global_forward.2} parent=0 // pred_fallthru
    _
  // Predicated region
  $region6: #{ca_local_global_forward.2} parent=0 // pred_check
    _
  $region7: #{ca_local_global_forward.2} parent=0 // pred_check_branch
    %15 = sbr.rel (0) target = $region9
  $region8: #{ca_local_global_forward.2} parent=0 // pred_region
    _
  $region9: #{ca_local_global_forward.2} parent=0 // pred_fallthru
    _
  // Predicated region
  $region10: #{ca_local_global_forward.2} parent=0 // pred_check
    _
  $region11: #{ca_local_global_forward.2} parent=0 // pred_check_branch
    %17 = sbr.rel (0) target = $region13
  $region12: #{ca_local_global_forward.2} parent=0 // pred_region
    _
  $region13: #{ca_local_global_forward.2} parent=0 // pred_fallthru
    _
  // Predicated region
  $region14: #{ca_local_global_forward.2} parent=0 // pred_check
    _
  $region15: #{ca_local_global_forward.2} parent=0 // pred_check_branch
    %19 = sbr.rel (0) target = $region17
  $region16: #{ca_local_global_forward.2} parent=0 // pred_region
    _
  $region17: #{ca_local_global_forward.2} parent=0 // pred_fallthru
    _
  // Predicated region
  $region18: #{ca_local_global_forward.2} parent=0 // pred_check
    _
  $region19: #{ca_local_global_forward.2} parent=0 // pred_check_branch
    %21 = sbr.rel (0) target = $region21
  $region20: #{ca_local_global_forward.2} parent=0 // pred_region
    _
  $region21: #{ca_local_global_forward.2} parent=0 // pred_fallthru
    _
  // Predicated region
  $region22: #{ca_local_global_forward.2} parent=0 // pred_check
    _
  $region23: #{ca_local_global_forward.2} parent=0 // pred_check_branch
    %23 = sbr.rel (0) target = $region25
  $region24: #{ca_local_global_forward.2} parent=0 // pred_region
    _
  $region25: #{ca_local_global_forward.2} parent=0 // pred_fallthru
    _
  // Predicated region
  $region26: #{ca_local_global_forward.2} parent=0 // pred_check
    _
  $region27: #{ca_local_global_forward.2} parent=0 // pred_check_branch
    %25 = sbr.rel (0) target = $region29
  $region28: #{ca_local_global_forward.2} parent=0 // pred_region
    _
  $region29: #{ca_local_global_forward.2} parent=0 // pred_fallthru
    _
  %v27 = vld [vmem:[%s0] sm:$0xff]
  %v28 = vld [vmem:[%s0 + $0x8] sm:$0xff]
  %v29 = vld [vmem:[%s0 + $0x10] sm:$0xff]
  %v30 = vld [vmem:[%s0 + $0x18] sm:$0xff]
  %v31 = vld [vmem:[%s0 + $0x20] sm:$0xff]
  %v32 = vld [vmem:[%s0 + $0x28] sm:$0xff]
  %v33 = vld [vmem:[%s0 + $0x30] sm:$0xff]
  %v34 = vld [vmem:[%s0 + $0x38] sm:$0xff]
  %v35 = vld [vmem:[%s0 + $0x40] sm:$0xff]
  %v36 = vld [vmem:[%s0 + $0x48] sm:$0xff]
  %v37 = vld [vmem:[%s0 + $0x50] sm:$0xff]
  %v38 = vld [vmem:[%s0 + $0x58] sm:$0xff]
  %v39 = vld [vmem:[%s0 + $0x60] sm:$0xff]
  %v40 = vld [vmem:[%s0 + $0x68] sm:$0xff]
  %v41 = vld [vmem:[%s0 + $0x70] sm:$0xff]
  %v42 = vld [vmem:[%s0 + $0x78] sm:$0xff]
  %vm58 = vcmask 1040384
  %v59 = vrot.slane %v27, 7
  %v60 = vrot.slane %v28, 7
  %v61 = vsel %vm58, %v59, %v60
  %v62 = vrot.slane %v29, 7
  %v63 = vsel %vm58, %v60, %v62
  %v64 = vrot.slane %v30, 7
  %v65 = vsel %vm58, %v62, %v64
  %v66 = vrot.slane %v31, 7
  %v67 = vsel %vm58, %v64, %v66
  %v68 = vrot.slane %v32, 7
  %v69 = vsel %vm58, %v66, %v68
  %v70 = vrot.slane %v33, 7
  %v71 = vsel %vm58, %v68, %v70
  %v72 = vrot.slane %v34, 7
  %v73 = vsel %vm58, %v70, %v72
  %v74 = vrot.slane %v35, 7
  %v75 = vsel %vm58, %v72, %v74
  %v76 = vrot.slane %v36, 7
  %v77 = vsel %vm58, %v74, %v76
  %v78 = vrot.slane %v37, 7
  %v79 = vsel %vm58, %v76, %v78
  %v80 = vrot.slane %v38, 7
  %v81 = vsel %vm58, %v78, %v80
  %v82 = vrot.slane %v39, 7
  %v83 = vsel %vm58, %v80, %v82
  %v84 = vrot.slane %v40, 7
  %v85 = vsel %vm58, %v82, %v84
  %v86 = vrot.slane %v41, 7
  %v87 = vsel %vm58, %v84, %v86
  %v103 = vsel %vm58, 0.0, %v59
  %v104 = vld [vmem:[%s1] sm:$0xff]
  %v105 = vld [vmem:[%s1 + $0x8] sm:$0xff]
  %v106 = vld [vmem:[%s1 + $0x10] sm:$0xff]
  %v107 = vld [vmem:[%s1 + $0x18] sm:$0xff]
  %v108 = vld [vmem:[%s1 + $0x20] sm:$0xff]
  %v109 = vld [vmem:[%s1 + $0x28] sm:$0xff]
  %v110 = vld [vmem:[%s1 + $0x30] sm:$0xff]
  %v111 = vld [vmem:[%s1 + $0x38] sm:$0xff]
  %v112 = vld [vmem:[%s1 + $0x40] sm:$0xff]
  %v113 = vld [vmem:[%s1 + $0x48] sm:$0xff]
  %v114 = vld [vmem:[%s1 + $0x50] sm:$0xff]
  %v115 = vld [vmem:[%s1 + $0x58] sm:$0xff]
  %v116 = vld [vmem:[%s1 + $0x60] sm:$0xff]
  %v117 = vld [vmem:[%s1 + $0x68] sm:$0xff]
  %v118 = vld [vmem:[%s1 + $0x70] sm:$0xff]
  %v119 = vld [vmem:[%s1 + $0x78] sm:$0xff]
  %121 = vset.pattern.permute.xlu0 0
  %122 = vperm.xlu0 %121, %v104
  %v123 = vpop.permute.xlu0 %122
  %126 = vset.pattern.permute.xlu0 0
  %127 = vperm.xlu0 %126, %v105
  %v128 = vpop.permute.xlu0 %127
  %131 = vset.pattern.permute.xlu0 0
  %132 = vperm.xlu0 %131, %v106
  %v133 = vpop.permute.xlu0 %132
  %136 = vset.pattern.permute.xlu0 0
  %137 = vperm.xlu0 %136, %v107
  %v138 = vpop.permute.xlu0 %137
  %141 = vset.pattern.permute.xlu0 0
  %142 = vperm.xlu0 %141, %v108
  %v143 = vpop.permute.xlu0 %142
  %146 = vset.pattern.permute.xlu0 0
  %147 = vperm.xlu0 %146, %v109
  %v148 = vpop.permute.xlu0 %147
  %151 = vset.pattern.permute.xlu0 0
  %152 = vperm.xlu0 %151, %v110
  %v153 = vpop.permute.xlu0 %152
  %156 = vset.pattern.permute.xlu0 0
  %157 = vperm.xlu0 %156, %v111
  %v158 = vpop.permute.xlu0 %157
  %161 = vset.pattern.permute.xlu0 0
  %162 = vperm.xlu0 %161, %v112
  %v163 = vpop.permute.xlu0 %162
  %166 = vset.pattern.permute.xlu0 0
  %167 = vperm.xlu0 %166, %v113
  %v168 = vpop.permute.xlu0 %167
  %171 = vset.pattern.permute.xlu0 0
  %172 = vperm.xlu0 %171, %v114
  %v173 = vpop.permute.xlu0 %172
  %176 = vset.pattern.permute.xlu0 0
  %177 = vperm.xlu0 %176, %v115
  %v178 = vpop.permute.xlu0 %177
  %181 = vset.pattern.permute.xlu0 0
  %182 = vperm.xlu0 %181, %v116
  %v183 = vpop.permute.xlu0 %182
  %186 = vset.pattern.permute.xlu0 0
  %187 = vperm.xlu0 %186, %v117
  %v188 = vpop.permute.xlu0 %187
  %191 = vset.pattern.permute.xlu0 0
  %192 = vperm.xlu0 %191, %v118
  %v193 = vpop.permute.xlu0 %192
  %196 = vset.pattern.permute.xlu0 0
  %197 = vperm.xlu0 %196, %v119
  %v198 = vpop.permute.xlu0 %197
  %v200 = vmul.f32 %v123, 0.0
  %v201 = vmul.f32 %v103, %v128
  %v202 = vmul.f32 %v61, %v133
  %v203 = vmul.f32 %v63, %v138
  %v204 = vmul.f32 %v65, %v143
  %v205 = vmul.f32 %v67, %v148
  %v206 = vmul.f32 %v69, %v153
  %v207 = vmul.f32 %v71, %v158
  %v208 = vmul.f32 %v73, %v163
  %v209 = vmul.f32 %v75, %v168
  %v210 = vmul.f32 %v77, %v173
  %v211 = vmul.f32 %v79, %v178
  %v212 = vmul.f32 %v81, %v183
  %v213 = vmul.f32 %v83, %v188
  %v214 = vmul.f32 %v85, %v193
  %v215 = vmul.f32 %v87, %v198
  %v216 = vpack.c.bf16 %v201, %v200
  %v217 = vpack.c.bf16 %v203, %v202
  %v218 = vpack.c.bf16 %v205, %v204
  %v219 = vpack.c.bf16 %v207, %v206
  %v220 = vpack.c.bf16 %v209, %v208
  %v221 = vpack.c.bf16 %v211, %v210
  %v222 = vpack.c.bf16 %v213, %v212
  %v223 = vpack.c.bf16 %v215, %v214
  %v224 = vld [vmem:[%s2] sm:$0xf]
  %v225 = vld [vmem:[%s2 + $0x4] sm:$0xf]
  %v226 = vld [vmem:[%s2 + $0x8] sm:$0xf]
  %v227 = vld [vmem:[%s2 + $0xc] sm:$0xf]
  %s228 = scalar_lea.vmem %s1, 128
  %v229 = vld [vmem:[%s228] sm:$0xff]
  %v230 = vld [vmem:[%s228 + $0x8] sm:$0xff]
  %v231 = vld [vmem:[%s228 + $0x10] sm:$0xff]
  %v232 = vld [vmem:[%s228 + $0x18] sm:$0xff]
  %v233 = vld [vmem:[%s228 + $0x20] sm:$0xff]
  %v234 = vld [vmem:[%s228 + $0x28] sm:$0xff]
  %v235 = vld [vmem:[%s228 + $0x30] sm:$0xff]
  %v236 = vld [vmem:[%s228 + $0x38] sm:$0xff]
  %v237 = vld [vmem:[%s228 + $0x40] sm:$0xff]
  %v238 = vld [vmem:[%s228 + $0x48] sm:$0xff]
  %v239 = vld [vmem:[%s228 + $0x50] sm:$0xff]
  %v240 = vld [vmem:[%s228 + $0x58] sm:$0xff]
  %v241 = vld [vmem:[%s228 + $0x60] sm:$0xff]
  %v242 = vld [vmem:[%s228 + $0x68] sm:$0xff]
  %v243 = vld [vmem:[%s228 + $0x70] sm:$0xff]
  %v244 = vld [vmem:[%s228 + $0x78] sm:$0xff]
  %246 = vset.pattern.permute.xlu0 0
  %247 = vperm.xlu0 %246, %v229
  %v248 = vpop.permute.xlu0 %247
  %251 = vset.pattern.permute.xlu0 0
  %252 = vperm.xlu0 %251, %v230
  %v253 = vpop.permute.xlu0 %252
  %256 = vset.pattern.permute.xlu0 0
  %257 = vperm.xlu0 %256, %v231
  %v258 = vpop.permute.xlu0 %257
  %261 = vset.pattern.permute.xlu0 0
  %262 = vperm.xlu0 %261, %v232
  %v263 = vpop.permute.xlu0 %262
  %266 = vset.pattern.permute.xlu0 0
  %267 = vperm.xlu0 %266, %v233
  %v268 = vpop.permute.xlu0 %267
  %271 = vset.pattern.permute.xlu0 0
  %272 = vperm.xlu0 %271, %v234
  %v273 = vpop.permute.xlu0 %272
  %276 = vset.pattern.permute.xlu0 0
  %277 = vperm.xlu0 %276, %v235
  %v278 = vpop.permute.xlu0 %277
  %281 = vset.pattern.permute.xlu0 0
  %282 = vperm.xlu0 %281, %v236
  %v283 = vpop.permute.xlu0 %282
  %286 = vset.pattern.permute.xlu0 0
  %287 = vperm.xlu0 %286, %v237
  %v288 = vpop.permute.xlu0 %287
  %291 = vset.pattern.permute.xlu0 0
  %292 = vperm.xlu0 %291, %v238
  %v293 = vpop.permute.xlu0 %292
  %296 = vset.pattern.permute.xlu0 0
  %297 = vperm.xlu0 %296, %v239
  %v298 = vpop.permute.xlu0 %297
  %301 = vset.pattern.permute.xlu0 0
  %302 = vperm.xlu0 %301, %v240
  %v303 = vpop.permute.xlu0 %302
  %306 = vset.pattern.permute.xlu0 0
  %307 = vperm.xlu0 %306, %v241
  %v308 = vpop.permute.xlu0 %307
  %311 = vset.pattern.permute.xlu0 0
  %312 = vperm.xlu0 %311, %v242
  %v313 = vpop.permute.xlu0 %312
  %316 = vset.pattern.permute.xlu0 0
  %317 = vperm.xlu0 %316, %v243
  %v318 = vpop.permute.xlu0 %317
  %321 = vset.pattern.permute.xlu0 0
  %322 = vperm.xlu0 %321, %v244
  %v323 = vpop.permute.xlu0 %322
  %v325 = vmul.f32 %v248, 0.0
  %v326 = vmul.f32 %v27, %v253
  %v327 = vmul.f32 %v28, %v258
  %v328 = vmul.f32 %v29, %v263
  %v329 = vmul.f32 %v30, %v268
  %v330 = vmul.f32 %v31, %v273
  %v331 = vmul.f32 %v32, %v278
  %v332 = vmul.f32 %v33, %v283
  %v333 = vmul.f32 %v34, %v288
  %v334 = vmul.f32 %v35, %v293
  %v335 = vmul.f32 %v36, %v298
  %v336 = vmul.f32 %v37, %v303
  %v337 = vmul.f32 %v38, %v308
  %v338 = vmul.f32 %v39, %v313
  %v339 = vmul.f32 %v40, %v318
  %v340 = vmul.f32 %v41, %v323
  %v341 = vpack.c.bf16 %v326, %v325
  %v342 = vpack.c.bf16 %v328, %v327
  %v343 = vpack.c.bf16 %v330, %v329
  %v344 = vpack.c.bf16 %v332, %v331
  %v345 = vpack.c.bf16 %v334, %v333
  %v346 = vpack.c.bf16 %v336, %v335
  %v347 = vpack.c.bf16 %v338, %v337
  %v348 = vpack.c.bf16 %v340, %v339
  %s349 = scalar_lea.vmem %s2, 16
  %v350 = vld [vmem:[%s349] sm:$0xf]
  %v351 = vld [vmem:[%s349 + $0x4] sm:$0xf]
  %v352 = vld [vmem:[%s349 + $0x8] sm:$0xf]
  %v353 = vld [vmem:[%s349 + $0xc] sm:$0xf]
  %v358 = vunpack.c.l.b16 %v350
  %v359 = vunpack.c.l.b16 %v351
  %v360 = vunpack.c.l.b16 %v352
  %v361 = vunpack.c.l.b16 %v353
  %v362 = vpack.c.b16 %v359, %v358
  %v363 = vpack.c.b16 %v361, %v360
  %vm366 = vcmask 261120
  %v368 = vsel %vm366, %v341, 0
  %v371 = vsel %vm366, %v342, 0
  %v374 = vsel %vm366, %v343, 0
  %v377 = vsel %vm366, %v344, 0
  %v380 = vsel %vm366, %v345, 0
  %v383 = vsel %vm366, %v346, 0
  %v386 = vsel %vm366, %v347, 0
  %v389 = vsel %vm366, %v348, 0
  %391 = vmatprep.subr.bf16.mxu0 0
  %392 = vmatpush1.bf16.msra.mxu0 0
  %393 = vmatprep.subr.bf16.mxu0 0
  %394 = vmatpush1.bf16.msra.mxu0 0
  %395 = vmatprep.subr.bf16.mxu0 0
  %396 = vmatpush1.bf16.msra.mxu0 0
  %397 = vmatprep.subr.bf16.mxu0 0
  %398 = vmatpush1.bf16.msra.mxu0 0
  %399 = vmatprep.subr.bf16.mxu0 0
  %400 = vmatpush1.bf16.msra.mxu0 0
  %401 = vmatprep.subr.bf16.mxu0 0
  %402 = vmatpush1.bf16.msra.mxu0 0
  %403 = vmatprep.subr.bf16.mxu0 0
  %404 = vmatpush1.bf16.msra.mxu0 %v363
  %405 = vmatprep.subr.bf16.mxu0 0
  %406 = vmatpush1.bf16.msra.mxu0 %v362
  %407 = vmatprep.subr.bf16.mxu0 0
  %408 = vmatpush2.bf16.msra.mxu0 0
  %409 = vmatprep.subr.bf16.mxu0 0
  %410 = vmatpush2.bf16.msra.mxu0 0
  %411 = vmatprep.subr.bf16.mxu0 0
  %412 = vmatpush2.bf16.msra.mxu0 0
  %413 = vmatprep.subr.bf16.mxu0 0
  %414 = vmatpush2.bf16.msra.mxu0 0
  %415 = vmatprep.subr.bf16.mxu0 0
  %416 = vmatpush2.bf16.msra.mxu0 0
  %417 = vmatprep.subr.bf16.mxu0 0
  %418 = vmatpush2.bf16.msra.mxu0 0
  %419 = vmatprep.subr.bf16.mxu0 0
  %420 = vmatpush2.bf16.msra.mxu0 0
  %421 = vmatprep.subr.bf16.mxu0 0
  %422 = vmatpush2.bf16.msra.mxu0 0
  %423 = vmatprep.mubr.bf16.mxu0 0
  %424 = vmatmul.mubr.bf16.gmra.mxu0 %v368
  %v425 = vpop.f32.mrf.mxu0
  %v426 = vadd.f32 0.0, %v425
  %v427 = vpop.f32.mrf.mxu0
  %v428 = vpop.f32.mrf.mxu0
  %v429 = vadd.f32 0.0, %v428
  %v430 = vpop.f32.mrf.mxu0
  %431 = vmatprep.mubr.bf16.mxu0 0
  %432 = vmatmul.mubr.bf16.gmra.mxu0 %v371
  %v433 = vpop.f32.mrf.mxu0
  %v434 = vadd.f32 0.0, %v433
  %v435 = vpop.f32.mrf.mxu0
  %v436 = vpop.f32.mrf.mxu0
  %v437 = vadd.f32 0.0, %v436
  %v438 = vpop.f32.mrf.mxu0
  %439 = vmatprep.mubr.bf16.mxu0 0
  %440 = vmatmul.mubr.bf16.gmra.mxu0 %v374
  %v441 = vpop.f32.mrf.mxu0
  %v442 = vadd.f32 0.0, %v441
  %v443 = vpop.f32.mrf.mxu0
  %v444 = vpop.f32.mrf.mxu0
  %v445 = vadd.f32 0.0, %v444
  %v446 = vpop.f32.mrf.mxu0
  %447 = vmatprep.mubr.bf16.mxu0 0
  %448 = vmatmul.mubr.bf16.gmra.mxu0 %v377
  %v449 = vpop.f32.mrf.mxu0
  %v450 = vadd.f32 0.0, %v449
  %v451 = vpop.f32.mrf.mxu0
  %v452 = vpop.f32.mrf.mxu0
  %v453 = vadd.f32 0.0, %v452
  %v454 = vpop.f32.mrf.mxu0
  %455 = vmatprep.mubr.bf16.mxu0 0
  %456 = vmatmul.mubr.bf16.gmra.mxu0 %v380
  %v457 = vpop.f32.mrf.mxu0
  %v458 = vadd.f32 0.0, %v457
  %v459 = vpop.f32.mrf.mxu0
  %v460 = vpop.f32.mrf.mxu0
  %v461 = vadd.f32 0.0, %v460
  %v462 = vpop.f32.mrf.mxu0
  %463 = vmatprep.mubr.bf16.mxu0 0
  %464 = vmatmul.mubr.bf16.gmra.mxu0 %v383
  %v465 = vpop.f32.mrf.mxu0
  %v466 = vadd.f32 0.0, %v465
  %v467 = vpop.f32.mrf.mxu0
  %v468 = vpop.f32.mrf.mxu0
  %v469 = vadd.f32 0.0, %v468
  %v470 = vpop.f32.mrf.mxu0
  %471 = vmatprep.mubr.bf16.mxu0 0
  %472 = vmatmul.mubr.bf16.gmra.mxu0 %v386
  %v473 = vpop.f32.mrf.mxu0
  %v474 = vadd.f32 0.0, %v473
  %v475 = vpop.f32.mrf.mxu0
  %v476 = vpop.f32.mrf.mxu0
  %v477 = vadd.f32 0.0, %v476
  %v478 = vpop.f32.mrf.mxu0
  %479 = vmatprep.mubr.bf16.mxu0 0
  %480 = vmatmul.mubr.bf16.gmra.mxu0 %v389
  %v481 = vpop.f32.mrf.mxu0
  %v482 = vadd.f32 0.0, %v481
  %v483 = vpop.f32.mrf.mxu0
  %v484 = vpop.f32.mrf.mxu0
  %v485 = vadd.f32 0.0, %v484
  %v486 = vpop.f32.mrf.mxu0
  %487 = vdwg.mxu0
  %v492 = vunpack.c.l.b16 %v224
  %v493 = vunpack.c.l.b16 %v225
  %v494 = vunpack.c.l.b16 %v226
  %v495 = vunpack.c.l.b16 %v227
  %v496 = vpack.c.b16 %v493, %v492
  %v497 = vpack.c.b16 %v495, %v494
  %v501 = vsel %vm366, %v216, 0
  %v504 = vsel %vm366, %v217, 0
  %v507 = vsel %vm366, %v218, 0
  %v510 = vsel %vm366, %v219, 0
  %v513 = vsel %vm366, %v220, 0
  %v516 = vsel %vm366, %v221, 0
  %v519 = vsel %vm366, %v222, 0
  %v522 = vsel %vm366, %v223, 0
  %524 = vmatprep.subr.bf16.mxu0 0
  %525 = vmatpush1.bf16.msra.mxu0 0
  %526 = vmatprep.subr.bf16.mxu0 0
  %527 = vmatpush1.bf16.msra.mxu0 0
  %528 = vmatprep.subr.bf16.mxu0 0
  %529 = vmatpush1.bf16.msra.mxu0 0
  %530 = vmatprep.subr.bf16.mxu0 0
  %531 = vmatpush1.bf16.msra.mxu0 0
  %532 = vmatprep.subr.bf16.mxu0 0
  %533 = vmatpush1.bf16.msra.mxu0 0
  %534 = vmatprep.subr.bf16.mxu0 0
  %535 = vmatpush1.bf16.msra.mxu0 0
  %536 = vmatprep.subr.bf16.mxu0 0
  %537 = vmatpush1.bf16.msra.mxu0 %v497
  %538 = vmatprep.subr.bf16.mxu0 0
  %539 = vmatpush1.bf16.msra.mxu0 %v496
  %540 = vmatprep.subr.bf16.mxu0 0
  %541 = vmatpush2.bf16.msra.mxu0 0
  %542 = vmatprep.subr.bf16.mxu0 0
  %543 = vmatpush2.bf16.msra.mxu0 0
  %544 = vmatprep.subr.bf16.mxu0 0
  %545 = vmatpush2.bf16.msra.mxu0 0
  %546 = vmatprep.subr.bf16.mxu0 0
  %547 = vmatpush2.bf16.msra.mxu0 0
  %548 = vmatprep.subr.bf16.mxu0 0
  %549 = vmatpush2.bf16.msra.mxu0 0
  %550 = vmatprep.subr.bf16.mxu0 0
  %551 = vmatpush2.bf16.msra.mxu0 0
  %552 = vmatprep.subr.bf16.mxu0 0
  %553 = vmatpush2.bf16.msra.mxu0 0
  %554 = vmatprep.subr.bf16.mxu0 0
  %555 = vmatpush2.bf16.msra.mxu0 0
  %556 = vmatprep.mubr.bf16.mxu0 0
  %557 = vmatmul.mubr.bf16.gmra.mxu0 %v501
  %v558 = vpop.f32.mrf.mxu0
  %v559 = vadd.f32 %v426, %v558
  %v560 = vpop.f32.mrf.mxu0
  %v561 = vpop.f32.mrf.mxu0
  %v562 = vadd.f32 %v429, %v561
  %v563 = vpop.f32.mrf.mxu0
  %564 = vmatprep.mubr.bf16.mxu0 0
  %565 = vmatmul.mubr.bf16.gmra.mxu0 %v504
  %v566 = vpop.f32.mrf.mxu0
  %v567 = vadd.f32 %v434, %v566
  %v568 = vpop.f32.mrf.mxu0
  %v569 = vpop.f32.mrf.mxu0
  %v570 = vadd.f32 %v437, %v569
  %v571 = vpop.f32.mrf.mxu0
  %572 = vmatprep.mubr.bf16.mxu0 0
  %573 = vmatmul.mubr.bf16.gmra.mxu0 %v507
  %v574 = vpop.f32.mrf.mxu0
  %v575 = vadd.f32 %v442, %v574
  %v576 = vpop.f32.mrf.mxu0
  %v577 = vpop.f32.mrf.mxu0
  %v578 = vadd.f32 %v445, %v577
  %v579 = vpop.f32.mrf.mxu0
  %580 = vmatprep.mubr.bf16.mxu0 0
  %581 = vmatmul.mubr.bf16.gmra.mxu0 %v510
  %v582 = vpop.f32.mrf.mxu0
  %v583 = vadd.f32 %v450, %v582
  %v584 = vpop.f32.mrf.mxu0
  %v585 = vpop.f32.mrf.mxu0
  %v586 = vadd.f32 %v453, %v585
  %v587 = vpop.f32.mrf.mxu0
  %588 = vmatprep.mubr.bf16.mxu0 0
  %589 = vmatmul.mubr.bf16.gmra.mxu0 %v513
  %v590 = vpop.f32.mrf.mxu0
  %v591 = vadd.f32 %v458, %v590
  %v592 = vpop.f32.mrf.mxu0
  %v593 = vpop.f32.mrf.mxu0
  %v594 = vadd.f32 %v461, %v593
  %v595 = vpop.f32.mrf.mxu0
  %596 = vmatprep.mubr.bf16.mxu0 0
  %597 = vmatmul.mubr.bf16.gmra.mxu0 %v516
  %v598 = vpop.f32.mrf.mxu0
  %v599 = vadd.f32 %v466, %v598
  %v600 = vpop.f32.mrf.mxu0
  %v601 = vpop.f32.mrf.mxu0
  %v602 = vadd.f32 %v469, %v601
  %v603 = vpop.f32.mrf.mxu0
  %604 = vmatprep.mubr.bf16.mxu0 0
  %605 = vmatmul.mubr.bf16.gmra.mxu0 %v519
  %v606 = vpop.f32.mrf.mxu0
  %v607 = vadd.f32 %v474, %v606
  %v608 = vpop.f32.mrf.mxu0
  %v609 = vpop.f32.mrf.mxu0
  %v610 = vadd.f32 %v477, %v609
  %v611 = vpop.f32.mrf.mxu0
  %612 = vmatprep.mubr.bf16.mxu0 0
  %613 = vmatmul.mubr.bf16.gmra.mxu0 %v522
  %v614 = vpop.f32.mrf.mxu0
  %v615 = vadd.f32 %v482, %v614
  %v616 = vpop.f32.mrf.mxu0
  %v617 = vpop.f32.mrf.mxu0
  %v618 = vadd.f32 %v485, %v617
  %v619 = vpop.f32.mrf.mxu0
  %620 = vdwg.mxu0
  %vm622 = vcmask 1046528
  %v623 = vrot.slane %v27, 1
  %v624 = vrot.slane %v28, 1
  %v625 = vsel %vm622, %v623, %v624
  %v626 = vrot.slane %v29, 1
  %v627 = vsel %vm622, %v624, %v626
  %v628 = vrot.slane %v30, 1
  %v629 = vsel %vm622, %v626, %v628
  %v630 = vrot.slane %v31, 1
  %v631 = vsel %vm622, %v628, %v630
  %v632 = vrot.slane %v32, 1
  %v633 = vsel %vm622, %v630, %v632
  %v634 = vrot.slane %v33, 1
  %v635 = vsel %vm622, %v632, %v634
  %v636 = vrot.slane %v34, 1
  %v637 = vsel %vm622, %v634, %v636
  %v638 = vrot.slane %v35, 1
  %v639 = vsel %vm622, %v636, %v638
  %v640 = vrot.slane %v36, 1
  %v641 = vsel %vm622, %v638, %v640
  %v642 = vrot.slane %v37, 1
  %v643 = vsel %vm622, %v640, %v642
  %v644 = vrot.slane %v38, 1
  %v645 = vsel %vm622, %v642, %v644
  %v646 = vrot.slane %v39, 1
  %v647 = vsel %vm622, %v644, %v646
  %v648 = vrot.slane %v40, 1
  %v649 = vsel %vm622, %v646, %v648
  %v650 = vrot.slane %v41, 1
  %v651 = vsel %vm622, %v648, %v650
  %v652 = vrot.slane %v42, 1
  %v653 = vsel %vm622, %v650, %v652
  %v670 = vsel %vm622, 0.0, %v623
  %s671 = scalar_lea.vmem %s1, 256
  %v672 = vld [vmem:[%s671] sm:$0xff]
  %v673 = vld [vmem:[%s671 + $0x8] sm:$0xff]
  %v674 = vld [vmem:[%s671 + $0x10] sm:$0xff]
  %v675 = vld [vmem:[%s671 + $0x18] sm:$0xff]
  %v676 = vld [vmem:[%s671 + $0x20] sm:$0xff]
  %v677 = vld [vmem:[%s671 + $0x28] sm:$0xff]
  %v678 = vld [vmem:[%s671 + $0x30] sm:$0xff]
  %v679 = vld [vmem:[%s671 + $0x38] sm:$0xff]
  %v680 = vld [vmem:[%s671 + $0x40] sm:$0xff]
  %v681 = vld [vmem:[%s671 + $0x48] sm:$0xff]
  %v682 = vld [vmem:[%s671 + $0x50] sm:$0xff]
  %v683 = vld [vmem:[%s671 + $0x58] sm:$0xff]
  %v684 = vld [vmem:[%s671 + $0x60] sm:$0xff]
  %v685 = vld [vmem:[%s671 + $0x68] sm:$0xff]
  %v686 = vld [vmem:[%s671 + $0x70] sm:$0xff]
  %v687 = vld [vmem:[%s671 + $0x78] sm:$0xff]
  %689 = vset.pattern.permute.xlu0 0
  %690 = vperm.xlu0 %689, %v672
  %v691 = vpop.permute.xlu0 %690
  %694 = vset.pattern.permute.xlu0 0
  %695 = vperm.xlu0 %694, %v673
  %v696 = vpop.permute.xlu0 %695
  %699 = vset.pattern.permute.xlu0 0
  %700 = vperm.xlu0 %699, %v674
  %v701 = vpop.permute.xlu0 %700
  %704 = vset.pattern.permute.xlu0 0
  %705 = vperm.xlu0 %704, %v675
  %v706 = vpop.permute.xlu0 %705
  %709 = vset.pattern.permute.xlu0 0
  %710 = vperm.xlu0 %709, %v676
  %v711 = vpop.permute.xlu0 %710
  %714 = vset.pattern.permute.xlu0 0
  %715 = vperm.xlu0 %714, %v677
  %v716 = vpop.permute.xlu0 %715
  %719 = vset.pattern.permute.xlu0 0
  %720 = vperm.xlu0 %719, %v678
  %v721 = vpop.permute.xlu0 %720
  %724 = vset.pattern.permute.xlu0 0
  %725 = vperm.xlu0 %724, %v679
  %v726 = vpop.permute.xlu0 %725
  %729 = vset.pattern.permute.xlu0 0
  %730 = vperm.xlu0 %729, %v680
  %v731 = vpop.permute.xlu0 %730
  %734 = vset.pattern.permute.xlu0 0
  %735 = vperm.xlu0 %734, %v681
  %v736 = vpop.permute.xlu0 %735
  %739 = vset.pattern.permute.xlu0 0
  %740 = vperm.xlu0 %739, %v682
  %v741 = vpop.permute.xlu0 %740
  %744 = vset.pattern.permute.xlu0 0
  %745 = vperm.xlu0 %744, %v683
  %v746 = vpop.permute.xlu0 %745
  %749 = vset.pattern.permute.xlu0 0
  %750 = vperm.xlu0 %749, %v684
  %v751 = vpop.permute.xlu0 %750
  %754 = vset.pattern.permute.xlu0 0
  %755 = vperm.xlu0 %754, %v685
  %v756 = vpop.permute.xlu0 %755
  %759 = vset.pattern.permute.xlu0 0
  %760 = vperm.xlu0 %759, %v686
  %v761 = vpop.permute.xlu0 %760
  %764 = vset.pattern.permute.xlu0 0
  %765 = vperm.xlu0 %764, %v687
  %v766 = vpop.permute.xlu0 %765
  %v768 = vmul.f32 %v670, %v691
  %v769 = vmul.f32 %v625, %v696
  %v770 = vmul.f32 %v627, %v701
  %v771 = vmul.f32 %v629, %v706
  %v772 = vmul.f32 %v631, %v711
  %v773 = vmul.f32 %v633, %v716
  %v774 = vmul.f32 %v635, %v721
  %v775 = vmul.f32 %v637, %v726
  %v776 = vmul.f32 %v639, %v731
  %v777 = vmul.f32 %v641, %v736
  %v778 = vmul.f32 %v643, %v741
  %v779 = vmul.f32 %v645, %v746
  %v780 = vmul.f32 %v647, %v751
  %v781 = vmul.f32 %v649, %v756
  %v782 = vmul.f32 %v651, %v761
  %v783 = vmul.f32 %v653, %v766
  %v784 = vpack.c.bf16 %v769, %v768
  %v785 = vpack.c.bf16 %v771, %v770
  %v786 = vpack.c.bf16 %v773, %v772
  %v787 = vpack.c.bf16 %v775, %v774
  %v788 = vpack.c.bf16 %v777, %v776
  %v789 = vpack.c.bf16 %v779, %v778
  %v790 = vpack.c.bf16 %v781, %v780
  %v791 = vpack.c.bf16 %v783, %v782
  %s792 = scalar_lea.vmem %s2, 32
  %v793 = vld [vmem:[%s792] sm:$0xf]
  %v794 = vld [vmem:[%s792 + $0x4] sm:$0xf]
  %v795 = vld [vmem:[%s792 + $0x8] sm:$0xf]
  %v796 = vld [vmem:[%s792 + $0xc] sm:$0xf]
  %v801 = vunpack.c.l.b16 %v793
  %v802 = vunpack.c.l.b16 %v794
  %v803 = vunpack.c.l.b16 %v795
  %v804 = vunpack.c.l.b16 %v796
  %v805 = vpack.c.b16 %v802, %v801
  %v806 = vpack.c.b16 %v804, %v803
  %v810 = vsel %vm366, %v784, 0
  %v813 = vsel %vm366, %v785, 0
  %v816 = vsel %vm366, %v786, 0
  %v819 = vsel %vm366, %v787, 0
  %v822 = vsel %vm366, %v788, 0
  %v825 = vsel %vm366, %v789, 0
  %v828 = vsel %vm366, %v790, 0
  %v831 = vsel %vm366, %v791, 0
  %833 = vmatprep.subr.bf16.mxu0 0
  %834 = vmatpush1.bf16.msra.mxu0 0
  %835 = vmatprep.subr.bf16.mxu0 0
  %836 = vmatpush1.bf16.msra.mxu0 0
  %837 = vmatprep.subr.bf16.mxu0 0
  %838 = vmatpush1.bf16.msra.mxu0 0
  %839 = vmatprep.subr.bf16.mxu0 0
  %840 = vmatpush1.bf16.msra.mxu0 0
  %841 = vmatprep.subr.bf16.mxu0 0
  %842 = vmatpush1.bf16.msra.mxu0 0
  %843 = vmatprep.subr.bf16.mxu0 0
  %844 = vmatpush1.bf16.msra.mxu0 0
  %845 = vmatprep.subr.bf16.mxu0 0
  %846 = vmatpush1.bf16.msra.mxu0 %v806
  %847 = vmatprep.subr.bf16.mxu0 0
  %848 = vmatpush1.bf16.msra.mxu0 %v805
  %849 = vmatprep.subr.bf16.mxu0 0
  %850 = vmatpush2.bf16.msra.mxu0 0
  %851 = vmatprep.subr.bf16.mxu0 0
  %852 = vmatpush2.bf16.msra.mxu0 0
  %853 = vmatprep.subr.bf16.mxu0 0
  %854 = vmatpush2.bf16.msra.mxu0 0
  %855 = vmatprep.subr.bf16.mxu0 0
  %856 = vmatpush2.bf16.msra.mxu0 0
  %857 = vmatprep.subr.bf16.mxu0 0
  %858 = vmatpush2.bf16.msra.mxu0 0
  %859 = vmatprep.subr.bf16.mxu0 0
  %860 = vmatpush2.bf16.msra.mxu0 0
  %861 = vmatprep.subr.bf16.mxu0 0
  %862 = vmatpush2.bf16.msra.mxu0 0
  %863 = vmatprep.subr.bf16.mxu0 0
  %864 = vmatpush2.bf16.msra.mxu0 0
  %865 = vmatprep.mubr.bf16.mxu0 0
  %866 = vmatmul.mubr.bf16.gmra.mxu0 %v810
  %v867 = vpop.f32.mrf.mxu0
  %v868 = vadd.f32 0.0, %v867
  %v869 = vpop.f32.mrf.mxu0
  %v870 = vpop.f32.mrf.mxu0
  %v871 = vadd.f32 0.0, %v870
  %v872 = vpop.f32.mrf.mxu0
  %873 = vmatprep.mubr.bf16.mxu0 0
  %874 = vmatmul.mubr.bf16.gmra.mxu0 %v813
  %v875 = vpop.f32.mrf.mxu0
  %v876 = vadd.f32 0.0, %v875
  %v877 = vpop.f32.mrf.mxu0
  %v878 = vpop.f32.mrf.mxu0
  %v879 = vadd.f32 0.0, %v878
  %v880 = vpop.f32.mrf.mxu0
  %881 = vmatprep.mubr.bf16.mxu0 0
  %882 = vmatmul.mubr.bf16.gmra.mxu0 %v816
  %v883 = vpop.f32.mrf.mxu0
  %v884 = vadd.f32 0.0, %v883
  %v885 = vpop.f32.mrf.mxu0
  %v886 = vpop.f32.mrf.mxu0
  %v887 = vadd.f32 0.0, %v886
  %v888 = vpop.f32.mrf.mxu0
  %889 = vmatprep.mubr.bf16.mxu0 0
  %890 = vmatmul.mubr.bf16.gmra.mxu0 %v819
  %v891 = vpop.f32.mrf.mxu0
  %v892 = vadd.f32 0.0, %v891
  %v893 = vpop.f32.mrf.mxu0
  %v894 = vpop.f32.mrf.mxu0
  %v895 = vadd.f32 0.0, %v894
  %v896 = vpop.f32.mrf.mxu0
  %897 = vmatprep.mubr.bf16.mxu0 0
  %898 = vmatmul.mubr.bf16.gmra.mxu0 %v822
  %v899 = vpop.f32.mrf.mxu0
  %v900 = vadd.f32 0.0, %v899
  %v901 = vpop.f32.mrf.mxu0
  %v902 = vpop.f32.mrf.mxu0
  %v903 = vadd.f32 0.0, %v902
  %v904 = vpop.f32.mrf.mxu0
  %905 = vmatprep.mubr.bf16.mxu0 0
  %906 = vmatmul.mubr.bf16.gmra.mxu0 %v825
  %v907 = vpop.f32.mrf.mxu0
  %v908 = vadd.f32 0.0, %v907
  %v909 = vpop.f32.mrf.mxu0
  %v910 = vpop.f32.mrf.mxu0
  %v911 = vadd.f32 0.0, %v910
  %v912 = vpop.f32.mrf.mxu0
  %913 = vmatprep.mubr.bf16.mxu0 0
  %914 = vmatmul.mubr.bf16.gmra.mxu0 %v828
  %v915 = vpop.f32.mrf.mxu0
  %v916 = vadd.f32 0.0, %v915
  %v917 = vpop.f32.mrf.mxu0
  %v918 = vpop.f32.mrf.mxu0
  %v919 = vadd.f32 0.0, %v918
  %v920 = vpop.f32.mrf.mxu0
  %921 = vmatprep.mubr.bf16.mxu0 0
  %922 = vmatmul.mubr.bf16.gmra.mxu0 %v831
  %v923 = vpop.f32.mrf.mxu0
  %v924 = vadd.f32 0.0, %v923
  %v925 = vpop.f32.mrf.mxu0
  %v926 = vpop.f32.mrf.mxu0
  %v927 = vadd.f32 0.0, %v926
  %v928 = vpop.f32.mrf.mxu0
  %929 = vdwg.mxu0
  %v930 = vadd.f32 %v559, %v868
  %v931 = vadd.f32 %v562, %v871
  %v932 = vadd.f32 %v567, %v876
  %v933 = vadd.f32 %v570, %v879
  %v934 = vadd.f32 %v575, %v884
  %v935 = vadd.f32 %v578, %v887
  %v936 = vadd.f32 %v583, %v892
  %v937 = vadd.f32 %v586, %v895
  %v938 = vadd.f32 %v591, %v900
  %v939 = vadd.f32 %v594, %v903
  %v940 = vadd.f32 %v599, %v908
  %v941 = vadd.f32 %v602, %v911
  %v942 = vadd.f32 %v607, %v916
  %v943 = vadd.f32 %v610, %v919
  %v944 = vadd.f32 %v615, %v924
  %v945 = vadd.f32 %v618, %v927
  %v946 = vrot.slane %v42, 7
  %v947 = vsel %vm58, %v86, %v946
  %s949 = scalar_lea.vmem %s1, 384
  %v950 = vld [vmem:[%s949] sm:$0xff]
  %v951 = vld [vmem:[%s949 + $0x8] sm:$0xff]
  %v952 = vld [vmem:[%s949 + $0x10] sm:$0xff]
  %v953 = vld [vmem:[%s949 + $0x18] sm:$0xff]
  %v954 = vld [vmem:[%s949 + $0x20] sm:$0xff]
  %v955 = vld [vmem:[%s949 + $0x28] sm:$0xff]
  %v956 = vld [vmem:[%s949 + $0x30] sm:$0xff]
  %v957 = vld [vmem:[%s949 + $0x38] sm:$0xff]
  %v958 = vld [vmem:[%s949 + $0x40] sm:$0xff]
  %v959 = vld [vmem:[%s949 + $0x48] sm:$0xff]
  %v960 = vld [vmem:[%s949 + $0x50] sm:$0xff]
  %v961 = vld [vmem:[%s949 + $0x58] sm:$0xff]
  %v962 = vld [vmem:[%s949 + $0x60] sm:$0xff]
  %v963 = vld [vmem:[%s949 + $0x68] sm:$0xff]
  %v964 = vld [vmem:[%s949 + $0x70] sm:$0xff]
  %v965 = vld [vmem:[%s949 + $0x78] sm:$0xff]
  %967 = vset.pattern.permute.xlu0 0
  %968 = vperm.xlu0 %967, %v950
  %v969 = vpop.permute.xlu0 %968
  %972 = vset.pattern.permute.xlu0 0
  %973 = vperm.xlu0 %972, %v951
  %v974 = vpop.permute.xlu0 %973
  %977 = vset.pattern.permute.xlu0 0
  %978 = vperm.xlu0 %977, %v952
  %v979 = vpop.permute.xlu0 %978
  %982 = vset.pattern.permute.xlu0 0
  %983 = vperm.xlu0 %982, %v953
  %v984 = vpop.permute.xlu0 %983
  %987 = vset.pattern.permute.xlu0 0
  %988 = vperm.xlu0 %987, %v954
  %v989 = vpop.permute.xlu0 %988
  %992 = vset.pattern.permute.xlu0 0
  %993 = vperm.xlu0 %992, %v955
  %v994 = vpop.permute.xlu0 %993
  %997 = vset.pattern.permute.xlu0 0
  %998 = vperm.xlu0 %997, %v956
  %v999 = vpop.permute.xlu0 %998
  %1002 = vset.pattern.permute.xlu0 0
  %1003 = vperm.xlu0 %1002, %v957
  %v1004 = vpop.permute.xlu0 %1003
  %1007 = vset.pattern.permute.xlu0 0
  %1008 = vperm.xlu0 %1007, %v958
  %v1009 = vpop.permute.xlu0 %1008
  %1012 = vset.pattern.permute.xlu0 0
  %1013 = vperm.xlu0 %1012, %v959
  %v1014 = vpop.permute.xlu0 %1013
  %1017 = vset.pattern.permute.xlu0 0
  %1018 = vperm.xlu0 %1017, %v960
  %v1019 = vpop.permute.xlu0 %1018
  %1022 = vset.pattern.permute.xlu0 0
  %1023 = vperm.xlu0 %1022, %v961
  %v1024 = vpop.permute.xlu0 %1023
  %1027 = vset.pattern.permute.xlu0 0
  %1028 = vperm.xlu0 %1027, %v962
  %v1029 = vpop.permute.xlu0 %1028
  %1032 = vset.pattern.permute.xlu0 0
  %1033 = vperm.xlu0 %1032, %v963
  %v1034 = vpop.permute.xlu0 %1033
  %1037 = vset.pattern.permute.xlu0 0
  %1038 = vperm.xlu0 %1037, %v964
  %v1039 = vpop.permute.xlu0 %1038
  %1042 = vset.pattern.permute.xlu0 0
  %1043 = vperm.xlu0 %1042, %v965
  %v1044 = vpop.permute.xlu0 %1043
  %v1046 = vmul.f32 %v103, %v969
  %v1047 = vmul.f32 %v61, %v974
  %v1048 = vmul.f32 %v63, %v979
  %v1049 = vmul.f32 %v65, %v984
  %v1050 = vmul.f32 %v67, %v989
  %v1051 = vmul.f32 %v69, %v994
  %v1052 = vmul.f32 %v71, %v999
  %v1053 = vmul.f32 %v73, %v1004
  %v1054 = vmul.f32 %v75, %v1009
  %v1055 = vmul.f32 %v77, %v1014
  %v1056 = vmul.f32 %v79, %v1019
  %v1057 = vmul.f32 %v81, %v1024
  %v1058 = vmul.f32 %v83, %v1029
  %v1059 = vmul.f32 %v85, %v1034
  %v1060 = vmul.f32 %v87, %v1039
  %v1061 = vmul.f32 %v947, %v1044
  %v1062 = vpack.c.bf16 %v1047, %v1046
  %v1063 = vpack.c.bf16 %v1049, %v1048
  %v1064 = vpack.c.bf16 %v1051, %v1050
  %v1065 = vpack.c.bf16 %v1053, %v1052
  %v1066 = vpack.c.bf16 %v1055, %v1054
  %v1067 = vpack.c.bf16 %v1057, %v1056
  %v1068 = vpack.c.bf16 %v1059, %v1058
  %v1069 = vpack.c.bf16 %v1061, %v1060
  %s1070 = scalar_lea.vmem %s2, 48
  %v1071 = vld [vmem:[%s1070] sm:$0xf]
  %v1072 = vld [vmem:[%s1070 + $0x4] sm:$0xf]
  %v1073 = vld [vmem:[%s1070 + $0x8] sm:$0xf]
  %v1074 = vld [vmem:[%s1070 + $0xc] sm:$0xf]
  %v1079 = vunpack.c.l.b16 %v1071
  %v1080 = vunpack.c.l.b16 %v1072
  %v1081 = vunpack.c.l.b16 %v1073
  %v1082 = vunpack.c.l.b16 %v1074
  %v1083 = vpack.c.b16 %v1080, %v1079
  %v1084 = vpack.c.b16 %v1082, %v1081
  %v1088 = vsel %vm366, %v1062, 0
  %v1091 = vsel %vm366, %v1063, 0
  %v1094 = vsel %vm366, %v1064, 0
  %v1097 = vsel %vm366, %v1065, 0
  %v1100 = vsel %vm366, %v1066, 0
  %v1103 = vsel %vm366, %v1067, 0
  %v1106 = vsel %vm366, %v1068, 0
  %v1109 = vsel %vm366, %v1069, 0
  %1111 = vmatprep.subr.bf16.mxu0 0
  %1112 = vmatpush1.bf16.msra.mxu0 0
  %1113 = vmatprep.subr.bf16.mxu0 0
  %1114 = vmatpush1.bf16.msra.mxu0 0
  %1115 = vmatprep.subr.bf16.mxu0 0
  %1116 = vmatpush1.bf16.msra.mxu0 0
  %1117 = vmatprep.subr.bf16.mxu0 0
  %1118 = vmatpush1.bf16.msra.mxu0 0
  %1119 = vmatprep.subr.bf16.mxu0 0
  %1120 = vmatpush1.bf16.msra.mxu0 0
  %1121 = vmatprep.subr.bf16.mxu0 0
  %1122 = vmatpush1.bf16.msra.mxu0 0
  %1123 = vmatprep.subr.bf16.mxu0 0
  %1124 = vmatpush1.bf16.msra.mxu0 %v1084
  %1125 = vmatprep.subr.bf16.mxu0 0
  %1126 = vmatpush1.bf16.msra.mxu0 %v1083
  %1127 = vmatprep.subr.bf16.mxu0 0
  %1128 = vmatpush2.bf16.msra.mxu0 0
  %1129 = vmatprep.subr.bf16.mxu0 0
  %1130 = vmatpush2.bf16.msra.mxu0 0
  %1131 = vmatprep.subr.bf16.mxu0 0
  %1132 = vmatpush2.bf16.msra.mxu0 0
  %1133 = vmatprep.subr.bf16.mxu0 0
  %1134 = vmatpush2.bf16.msra.mxu0 0
  %1135 = vmatprep.subr.bf16.mxu0 0
  %1136 = vmatpush2.bf16.msra.mxu0 0
  %1137 = vmatprep.subr.bf16.mxu0 0
  %1138 = vmatpush2.bf16.msra.mxu0 0
  %1139 = vmatprep.subr.bf16.mxu0 0
  %1140 = vmatpush2.bf16.msra.mxu0 0
  %1141 = vmatprep.subr.bf16.mxu0 0
  %1142 = vmatpush2.bf16.msra.mxu0 0
  %1143 = vmatprep.mubr.bf16.mxu0 0
  %1144 = vmatmul.mubr.bf16.gmra.mxu0 %v1088
  %v1145 = vpop.f32.mrf.mxu0
  %v1146 = vadd.f32 0.0, %v1145
  %v1147 = vpop.f32.mrf.mxu0
  %v1148 = vpop.f32.mrf.mxu0
  %v1149 = vadd.f32 0.0, %v1148
  %v1150 = vpop.f32.mrf.mxu0
  %1151 = vmatprep.mubr.bf16.mxu0 0
  %1152 = vmatmul.mubr.bf16.gmra.mxu0 %v1091
  %v1153 = vpop.f32.mrf.mxu0
  %v1154 = vadd.f32 0.0, %v1153
  %v1155 = vpop.f32.mrf.mxu0
  %v1156 = vpop.f32.mrf.mxu0
  %v1157 = vadd.f32 0.0, %v1156
  %v1158 = vpop.f32.mrf.mxu0
  %1159 = vmatprep.mubr.bf16.mxu0 0
  %1160 = vmatmul.mubr.bf16.gmra.mxu0 %v1094
  %v1161 = vpop.f32.mrf.mxu0
  %v1162 = vadd.f32 0.0, %v1161
  %v1163 = vpop.f32.mrf.mxu0
  %v1164 = vpop.f32.mrf.mxu0
  %v1165 = vadd.f32 0.0, %v1164
  %v1166 = vpop.f32.mrf.mxu0
  %1167 = vmatprep.mubr.bf16.mxu0 0
  %1168 = vmatmul.mubr.bf16.gmra.mxu0 %v1097
  %v1169 = vpop.f32.mrf.mxu0
  %v1170 = vadd.f32 0.0, %v1169
  %v1171 = vpop.f32.mrf.mxu0
  %v1172 = vpop.f32.mrf.mxu0
  %v1173 = vadd.f32 0.0, %v1172
  %v1174 = vpop.f32.mrf.mxu0
  %1175 = vmatprep.mubr.bf16.mxu0 0
  %1176 = vmatmul.mubr.bf16.gmra.mxu0 %v1100
  %v1177 = vpop.f32.mrf.mxu0
  %v1178 = vadd.f32 0.0, %v1177
  %v1179 = vpop.f32.mrf.mxu0
  %v1180 = vpop.f32.mrf.mxu0
  %v1181 = vadd.f32 0.0, %v1180
  %v1182 = vpop.f32.mrf.mxu0
  %1183 = vmatprep.mubr.bf16.mxu0 0
  %1184 = vmatmul.mubr.bf16.gmra.mxu0 %v1103
  %v1185 = vpop.f32.mrf.mxu0
  %v1186 = vadd.f32 0.0, %v1185
  %v1187 = vpop.f32.mrf.mxu0
  %v1188 = vpop.f32.mrf.mxu0
  %v1189 = vadd.f32 0.0, %v1188
  %v1190 = vpop.f32.mrf.mxu0
  %1191 = vmatprep.mubr.bf16.mxu0 0
  %1192 = vmatmul.mubr.bf16.gmra.mxu0 %v1106
  %v1193 = vpop.f32.mrf.mxu0
  %v1194 = vadd.f32 0.0, %v1193
  %v1195 = vpop.f32.mrf.mxu0
  %v1196 = vpop.f32.mrf.mxu0
  %v1197 = vadd.f32 0.0, %v1196
  %v1198 = vpop.f32.mrf.mxu0
  %1199 = vmatprep.mubr.bf16.mxu0 0
  %1200 = vmatmul.mubr.bf16.gmra.mxu0 %v1109
  %v1201 = vpop.f32.mrf.mxu0
  %v1202 = vadd.f32 0.0, %v1201
  %v1203 = vpop.f32.mrf.mxu0
  %v1204 = vpop.f32.mrf.mxu0
  %v1205 = vadd.f32 0.0, %v1204
  %v1206 = vpop.f32.mrf.mxu0
  %1207 = vdwg.mxu0
  %v1208 = vadd.f32 %v930, %v1146
  %v1209 = vadd.f32 %v931, %v1149
  %v1210 = vadd.f32 %v932, %v1154
  %v1211 = vadd.f32 %v933, %v1157
  %v1212 = vadd.f32 %v934, %v1162
  %v1213 = vadd.f32 %v935, %v1165
  %v1214 = vadd.f32 %v936, %v1170
  %v1215 = vadd.f32 %v937, %v1173
  %v1216 = vadd.f32 %v938, %v1178
  %v1217 = vadd.f32 %v939, %v1181
  %v1218 = vadd.f32 %v940, %v1186
  %v1219 = vadd.f32 %v941, %v1189
  %v1220 = vadd.f32 %v942, %v1194
  %v1221 = vadd.f32 %v943, %v1197
  %v1222 = vadd.f32 %v944, %v1202
  %v1223 = vadd.f32 %v945, %v1205
  %s1224 = scalar_lea.vmem %s1, 512
  %v1225 = vld [vmem:[%s1224] sm:$0xff]
  %v1226 = vld [vmem:[%s1224 + $0x8] sm:$0xff]
  %v1227 = vld [vmem:[%s1224 + $0x10] sm:$0xff]
  %v1228 = vld [vmem:[%s1224 + $0x18] sm:$0xff]
  %v1229 = vld [vmem:[%s1224 + $0x20] sm:$0xff]
  %v1230 = vld [vmem:[%s1224 + $0x28] sm:$0xff]
  %v1231 = vld [vmem:[%s1224 + $0x30] sm:$0xff]
  %v1232 = vld [vmem:[%s1224 + $0x38] sm:$0xff]
  %v1233 = vld [vmem:[%s1224 + $0x40] sm:$0xff]
  %v1234 = vld [vmem:[%s1224 + $0x48] sm:$0xff]
  %v1235 = vld [vmem:[%s1224 + $0x50] sm:$0xff]
  %v1236 = vld [vmem:[%s1224 + $0x58] sm:$0xff]
  %v1237 = vld [vmem:[%s1224 + $0x60] sm:$0xff]
  %v1238 = vld [vmem:[%s1224 + $0x68] sm:$0xff]
  %v1239 = vld [vmem:[%s1224 + $0x70] sm:$0xff]
  %v1240 = vld [vmem:[%s1224 + $0x78] sm:$0xff]
  %1242 = vset.pattern.permute.xlu0 0
  %1243 = vperm.xlu0 %1242, %v1225
  %v1244 = vpop.permute.xlu0 %1243
  %1247 = vset.pattern.permute.xlu0 0
  %1248 = vperm.xlu0 %1247, %v1226
  %v1249 = vpop.permute.xlu0 %1248
  %1252 = vset.pattern.permute.xlu0 0
  %1253 = vperm.xlu0 %1252, %v1227
  %v1254 = vpop.permute.xlu0 %1253
  %1257 = vset.pattern.permute.xlu0 0
  %1258 = vperm.xlu0 %1257, %v1228
  %v1259 = vpop.permute.xlu0 %1258
  %1262 = vset.pattern.permute.xlu0 0
  %1263 = vperm.xlu0 %1262, %v1229
  %v1264 = vpop.permute.xlu0 %1263
  %1267 = vset.pattern.permute.xlu0 0
  %1268 = vperm.xlu0 %1267, %v1230
  %v1269 = vpop.permute.xlu0 %1268
  %1272 = vset.pattern.permute.xlu0 0
  %1273 = vperm.xlu0 %1272, %v1231
  %v1274 = vpop.permute.xlu0 %1273
  %1277 = vset.pattern.permute.xlu0 0
  %1278 = vperm.xlu0 %1277, %v1232
  %v1279 = vpop.permute.xlu0 %1278
  %1282 = vset.pattern.permute.xlu0 0
  %1283 = vperm.xlu0 %1282, %v1233
  %v1284 = vpop.permute.xlu0 %1283
  %1287 = vset.pattern.permute.xlu0 0
  %1288 = vperm.xlu0 %1287, %v1234
  %v1289 = vpop.permute.xlu0 %1288
  %1292 = vset.pattern.permute.xlu0 0
  %1293 = vperm.xlu0 %1292, %v1235
  %v1294 = vpop.permute.xlu0 %1293
  %1297 = vset.pattern.permute.xlu0 0
  %1298 = vperm.xlu0 %1297, %v1236
  %v1299 = vpop.permute.xlu0 %1298
  %1302 = vset.pattern.permute.xlu0 0
  %1303 = vperm.xlu0 %1302, %v1237
  %v1304 = vpop.permute.xlu0 %1303
  %1307 = vset.pattern.permute.xlu0 0
  %1308 = vperm.xlu0 %1307, %v1238
  %v1309 = vpop.permute.xlu0 %1308
  %1312 = vset.pattern.permute.xlu0 0
  %1313 = vperm.xlu0 %1312, %v1239
  %v1314 = vpop.permute.xlu0 %1313
  %1317 = vset.pattern.permute.xlu0 0
  %1318 = vperm.xlu0 %1317, %v1240
  %v1319 = vpop.permute.xlu0 %1318
  %v1321 = vmul.f32 %v27, %v1244
  %v1322 = vmul.f32 %v28, %v1249
  %v1323 = vmul.f32 %v29, %v1254
  %v1324 = vmul.f32 %v30, %v1259
  %v1325 = vmul.f32 %v31, %v1264
  %v1326 = vmul.f32 %v32, %v1269
  %v1327 = vmul.f32 %v33, %v1274
  %v1328 = vmul.f32 %v34, %v1279
  %v1329 = vmul.f32 %v35, %v1284
  %v1330 = vmul.f32 %v36, %v1289
  %v1331 = vmul.f32 %v37, %v1294
  %v1332 = vmul.f32 %v38, %v1299
  %v1333 = vmul.f32 %v39, %v1304
  %v1334 = vmul.f32 %v40, %v1309
  %v1335 = vmul.f32 %v41, %v1314
  %v1336 = vmul.f32 %v42, %v1319
  %v1337 = vpack.c.bf16 %v1322, %v1321
  %v1338 = vpack.c.bf16 %v1324, %v1323
  %v1339 = vpack.c.bf16 %v1326, %v1325
  %v1340 = vpack.c.bf16 %v1328, %v1327
  %v1341 = vpack.c.bf16 %v1330, %v1329
  %v1342 = vpack.c.bf16 %v1332, %v1331
  %v1343 = vpack.c.bf16 %v1334, %v1333
  %v1344 = vpack.c.bf16 %v1336, %v1335
  %s1345 = scalar_lea.vmem %s2, 64
  %v1346 = vld [vmem:[%s1345] sm:$0xf]
  %v1347 = vld [vmem:[%s1345 + $0x4] sm:$0xf]
  %v1348 = vld [vmem:[%s1345 + $0x8] sm:$0xf]
  %v1349 = vld [vmem:[%s1345 + $0xc] sm:$0xf]
  %v1354 = vunpack.c.l.b16 %v1346
  %v1355 = vunpack.c.l.b16 %v1347
  %v1356 = vunpack.c.l.b16 %v1348
  %v1357 = vunpack.c.l.b16 %v1349
  %v1358 = vpack.c.b16 %v1355, %v1354
  %v1359 = vpack.c.b16 %v1357, %v1356
  %v1363 = vsel %vm366, %v1337, 0
  %v1366 = vsel %vm366, %v1338, 0
  %v1369 = vsel %vm366, %v1339, 0
  %v1372 = vsel %vm366, %v1340, 0
  %v1375 = vsel %vm366, %v1341, 0
  %v1378 = vsel %vm366, %v1342, 0
  %v1381 = vsel %vm366, %v1343, 0
  %v1384 = vsel %vm366, %v1344, 0
  %1386 = vmatprep.subr.bf16.mxu0 0
  %1387 = vmatpush1.bf16.msra.mxu0 0
  %1388 = vmatprep.subr.bf16.mxu0 0
  %1389 = vmatpush1.bf16.msra.mxu0 0
  %1390 = vmatprep.subr.bf16.mxu0 0
  %1391 = vmatpush1.bf16.msra.mxu0 0
  %1392 = vmatprep.subr.bf16.mxu0 0
  %1393 = vmatpush1.bf16.msra.mxu0 0
  %1394 = vmatprep.subr.bf16.mxu0 0
  %1395 = vmatpush1.bf16.msra.mxu0 0
  %1396 = vmatprep.subr.bf16.mxu0 0
  %1397 = vmatpush1.bf16.msra.mxu0 0
  %1398 = vmatprep.subr.bf16.mxu0 0
  %1399 = vmatpush1.bf16.msra.mxu0 %v1359
  %1400 = vmatprep.subr.bf16.mxu0 0
  %1401 = vmatpush1.bf16.msra.mxu0 %v1358
  %1402 = vmatprep.subr.bf16.mxu0 0
  %1403 = vmatpush2.bf16.msra.mxu0 0
  %1404 = vmatprep.subr.bf16.mxu0 0
  %1405 = vmatpush2.bf16.msra.mxu0 0
  %1406 = vmatprep.subr.bf16.mxu0 0
  %1407 = vmatpush2.bf16.msra.mxu0 0
  %1408 = vmatprep.subr.bf16.mxu0 0
  %1409 = vmatpush2.bf16.msra.mxu0 0
  %1410 = vmatprep.subr.bf16.mxu0 0
  %1411 = vmatpush2.bf16.msra.mxu0 0
  %1412 = vmatprep.subr.bf16.mxu0 0
  %1413 = vmatpush2.bf16.msra.mxu0 0
  %1414 = vmatprep.subr.bf16.mxu0 0
  %1415 = vmatpush2.bf16.msra.mxu0 0
  %1416 = vmatprep.subr.bf16.mxu0 0
  %1417 = vmatpush2.bf16.msra.mxu0 0
  %1418 = vmatprep.mubr.bf16.mxu0 0
  %1419 = vmatmul.mubr.bf16.gmra.mxu0 %v1363
  %v1420 = vpop.f32.mrf.mxu0
  %v1421 = vadd.f32 0.0, %v1420
  %v1422 = vpop.f32.mrf.mxu0
  %v1423 = vpop.f32.mrf.mxu0
  %v1424 = vadd.f32 0.0, %v1423
  %v1425 = vpop.f32.mrf.mxu0
  %1426 = vmatprep.mubr.bf16.mxu0 0
  %1427 = vmatmul.mubr.bf16.gmra.mxu0 %v1366
  %v1428 = vpop.f32.mrf.mxu0
  %v1429 = vadd.f32 0.0, %v1428
  %v1430 = vpop.f32.mrf.mxu0
  %v1431 = vpop.f32.mrf.mxu0
  %v1432 = vadd.f32 0.0, %v1431
  %v1433 = vpop.f32.mrf.mxu0
  %1434 = vmatprep.mubr.bf16.mxu0 0
  %1435 = vmatmul.mubr.bf16.gmra.mxu0 %v1369
  %v1436 = vpop.f32.mrf.mxu0
  %v1437 = vadd.f32 0.0, %v1436
  %v1438 = vpop.f32.mrf.mxu0
  %v1439 = vpop.f32.mrf.mxu0
  %v1440 = vadd.f32 0.0, %v1439
  %v1441 = vpop.f32.mrf.mxu0
  %1442 = vmatprep.mubr.bf16.mxu0 0
  %1443 = vmatmul.mubr.bf16.gmra.mxu0 %v1372
  %v1444 = vpop.f32.mrf.mxu0
  %v1445 = vadd.f32 0.0, %v1444
  %v1446 = vpop.f32.mrf.mxu0
  %v1447 = vpop.f32.mrf.mxu0
  %v1448 = vadd.f32 0.0, %v1447
  %v1449 = vpop.f32.mrf.mxu0
  %1450 = vmatprep.mubr.bf16.mxu0 0
  %1451 = vmatmul.mubr.bf16.gmra.mxu0 %v1375
  %v1452 = vpop.f32.mrf.mxu0
  %v1453 = vadd.f32 0.0, %v1452
  %v1454 = vpop.f32.mrf.mxu0
  %v1455 = vpop.f32.mrf.mxu0
  %v1456 = vadd.f32 0.0, %v1455
  %v1457 = vpop.f32.mrf.mxu0
  %1458 = vmatprep.mubr.bf16.mxu0 0
  %1459 = vmatmul.mubr.bf16.gmra.mxu0 %v1378
  %v1460 = vpop.f32.mrf.mxu0
  %v1461 = vadd.f32 0.0, %v1460
  %v1462 = vpop.f32.mrf.mxu0
  %v1463 = vpop.f32.mrf.mxu0
  %v1464 = vadd.f32 0.0, %v1463
  %v1465 = vpop.f32.mrf.mxu0
  %1466 = vmatprep.mubr.bf16.mxu0 0
  %1467 = vmatmul.mubr.bf16.gmra.mxu0 %v1381
  %v1468 = vpop.f32.mrf.mxu0
  %v1469 = vadd.f32 0.0, %v1468
  %v1470 = vpop.f32.mrf.mxu0
  %v1471 = vpop.f32.mrf.mxu0
  %v1472 = vadd.f32 0.0, %v1471
  %v1473 = vpop.f32.mrf.mxu0
  %1474 = vmatprep.mubr.bf16.mxu0 0
  %1475 = vmatmul.mubr.bf16.gmra.mxu0 %v1384
  %v1476 = vpop.f32.mrf.mxu0
  %v1477 = vadd.f32 0.0, %v1476
  %v1478 = vpop.f32.mrf.mxu0
  %v1479 = vpop.f32.mrf.mxu0
  %v1480 = vadd.f32 0.0, %v1479
  %v1481 = vpop.f32.mrf.mxu0
  %1482 = vdwg.mxu0
  %v1483 = vadd.f32 %v1208, %v1421
  %v1484 = vadd.f32 %v1209, %v1424
  %v1485 = vadd.f32 %v1210, %v1429
  %v1486 = vadd.f32 %v1211, %v1432
  %v1487 = vadd.f32 %v1212, %v1437
  %v1488 = vadd.f32 %v1213, %v1440
  %v1489 = vadd.f32 %v1214, %v1445
  %v1490 = vadd.f32 %v1215, %v1448
  %v1491 = vadd.f32 %v1216, %v1453
  %v1492 = vadd.f32 %v1217, %v1456
  %v1493 = vadd.f32 %v1218, %v1461
  %v1494 = vadd.f32 %v1219, %v1464
  %v1495 = vadd.f32 %v1220, %v1469
  %v1496 = vadd.f32 %v1221, %v1472
  %v1497 = vadd.f32 %v1222, %v1477
  %v1498 = vadd.f32 %v1223, %v1480
  %v1500 = vsel %vm622, %v652, 0.0
  %s1501 = scalar_lea.vmem %s1, 640
  %v1502 = vld [vmem:[%s1501] sm:$0xff]
  %v1503 = vld [vmem:[%s1501 + $0x8] sm:$0xff]
  %v1504 = vld [vmem:[%s1501 + $0x10] sm:$0xff]
  %v1505 = vld [vmem:[%s1501 + $0x18] sm:$0xff]
  %v1506 = vld [vmem:[%s1501 + $0x20] sm:$0xff]
  %v1507 = vld [vmem:[%s1501 + $0x28] sm:$0xff]
  %v1508 = vld [vmem:[%s1501 + $0x30] sm:$0xff]
  %v1509 = vld [vmem:[%s1501 + $0x38] sm:$0xff]
  %v1510 = vld [vmem:[%s1501 + $0x40] sm:$0xff]
  %v1511 = vld [vmem:[%s1501 + $0x48] sm:$0xff]
  %v1512 = vld [vmem:[%s1501 + $0x50] sm:$0xff]
  %v1513 = vld [vmem:[%s1501 + $0x58] sm:$0xff]
  %v1514 = vld [vmem:[%s1501 + $0x60] sm:$0xff]
  %v1515 = vld [vmem:[%s1501 + $0x68] sm:$0xff]
  %v1516 = vld [vmem:[%s1501 + $0x70] sm:$0xff]
  %v1517 = vld [vmem:[%s1501 + $0x78] sm:$0xff]
  %1519 = vset.pattern.permute.xlu0 0
  %1520 = vperm.xlu0 %1519, %v1502
  %v1521 = vpop.permute.xlu0 %1520
  %1524 = vset.pattern.permute.xlu0 0
  %1525 = vperm.xlu0 %1524, %v1503
  %v1526 = vpop.permute.xlu0 %1525
  %1529 = vset.pattern.permute.xlu0 0
  %1530 = vperm.xlu0 %1529, %v1504
  %v1531 = vpop.permute.xlu0 %1530
  %1534 = vset.pattern.permute.xlu0 0
  %1535 = vperm.xlu0 %1534, %v1505
  %v1536 = vpop.permute.xlu0 %1535
  %1539 = vset.pattern.permute.xlu0 0
  %1540 = vperm.xlu0 %1539, %v1506
  %v1541 = vpop.permute.xlu0 %1540
  %1544 = vset.pattern.permute.xlu0 0
  %1545 = vperm.xlu0 %1544, %v1507
  %v1546 = vpop.permute.xlu0 %1545
  %1549 = vset.pattern.permute.xlu0 0
  %1550 = vperm.xlu0 %1549, %v1508
  %v1551 = vpop.permute.xlu0 %1550
  %1554 = vset.pattern.permute.xlu0 0
  %1555 = vperm.xlu0 %1554, %v1509
  %v1556 = vpop.permute.xlu0 %1555
  %1559 = vset.pattern.permute.xlu0 0
  %1560 = vperm.xlu0 %1559, %v1510
  %v1561 = vpop.permute.xlu0 %1560
  %1564 = vset.pattern.permute.xlu0 0
  %1565 = vperm.xlu0 %1564, %v1511
  %v1566 = vpop.permute.xlu0 %1565
  %1569 = vset.pattern.permute.xlu0 0
  %1570 = vperm.xlu0 %1569, %v1512
  %v1571 = vpop.permute.xlu0 %1570
  %1574 = vset.pattern.permute.xlu0 0
  %1575 = vperm.xlu0 %1574, %v1513
  %v1576 = vpop.permute.xlu0 %1575
  %1579 = vset.pattern.permute.xlu0 0
  %1580 = vperm.xlu0 %1579, %v1514
  %v1581 = vpop.permute.xlu0 %1580
  %1584 = vset.pattern.permute.xlu0 0
  %1585 = vperm.xlu0 %1584, %v1515
  %v1586 = vpop.permute.xlu0 %1585
  %1589 = vset.pattern.permute.xlu0 0
  %1590 = vperm.xlu0 %1589, %v1516
  %v1591 = vpop.permute.xlu0 %1590
  %1594 = vset.pattern.permute.xlu0 0
  %1595 = vperm.xlu0 %1594, %v1517
  %v1596 = vpop.permute.xlu0 %1595
  %v1598 = vmul.f32 %v625, %v1521
  %v1599 = vmul.f32 %v627, %v1526
  %v1600 = vmul.f32 %v629, %v1531
  %v1601 = vmul.f32 %v631, %v1536
  %v1602 = vmul.f32 %v633, %v1541
  %v1603 = vmul.f32 %v635, %v1546
  %v1604 = vmul.f32 %v637, %v1551
  %v1605 = vmul.f32 %v639, %v1556
  %v1606 = vmul.f32 %v641, %v1561
  %v1607 = vmul.f32 %v643, %v1566
  %v1608 = vmul.f32 %v645, %v1571
  %v1609 = vmul.f32 %v647, %v1576
  %v1610 = vmul.f32 %v649, %v1581
  %v1611 = vmul.f32 %v651, %v1586
  %v1612 = vmul.f32 %v653, %v1591
  %v1613 = vmul.f32 %v1500, %v1596
  %v1614 = vpack.c.bf16 %v1599, %v1598
  %v1615 = vpack.c.bf16 %v1601, %v1600
  %v1616 = vpack.c.bf16 %v1603, %v1602
  %v1617 = vpack.c.bf16 %v1605, %v1604
  %v1618 = vpack.c.bf16 %v1607, %v1606
  %v1619 = vpack.c.bf16 %v1609, %v1608
  %v1620 = vpack.c.bf16 %v1611, %v1610
  %v1621 = vpack.c.bf16 %v1613, %v1612
  %s1622 = scalar_lea.vmem %s2, 80
  %v1623 = vld [vmem:[%s1622] sm:$0xf]
  %v1624 = vld [vmem:[%s1622 + $0x4] sm:$0xf]
  %v1625 = vld [vmem:[%s1622 + $0x8] sm:$0xf]
  %v1626 = vld [vmem:[%s1622 + $0xc] sm:$0xf]
  %v1631 = vunpack.c.l.b16 %v1623
  %v1632 = vunpack.c.l.b16 %v1624
  %v1633 = vunpack.c.l.b16 %v1625
  %v1634 = vunpack.c.l.b16 %v1626
  %v1635 = vpack.c.b16 %v1632, %v1631
  %v1636 = vpack.c.b16 %v1634, %v1633
  %v1640 = vsel %vm366, %v1614, 0
  %v1643 = vsel %vm366, %v1615, 0
  %v1646 = vsel %vm366, %v1616, 0
  %v1649 = vsel %vm366, %v1617, 0
  %v1652 = vsel %vm366, %v1618, 0
  %v1655 = vsel %vm366, %v1619, 0
  %v1658 = vsel %vm366, %v1620, 0
  %v1661 = vsel %vm366, %v1621, 0
  %1663 = vmatprep.subr.bf16.mxu0 0
  %1664 = vmatpush1.bf16.msra.mxu0 0
  %1665 = vmatprep.subr.bf16.mxu0 0
  %1666 = vmatpush1.bf16.msra.mxu0 0
  %1667 = vmatprep.subr.bf16.mxu0 0
  %1668 = vmatpush1.bf16.msra.mxu0 0
  %1669 = vmatprep.subr.bf16.mxu0 0
  %1670 = vmatpush1.bf16.msra.mxu0 0
  %1671 = vmatprep.subr.bf16.mxu0 0
  %1672 = vmatpush1.bf16.msra.mxu0 0
  %1673 = vmatprep.subr.bf16.mxu0 0
  %1674 = vmatpush1.bf16.msra.mxu0 0
  %1675 = vmatprep.subr.bf16.mxu0 0
  %1676 = vmatpush1.bf16.msra.mxu0 %v1636
  %1677 = vmatprep.subr.bf16.mxu0 0
  %1678 = vmatpush1.bf16.msra.mxu0 %v1635
  %1679 = vmatprep.subr.bf16.mxu0 0
  %1680 = vmatpush2.bf16.msra.mxu0 0
  %1681 = vmatprep.subr.bf16.mxu0 0
  %1682 = vmatpush2.bf16.msra.mxu0 0
  %1683 = vmatprep.subr.bf16.mxu0 0
  %1684 = vmatpush2.bf16.msra.mxu0 0
  %1685 = vmatprep.subr.bf16.mxu0 0
  %1686 = vmatpush2.bf16.msra.mxu0 0
  %1687 = vmatprep.subr.bf16.mxu0 0
  %1688 = vmatpush2.bf16.msra.mxu0 0
  %1689 = vmatprep.subr.bf16.mxu0 0
  %1690 = vmatpush2.bf16.msra.mxu0 0
  %1691 = vmatprep.subr.bf16.mxu0 0
  %1692 = vmatpush2.bf16.msra.mxu0 0
  %1693 = vmatprep.subr.bf16.mxu0 0
  %1694 = vmatpush2.bf16.msra.mxu0 0
  %1695 = vmatprep.mubr.bf16.mxu0 0
  %1696 = vmatmul.mubr.bf16.gmra.mxu0 %v1640
  %v1697 = vpop.f32.mrf.mxu0
  %v1698 = vadd.f32 0.0, %v1697
  %v1699 = vpop.f32.mrf.mxu0
  %v1700 = vpop.f32.mrf.mxu0
  %v1701 = vadd.f32 0.0, %v1700
  %v1702 = vpop.f32.mrf.mxu0
  %1703 = vmatprep.mubr.bf16.mxu0 0
  %1704 = vmatmul.mubr.bf16.gmra.mxu0 %v1643
  %v1705 = vpop.f32.mrf.mxu0
  %v1706 = vadd.f32 0.0, %v1705
  %v1707 = vpop.f32.mrf.mxu0
  %v1708 = vpop.f32.mrf.mxu0
  %v1709 = vadd.f32 0.0, %v1708
  %v1710 = vpop.f32.mrf.mxu0
  %1711 = vmatprep.mubr.bf16.mxu0 0
  %1712 = vmatmul.mubr.bf16.gmra.mxu0 %v1646
  %v1713 = vpop.f32.mrf.mxu0
  %v1714 = vadd.f32 0.0, %v1713
  %v1715 = vpop.f32.mrf.mxu0
  %v1716 = vpop.f32.mrf.mxu0
  %v1717 = vadd.f32 0.0, %v1716
  %v1718 = vpop.f32.mrf.mxu0
  %1719 = vmatprep.mubr.bf16.mxu0 0
  %1720 = vmatmul.mubr.bf16.gmra.mxu0 %v1649
  %v1721 = vpop.f32.mrf.mxu0
  %v1722 = vadd.f32 0.0, %v1721
  %v1723 = vpop.f32.mrf.mxu0
  %v1724 = vpop.f32.mrf.mxu0
  %v1725 = vadd.f32 0.0, %v1724
  %v1726 = vpop.f32.mrf.mxu0
  %1727 = vmatprep.mubr.bf16.mxu0 0
  %1728 = vmatmul.mubr.bf16.gmra.mxu0 %v1652
  %v1729 = vpop.f32.mrf.mxu0
  %v1730 = vadd.f32 0.0, %v1729
  %v1731 = vpop.f32.mrf.mxu0
  %v1732 = vpop.f32.mrf.mxu0
  %v1733 = vadd.f32 0.0, %v1732
  %v1734 = vpop.f32.mrf.mxu0
  %1735 = vmatprep.mubr.bf16.mxu0 0
  %1736 = vmatmul.mubr.bf16.gmra.mxu0 %v1655
  %v1737 = vpop.f32.mrf.mxu0
  %v1738 = vadd.f32 0.0, %v1737
  %v1739 = vpop.f32.mrf.mxu0
  %v1740 = vpop.f32.mrf.mxu0
  %v1741 = vadd.f32 0.0, %v1740
  %v1742 = vpop.f32.mrf.mxu0
  %1743 = vmatprep.mubr.bf16.mxu0 0
  %1744 = vmatmul.mubr.bf16.gmra.mxu0 %v1658
  %v1745 = vpop.f32.mrf.mxu0
  %v1746 = vadd.f32 0.0, %v1745
  %v1747 = vpop.f32.mrf.mxu0
  %v1748 = vpop.f32.mrf.mxu0
  %v1749 = vadd.f32 0.0, %v1748
  %v1750 = vpop.f32.mrf.mxu0
  %1751 = vmatprep.mubr.bf16.mxu0 0
  %1752 = vmatmul.mubr.bf16.gmra.mxu0 %v1661
  %v1753 = vpop.f32.mrf.mxu0
  %v1754 = vadd.f32 0.0, %v1753
  %v1755 = vpop.f32.mrf.mxu0
  %v1756 = vpop.f32.mrf.mxu0
  %v1757 = vadd.f32 0.0, %v1756
  %v1758 = vpop.f32.mrf.mxu0
  %1759 = vdwg.mxu0
  %v1760 = vadd.f32 %v1483, %v1698
  %v1761 = vadd.f32 %v1484, %v1701
  %v1762 = vadd.f32 %v1485, %v1706
  %v1763 = vadd.f32 %v1486, %v1709
  %v1764 = vadd.f32 %v1487, %v1714
  %v1765 = vadd.f32 %v1488, %v1717
  %v1766 = vadd.f32 %v1489, %v1722
  %v1767 = vadd.f32 %v1490, %v1725
  %v1768 = vadd.f32 %v1491, %v1730
  %v1769 = vadd.f32 %v1492, %v1733
  %v1770 = vadd.f32 %v1493, %v1738
  %v1771 = vadd.f32 %v1494, %v1741
  %v1772 = vadd.f32 %v1495, %v1746
  %v1773 = vadd.f32 %v1496, %v1749
  %v1774 = vadd.f32 %v1497, %v1754
  %v1775 = vadd.f32 %v1498, %v1757
  %v1777 = vsel %vm58, %v946, 0.0
  %s1778 = scalar_lea.vmem %s1, 768
  %v1779 = vld [vmem:[%s1778] sm:$0xff]
  %v1780 = vld [vmem:[%s1778 + $0x8] sm:$0xff]
  %v1781 = vld [vmem:[%s1778 + $0x10] sm:$0xff]
  %v1782 = vld [vmem:[%s1778 + $0x18] sm:$0xff]
  %v1783 = vld [vmem:[%s1778 + $0x20] sm:$0xff]
  %v1784 = vld [vmem:[%s1778 + $0x28] sm:$0xff]
  %v1785 = vld [vmem:[%s1778 + $0x30] sm:$0xff]
  %v1786 = vld [vmem:[%s1778 + $0x38] sm:$0xff]
  %v1787 = vld [vmem:[%s1778 + $0x40] sm:$0xff]
  %v1788 = vld [vmem:[%s1778 + $0x48] sm:$0xff]
  %v1789 = vld [vmem:[%s1778 + $0x50] sm:$0xff]
  %v1790 = vld [vmem:[%s1778 + $0x58] sm:$0xff]
  %v1791 = vld [vmem:[%s1778 + $0x60] sm:$0xff]
  %v1792 = vld [vmem:[%s1778 + $0x68] sm:$0xff]
  %v1793 = vld [vmem:[%s1778 + $0x70] sm:$0xff]
  %v1794 = vld [vmem:[%s1778 + $0x78] sm:$0xff]
  %1796 = vset.pattern.permute.xlu0 0
  %1797 = vperm.xlu0 %1796, %v1779
  %v1798 = vpop.permute.xlu0 %1797
  %1801 = vset.pattern.permute.xlu0 0
  %1802 = vperm.xlu0 %1801, %v1780
  %v1803 = vpop.permute.xlu0 %1802
  %1806 = vset.pattern.permute.xlu0 0
  %1807 = vperm.xlu0 %1806, %v1781
  %v1808 = vpop.permute.xlu0 %1807
  %1811 = vset.pattern.permute.xlu0 0
  %1812 = vperm.xlu0 %1811, %v1782
  %v1813 = vpop.permute.xlu0 %1812
  %1816 = vset.pattern.permute.xlu0 0
  %1817 = vperm.xlu0 %1816, %v1783
  %v1818 = vpop.permute.xlu0 %1817
  %1821 = vset.pattern.permute.xlu0 0
  %1822 = vperm.xlu0 %1821, %v1784
  %v1823 = vpop.permute.xlu0 %1822
  %1826 = vset.pattern.permute.xlu0 0
  %1827 = vperm.xlu0 %1826, %v1785
  %v1828 = vpop.permute.xlu0 %1827
  %1831 = vset.pattern.permute.xlu0 0
  %1832 = vperm.xlu0 %1831, %v1786
  %v1833 = vpop.permute.xlu0 %1832
  %1836 = vset.pattern.permute.xlu0 0
  %1837 = vperm.xlu0 %1836, %v1787
  %v1838 = vpop.permute.xlu0 %1837
  %1841 = vset.pattern.permute.xlu0 0
  %1842 = vperm.xlu0 %1841, %v1788
  %v1843 = vpop.permute.xlu0 %1842
  %1846 = vset.pattern.permute.xlu0 0
  %1847 = vperm.xlu0 %1846, %v1789
  %v1848 = vpop.permute.xlu0 %1847
  %1851 = vset.pattern.permute.xlu0 0
  %1852 = vperm.xlu0 %1851, %v1790
  %v1853 = vpop.permute.xlu0 %1852
  %1856 = vset.pattern.permute.xlu0 0
  %1857 = vperm.xlu0 %1856, %v1791
  %v1858 = vpop.permute.xlu0 %1857
  %1861 = vset.pattern.permute.xlu0 0
  %1862 = vperm.xlu0 %1861, %v1792
  %v1863 = vpop.permute.xlu0 %1862
  %1866 = vset.pattern.permute.xlu0 0
  %1867 = vperm.xlu0 %1866, %v1793
  %v1868 = vpop.permute.xlu0 %1867
  %1871 = vset.pattern.permute.xlu0 0
  %1872 = vperm.xlu0 %1871, %v1794
  %v1873 = vpop.permute.xlu0 %1872
  %v1875 = vmul.f32 %v61, %v1798
  %v1876 = vmul.f32 %v63, %v1803
  %v1877 = vmul.f32 %v65, %v1808
  %v1878 = vmul.f32 %v67, %v1813
  %v1879 = vmul.f32 %v69, %v1818
  %v1880 = vmul.f32 %v71, %v1823
  %v1881 = vmul.f32 %v73, %v1828
  %v1882 = vmul.f32 %v75, %v1833
  %v1883 = vmul.f32 %v77, %v1838
  %v1884 = vmul.f32 %v79, %v1843
  %v1885 = vmul.f32 %v81, %v1848
  %v1886 = vmul.f32 %v83, %v1853
  %v1887 = vmul.f32 %v85, %v1858
  %v1888 = vmul.f32 %v87, %v1863
  %v1889 = vmul.f32 %v947, %v1868
  %v1890 = vmul.f32 %v1777, %v1873
  %v1891 = vpack.c.bf16 %v1876, %v1875
  %v1892 = vpack.c.bf16 %v1878, %v1877
  %v1893 = vpack.c.bf16 %v1880, %v1879
  %v1894 = vpack.c.bf16 %v1882, %v1881
  %v1895 = vpack.c.bf16 %v1884, %v1883
  %v1896 = vpack.c.bf16 %v1886, %v1885
  %v1897 = vpack.c.bf16 %v1888, %v1887
  %v1898 = vpack.c.bf16 %v1890, %v1889
  %s1899 = scalar_lea.vmem %s2, 96
  %v1900 = vld [vmem:[%s1899] sm:$0xf]
  %v1901 = vld [vmem:[%s1899 + $0x4] sm:$0xf]
  %v1902 = vld [vmem:[%s1899 + $0x8] sm:$0xf]
  %v1903 = vld [vmem:[%s1899 + $0xc] sm:$0xf]
  %v1908 = vunpack.c.l.b16 %v1900
  %v1909 = vunpack.c.l.b16 %v1901
  %v1910 = vunpack.c.l.b16 %v1902
  %v1911 = vunpack.c.l.b16 %v1903
  %v1912 = vpack.c.b16 %v1909, %v1908
  %v1913 = vpack.c.b16 %v1911, %v1910
  %v1917 = vsel %vm366, %v1891, 0
  %v1920 = vsel %vm366, %v1892, 0
  %v1923 = vsel %vm366, %v1893, 0
  %v1926 = vsel %vm366, %v1894, 0
  %v1929 = vsel %vm366, %v1895, 0
  %v1932 = vsel %vm366, %v1896, 0
  %v1935 = vsel %vm366, %v1897, 0
  %v1938 = vsel %vm366, %v1898, 0
  %1940 = vmatprep.subr.bf16.mxu0 0
  %1941 = vmatpush1.bf16.msra.mxu0 0
  %1942 = vmatprep.subr.bf16.mxu0 0
  %1943 = vmatpush1.bf16.msra.mxu0 0
  %1944 = vmatprep.subr.bf16.mxu0 0
  %1945 = vmatpush1.bf16.msra.mxu0 0
  %1946 = vmatprep.subr.bf16.mxu0 0
  %1947 = vmatpush1.bf16.msra.mxu0 0
  %1948 = vmatprep.subr.bf16.mxu0 0
  %1949 = vmatpush1.bf16.msra.mxu0 0
  %1950 = vmatprep.subr.bf16.mxu0 0
  %1951 = vmatpush1.bf16.msra.mxu0 0
  %1952 = vmatprep.subr.bf16.mxu0 0
  %1953 = vmatpush1.bf16.msra.mxu0 %v1913
  %1954 = vmatprep.subr.bf16.mxu0 0
  %1955 = vmatpush1.bf16.msra.mxu0 %v1912
  %1956 = vmatprep.subr.bf16.mxu0 0
  %1957 = vmatpush2.bf16.msra.mxu0 0
  %1958 = vmatprep.subr.bf16.mxu0 0
  %1959 = vmatpush2.bf16.msra.mxu0 0
  %1960 = vmatprep.subr.bf16.mxu0 0
  %1961 = vmatpush2.bf16.msra.mxu0 0
  %1962 = vmatprep.subr.bf16.mxu0 0
  %1963 = vmatpush2.bf16.msra.mxu0 0
  %1964 = vmatprep.subr.bf16.mxu0 0
  %1965 = vmatpush2.bf16.msra.mxu0 0
  %1966 = vmatprep.subr.bf16.mxu0 0
  %1967 = vmatpush2.bf16.msra.mxu0 0
  %1968 = vmatprep.subr.bf16.mxu0 0
  %1969 = vmatpush2.bf16.msra.mxu0 0
  %1970 = vmatprep.subr.bf16.mxu0 0
  %1971 = vmatpush2.bf16.msra.mxu0 0
  %1972 = vmatprep.mubr.bf16.mxu0 0
  %1973 = vmatmul.mubr.bf16.gmra.mxu0 %v1917
  %v1974 = vpop.f32.mrf.mxu0
  %v1975 = vadd.f32 0.0, %v1974
  %v1976 = vpop.f32.mrf.mxu0
  %v1977 = vpop.f32.mrf.mxu0
  %v1978 = vadd.f32 0.0, %v1977
  %v1979 = vpop.f32.mrf.mxu0
  %1980 = vmatprep.mubr.bf16.mxu0 0
  %1981 = vmatmul.mubr.bf16.gmra.mxu0 %v1920
  %v1982 = vpop.f32.mrf.mxu0
  %v1983 = vadd.f32 0.0, %v1982
  %v1984 = vpop.f32.mrf.mxu0
  %v1985 = vpop.f32.mrf.mxu0
  %v1986 = vadd.f32 0.0, %v1985
  %v1987 = vpop.f32.mrf.mxu0
  %1988 = vmatprep.mubr.bf16.mxu0 0
  %1989 = vmatmul.mubr.bf16.gmra.mxu0 %v1923
  %v1990 = vpop.f32.mrf.mxu0
  %v1991 = vadd.f32 0.0, %v1990
  %v1992 = vpop.f32.mrf.mxu0
  %v1993 = vpop.f32.mrf.mxu0
  %v1994 = vadd.f32 0.0, %v1993
  %v1995 = vpop.f32.mrf.mxu0
  %1996 = vmatprep.mubr.bf16.mxu0 0
  %1997 = vmatmul.mubr.bf16.gmra.mxu0 %v1926
  %v1998 = vpop.f32.mrf.mxu0
  %v1999 = vadd.f32 0.0, %v1998
  %v2000 = vpop.f32.mrf.mxu0
  %v2001 = vpop.f32.mrf.mxu0
  %v2002 = vadd.f32 0.0, %v2001
  %v2003 = vpop.f32.mrf.mxu0
  %2004 = vmatprep.mubr.bf16.mxu0 0
  %2005 = vmatmul.mubr.bf16.gmra.mxu0 %v1929
  %v2006 = vpop.f32.mrf.mxu0
  %v2007 = vadd.f32 0.0, %v2006
  %v2008 = vpop.f32.mrf.mxu0
  %v2009 = vpop.f32.mrf.mxu0
  %v2010 = vadd.f32 0.0, %v2009
  %v2011 = vpop.f32.mrf.mxu0
  %2012 = vmatprep.mubr.bf16.mxu0 0
  %2013 = vmatmul.mubr.bf16.gmra.mxu0 %v1932
  %v2014 = vpop.f32.mrf.mxu0
  %v2015 = vadd.f32 0.0, %v2014
  %v2016 = vpop.f32.mrf.mxu0
  %v2017 = vpop.f32.mrf.mxu0
  %v2018 = vadd.f32 0.0, %v2017
  %v2019 = vpop.f32.mrf.mxu0
  %2020 = vmatprep.mubr.bf16.mxu0 0
  %2021 = vmatmul.mubr.bf16.gmra.mxu0 %v1935
  %v2022 = vpop.f32.mrf.mxu0
  %v2023 = vadd.f32 0.0, %v2022
  %v2024 = vpop.f32.mrf.mxu0
  %v2025 = vpop.f32.mrf.mxu0
  %v2026 = vadd.f32 0.0, %v2025
  %v2027 = vpop.f32.mrf.mxu0
  %2028 = vmatprep.mubr.bf16.mxu0 0
  %2029 = vmatmul.mubr.bf16.gmra.mxu0 %v1938
  %v2030 = vpop.f32.mrf.mxu0
  %v2031 = vadd.f32 0.0, %v2030
  %v2032 = vpop.f32.mrf.mxu0
  %v2033 = vpop.f32.mrf.mxu0
  %v2034 = vadd.f32 0.0, %v2033
  %v2035 = vpop.f32.mrf.mxu0
  %2036 = vdwg.mxu0
  %v2037 = vadd.f32 %v1760, %v1975
  %v2038 = vadd.f32 %v1761, %v1978
  %v2039 = vadd.f32 %v1762, %v1983
  %v2040 = vadd.f32 %v1763, %v1986
  %v2041 = vadd.f32 %v1764, %v1991
  %v2042 = vadd.f32 %v1765, %v1994
  %v2043 = vadd.f32 %v1766, %v1999
  %v2044 = vadd.f32 %v1767, %v2002
  %v2045 = vadd.f32 %v1768, %v2007
  %v2046 = vadd.f32 %v1769, %v2010
  %v2047 = vadd.f32 %v1770, %v2015
  %v2048 = vadd.f32 %v1771, %v2018
  %v2049 = vadd.f32 %v1772, %v2023
  %v2050 = vadd.f32 %v1773, %v2026
  %v2051 = vadd.f32 %v1774, %v2031
  %v2052 = vadd.f32 %v1775, %v2034
  %s2053 = scalar_lea.vmem %s1, 896
  %v2054 = vld [vmem:[%s2053] sm:$0xff]
  %v2055 = vld [vmem:[%s2053 + $0x8] sm:$0xff]
  %v2056 = vld [vmem:[%s2053 + $0x10] sm:$0xff]
  %v2057 = vld [vmem:[%s2053 + $0x18] sm:$0xff]
  %v2058 = vld [vmem:[%s2053 + $0x20] sm:$0xff]
  %v2059 = vld [vmem:[%s2053 + $0x28] sm:$0xff]
  %v2060 = vld [vmem:[%s2053 + $0x30] sm:$0xff]
  %v2061 = vld [vmem:[%s2053 + $0x38] sm:$0xff]
  %v2062 = vld [vmem:[%s2053 + $0x40] sm:$0xff]
  %v2063 = vld [vmem:[%s2053 + $0x48] sm:$0xff]
  %v2064 = vld [vmem:[%s2053 + $0x50] sm:$0xff]
  %v2065 = vld [vmem:[%s2053 + $0x58] sm:$0xff]
  %v2066 = vld [vmem:[%s2053 + $0x60] sm:$0xff]
  %v2067 = vld [vmem:[%s2053 + $0x68] sm:$0xff]
  %v2068 = vld [vmem:[%s2053 + $0x70] sm:$0xff]
  %v2069 = vld [vmem:[%s2053 + $0x78] sm:$0xff]
  %2071 = vset.pattern.permute.xlu0 0
  %2072 = vperm.xlu0 %2071, %v2054
  %v2073 = vpop.permute.xlu0 %2072
  %2076 = vset.pattern.permute.xlu0 0
  %2077 = vperm.xlu0 %2076, %v2055
  %v2078 = vpop.permute.xlu0 %2077
  %2081 = vset.pattern.permute.xlu0 0
  %2082 = vperm.xlu0 %2081, %v2056
  %v2083 = vpop.permute.xlu0 %2082
  %2086 = vset.pattern.permute.xlu0 0
  %2087 = vperm.xlu0 %2086, %v2057
  %v2088 = vpop.permute.xlu0 %2087
  %2091 = vset.pattern.permute.xlu0 0
  %2092 = vperm.xlu0 %2091, %v2058
  %v2093 = vpop.permute.xlu0 %2092
  %2096 = vset.pattern.permute.xlu0 0
  %2097 = vperm.xlu0 %2096, %v2059
  %v2098 = vpop.permute.xlu0 %2097
  %2101 = vset.pattern.permute.xlu0 0
  %2102 = vperm.xlu0 %2101, %v2060
  %v2103 = vpop.permute.xlu0 %2102
  %2106 = vset.pattern.permute.xlu0 0
  %2107 = vperm.xlu0 %2106, %v2061
  %v2108 = vpop.permute.xlu0 %2107
  %2111 = vset.pattern.permute.xlu0 0
  %2112 = vperm.xlu0 %2111, %v2062
  %v2113 = vpop.permute.xlu0 %2112
  %2116 = vset.pattern.permute.xlu0 0
  %2117 = vperm.xlu0 %2116, %v2063
  %v2118 = vpop.permute.xlu0 %2117
  %2121 = vset.pattern.permute.xlu0 0
  %2122 = vperm.xlu0 %2121, %v2064
  %v2123 = vpop.permute.xlu0 %2122
  %2126 = vset.pattern.permute.xlu0 0
  %2127 = vperm.xlu0 %2126, %v2065
  %v2128 = vpop.permute.xlu0 %2127
  %2131 = vset.pattern.permute.xlu0 0
  %2132 = vperm.xlu0 %2131, %v2066
  %v2133 = vpop.permute.xlu0 %2132
  %2136 = vset.pattern.permute.xlu0 0
  %2137 = vperm.xlu0 %2136, %v2067
  %v2138 = vpop.permute.xlu0 %2137
  %2141 = vset.pattern.permute.xlu0 0
  %2142 = vperm.xlu0 %2141, %v2068
  %v2143 = vpop.permute.xlu0 %2142
  %2146 = vset.pattern.permute.xlu0 0
  %2147 = vperm.xlu0 %2146, %v2069
  %v2148 = vpop.permute.xlu0 %2147
  %v2150 = vmul.f32 %v28, %v2073
  %v2151 = vmul.f32 %v29, %v2078
  %v2152 = vmul.f32 %v30, %v2083
  %v2153 = vmul.f32 %v31, %v2088
  %v2154 = vmul.f32 %v32, %v2093
  %v2155 = vmul.f32 %v33, %v2098
  %v2156 = vmul.f32 %v34, %v2103
  %v2157 = vmul.f32 %v35, %v2108
  %v2158 = vmul.f32 %v36, %v2113
  %v2159 = vmul.f32 %v37, %v2118
  %v2160 = vmul.f32 %v38, %v2123
  %v2161 = vmul.f32 %v39, %v2128
  %v2162 = vmul.f32 %v40, %v2133
  %v2163 = vmul.f32 %v41, %v2138
  %v2164 = vmul.f32 %v42, %v2143
  %v2165 = vmul.f32 %v2148, 0.0
  %v2166 = vpack.c.bf16 %v2151, %v2150
  %v2167 = vpack.c.bf16 %v2153, %v2152
  %v2168 = vpack.c.bf16 %v2155, %v2154
  %v2169 = vpack.c.bf16 %v2157, %v2156
  %v2170 = vpack.c.bf16 %v2159, %v2158
  %v2171 = vpack.c.bf16 %v2161, %v2160
  %v2172 = vpack.c.bf16 %v2163, %v2162
  %v2173 = vpack.c.bf16 %v2165, %v2164
  %s2174 = scalar_lea.vmem %s2, 112
  %v2175 = vld [vmem:[%s2174] sm:$0xf]
  %v2176 = vld [vmem:[%s2174 + $0x4] sm:$0xf]
  %v2177 = vld [vmem:[%s2174 + $0x8] sm:$0xf]
  %v2178 = vld [vmem:[%s2174 + $0xc] sm:$0xf]
  %v2183 = vunpack.c.l.b16 %v2175
  %v2184 = vunpack.c.l.b16 %v2176
  %v2185 = vunpack.c.l.b16 %v2177
  %v2186 = vunpack.c.l.b16 %v2178
  %v2187 = vpack.c.b16 %v2184, %v2183
  %v2188 = vpack.c.b16 %v2186, %v2185
  %v2192 = vsel %vm366, %v2166, 0
  %v2195 = vsel %vm366, %v2167, 0
  %v2198 = vsel %vm366, %v2168, 0
  %v2201 = vsel %vm366, %v2169, 0
  %v2204 = vsel %vm366, %v2170, 0
  %v2207 = vsel %vm366, %v2171, 0
  %v2210 = vsel %vm366, %v2172, 0
  %v2213 = vsel %vm366, %v2173, 0
  %2215 = vmatprep.subr.bf16.mxu0 0
  %2216 = vmatpush1.bf16.msra.mxu0 0
  %2217 = vmatprep.subr.bf16.mxu0 0
  %2218 = vmatpush1.bf16.msra.mxu0 0
  %2219 = vmatprep.subr.bf16.mxu0 0
  %2220 = vmatpush1.bf16.msra.mxu0 0
  %2221 = vmatprep.subr.bf16.mxu0 0
  %2222 = vmatpush1.bf16.msra.mxu0 0
  %2223 = vmatprep.subr.bf16.mxu0 0
  %2224 = vmatpush1.bf16.msra.mxu0 0
  %2225 = vmatprep.subr.bf16.mxu0 0
  %2226 = vmatpush1.bf16.msra.mxu0 0
  %2227 = vmatprep.subr.bf16.mxu0 0
  %2228 = vmatpush1.bf16.msra.mxu0 %v2188
  %2229 = vmatprep.subr.bf16.mxu0 0
  %2230 = vmatpush1.bf16.msra.mxu0 %v2187
  %2231 = vmatprep.subr.bf16.mxu0 0
  %2232 = vmatpush2.bf16.msra.mxu0 0
  %2233 = vmatprep.subr.bf16.mxu0 0
  %2234 = vmatpush2.bf16.msra.mxu0 0
  %2235 = vmatprep.subr.bf16.mxu0 0
  %2236 = vmatpush2.bf16.msra.mxu0 0
  %2237 = vmatprep.subr.bf16.mxu0 0
  %2238 = vmatpush2.bf16.msra.mxu0 0
  %2239 = vmatprep.subr.bf16.mxu0 0
  %2240 = vmatpush2.bf16.msra.mxu0 0
  %2241 = vmatprep.subr.bf16.mxu0 0
  %2242 = vmatpush2.bf16.msra.mxu0 0
  %2243 = vmatprep.subr.bf16.mxu0 0
  %2244 = vmatpush2.bf16.msra.mxu0 0
  %2245 = vmatprep.subr.bf16.mxu0 0
  %2246 = vmatpush2.bf16.msra.mxu0 0
  %2247 = vmatprep.mubr.bf16.mxu0 0
  %2248 = vmatmul.mubr.bf16.gmra.mxu0 %v2192
  %v2249 = vpop.f32.mrf.mxu0
  %v2250 = vadd.f32 0.0, %v2249
  %v2251 = vpop.f32.mrf.mxu0
  %v2252 = vpop.f32.mrf.mxu0
  %v2253 = vadd.f32 0.0, %v2252
  %v2254 = vpop.f32.mrf.mxu0
  %2255 = vmatprep.mubr.bf16.mxu0 0
  %2256 = vmatmul.mubr.bf16.gmra.mxu0 %v2195
  %v2257 = vpop.f32.mrf.mxu0
  %v2258 = vadd.f32 0.0, %v2257
  %v2259 = vpop.f32.mrf.mxu0
  %v2260 = vpop.f32.mrf.mxu0
  %v2261 = vadd.f32 0.0, %v2260
  %v2262 = vpop.f32.mrf.mxu0
  %2263 = vmatprep.mubr.bf16.mxu0 0
  %2264 = vmatmul.mubr.bf16.gmra.mxu0 %v2198
  %v2265 = vpop.f32.mrf.mxu0
  %v2266 = vadd.f32 0.0, %v2265
  %v2267 = vpop.f32.mrf.mxu0
  %v2268 = vpop.f32.mrf.mxu0
  %v2269 = vadd.f32 0.0, %v2268
  %v2270 = vpop.f32.mrf.mxu0
  %2271 = vmatprep.mubr.bf16.mxu0 0
  %2272 = vmatmul.mubr.bf16.gmra.mxu0 %v2201
  %v2273 = vpop.f32.mrf.mxu0
  %v2274 = vadd.f32 0.0, %v2273
  %v2275 = vpop.f32.mrf.mxu0
  %v2276 = vpop.f32.mrf.mxu0
  %v2277 = vadd.f32 0.0, %v2276
  %v2278 = vpop.f32.mrf.mxu0
  %2279 = vmatprep.mubr.bf16.mxu0 0
  %2280 = vmatmul.mubr.bf16.gmra.mxu0 %v2204
  %v2281 = vpop.f32.mrf.mxu0
  %v2282 = vadd.f32 0.0, %v2281
  %v2283 = vpop.f32.mrf.mxu0
  %v2284 = vpop.f32.mrf.mxu0
  %v2285 = vadd.f32 0.0, %v2284
  %v2286 = vpop.f32.mrf.mxu0
  %2287 = vmatprep.mubr.bf16.mxu0 0
  %2288 = vmatmul.mubr.bf16.gmra.mxu0 %v2207
  %v2289 = vpop.f32.mrf.mxu0
  %v2290 = vadd.f32 0.0, %v2289
  %v2291 = vpop.f32.mrf.mxu0
  %v2292 = vpop.f32.mrf.mxu0
  %v2293 = vadd.f32 0.0, %v2292
  %v2294 = vpop.f32.mrf.mxu0
  %2295 = vmatprep.mubr.bf16.mxu0 0
  %2296 = vmatmul.mubr.bf16.gmra.mxu0 %v2210
  %v2297 = vpop.f32.mrf.mxu0
  %v2298 = vadd.f32 0.0, %v2297
  %v2299 = vpop.f32.mrf.mxu0
  %v2300 = vpop.f32.mrf.mxu0
  %v2301 = vadd.f32 0.0, %v2300
  %v2302 = vpop.f32.mrf.mxu0
  %2303 = vmatprep.mubr.bf16.mxu0 0
  %2304 = vmatmul.mubr.bf16.gmra.mxu0 %v2213
  %v2305 = vpop.f32.mrf.mxu0
  %v2306 = vadd.f32 0.0, %v2305
  %v2307 = vpop.f32.mrf.mxu0
  %v2308 = vpop.f32.mrf.mxu0
  %v2309 = vadd.f32 0.0, %v2308
  %v2310 = vpop.f32.mrf.mxu0
  %2311 = vdwg.mxu0
  %v2312 = vadd.f32 %v2037, %v2250
  %v2313 = vadd.f32 %v2038, %v2253
  %v2314 = vadd.f32 %v2039, %v2258
  %v2315 = vadd.f32 %v2040, %v2261
  %v2316 = vadd.f32 %v2041, %v2266
  %v2317 = vadd.f32 %v2042, %v2269
  %v2318 = vadd.f32 %v2043, %v2274
  %v2319 = vadd.f32 %v2044, %v2277
  %v2320 = vadd.f32 %v2045, %v2282
  %v2321 = vadd.f32 %v2046, %v2285
  %v2322 = vadd.f32 %v2047, %v2290
  %v2323 = vadd.f32 %v2048, %v2293
  %v2324 = vadd.f32 %v2049, %v2298
  %v2325 = vadd.f32 %v2050, %v2301
  %v2326 = vadd.f32 %v2051, %v2306
  %v2327 = vadd.f32 %v2052, %v2309
  %s2328 = scalar_lea.vmem %s1, 1024
  %v2329 = vld [vmem:[%s2328] sm:$0xff]
  %v2330 = vld [vmem:[%s2328 + $0x8] sm:$0xff]
  %v2331 = vld [vmem:[%s2328 + $0x10] sm:$0xff]
  %v2332 = vld [vmem:[%s2328 + $0x18] sm:$0xff]
  %v2333 = vld [vmem:[%s2328 + $0x20] sm:$0xff]
  %v2334 = vld [vmem:[%s2328 + $0x28] sm:$0xff]
  %v2335 = vld [vmem:[%s2328 + $0x30] sm:$0xff]
  %v2336 = vld [vmem:[%s2328 + $0x38] sm:$0xff]
  %v2337 = vld [vmem:[%s2328 + $0x40] sm:$0xff]
  %v2338 = vld [vmem:[%s2328 + $0x48] sm:$0xff]
  %v2339 = vld [vmem:[%s2328 + $0x50] sm:$0xff]
  %v2340 = vld [vmem:[%s2328 + $0x58] sm:$0xff]
  %v2341 = vld [vmem:[%s2328 + $0x60] sm:$0xff]
  %v2342 = vld [vmem:[%s2328 + $0x68] sm:$0xff]
  %v2343 = vld [vmem:[%s2328 + $0x70] sm:$0xff]
  %v2344 = vld [vmem:[%s2328 + $0x78] sm:$0xff]
  %2346 = vset.pattern.permute.xlu0 0
  %2347 = vperm.xlu0 %2346, %v2329
  %v2348 = vpop.permute.xlu0 %2347
  %2351 = vset.pattern.permute.xlu0 0
  %2352 = vperm.xlu0 %2351, %v2330
  %v2353 = vpop.permute.xlu0 %2352
  %2356 = vset.pattern.permute.xlu0 0
  %2357 = vperm.xlu0 %2356, %v2331
  %v2358 = vpop.permute.xlu0 %2357
  %2361 = vset.pattern.permute.xlu0 0
  %2362 = vperm.xlu0 %2361, %v2332
  %v2363 = vpop.permute.xlu0 %2362
  %2366 = vset.pattern.permute.xlu0 0
  %2367 = vperm.xlu0 %2366, %v2333
  %v2368 = vpop.permute.xlu0 %2367
  %2371 = vset.pattern.permute.xlu0 0
  %2372 = vperm.xlu0 %2371, %v2334
  %v2373 = vpop.permute.xlu0 %2372
  %2376 = vset.pattern.permute.xlu0 0
  %2377 = vperm.xlu0 %2376, %v2335
  %v2378 = vpop.permute.xlu0 %2377
  %2381 = vset.pattern.permute.xlu0 0
  %2382 = vperm.xlu0 %2381, %v2336
  %v2383 = vpop.permute.xlu0 %2382
  %2386 = vset.pattern.permute.xlu0 0
  %2387 = vperm.xlu0 %2386, %v2337
  %v2388 = vpop.permute.xlu0 %2387
  %2391 = vset.pattern.permute.xlu0 0
  %2392 = vperm.xlu0 %2391, %v2338
  %v2393 = vpop.permute.xlu0 %2392
  %2396 = vset.pattern.permute.xlu0 0
  %2397 = vperm.xlu0 %2396, %v2339
  %v2398 = vpop.permute.xlu0 %2397
  %2401 = vset.pattern.permute.xlu0 0
  %2402 = vperm.xlu0 %2401, %v2340
  %v2403 = vpop.permute.xlu0 %2402
  %2406 = vset.pattern.permute.xlu0 0
  %2407 = vperm.xlu0 %2406, %v2341
  %v2408 = vpop.permute.xlu0 %2407
  %2411 = vset.pattern.permute.xlu0 0
  %2412 = vperm.xlu0 %2411, %v2342
  %v2413 = vpop.permute.xlu0 %2412
  %2416 = vset.pattern.permute.xlu0 0
  %2417 = vperm.xlu0 %2416, %v2343
  %v2418 = vpop.permute.xlu0 %2417
  %2421 = vset.pattern.permute.xlu0 0
  %2422 = vperm.xlu0 %2421, %v2344
  %v2423 = vpop.permute.xlu0 %2422
  %v2425 = vmul.f32 %v627, %v2348
  %v2426 = vmul.f32 %v629, %v2353
  %v2427 = vmul.f32 %v631, %v2358
  %v2428 = vmul.f32 %v633, %v2363
  %v2429 = vmul.f32 %v635, %v2368
  %v2430 = vmul.f32 %v637, %v2373
  %v2431 = vmul.f32 %v639, %v2378
  %v2432 = vmul.f32 %v641, %v2383
  %v2433 = vmul.f32 %v643, %v2388
  %v2434 = vmul.f32 %v645, %v2393
  %v2435 = vmul.f32 %v647, %v2398
  %v2436 = vmul.f32 %v649, %v2403
  %v2437 = vmul.f32 %v651, %v2408
  %v2438 = vmul.f32 %v653, %v2413
  %v2439 = vmul.f32 %v1500, %v2418
  %v2440 = vmul.f32 %v2423, 0.0
  %v2441 = vpack.c.bf16 %v2426, %v2425
  %v2442 = vpack.c.bf16 %v2428, %v2427
  %v2443 = vpack.c.bf16 %v2430, %v2429
  %v2444 = vpack.c.bf16 %v2432, %v2431
  %v2445 = vpack.c.bf16 %v2434, %v2433
  %v2446 = vpack.c.bf16 %v2436, %v2435
  %v2447 = vpack.c.bf16 %v2438, %v2437
  %v2448 = vpack.c.bf16 %v2440, %v2439
  %s2449 = scalar_lea.vmem %s2, 128
  %v2450 = vld [vmem:[%s2449] sm:$0xf]
  %v2451 = vld [vmem:[%s2449 + $0x4] sm:$0xf]
  %v2452 = vld [vmem:[%s2449 + $0x8] sm:$0xf]
  %v2453 = vld [vmem:[%s2449 + $0xc] sm:$0xf]
  %v2458 = vunpack.c.l.b16 %v2450
  %v2459 = vunpack.c.l.b16 %v2451
  %v2460 = vunpack.c.l.b16 %v2452
  %v2461 = vunpack.c.l.b16 %v2453
  %v2462 = vpack.c.b16 %v2459, %v2458
  %v2463 = vpack.c.b16 %v2461, %v2460
  %v2467 = vsel %vm366, %v2441, 0
  %v2470 = vsel %vm366, %v2442, 0
  %v2473 = vsel %vm366, %v2443, 0
  %v2476 = vsel %vm366, %v2444, 0
  %v2479 = vsel %vm366, %v2445, 0
  %v2482 = vsel %vm366, %v2446, 0
  %v2485 = vsel %vm366, %v2447, 0
  %v2488 = vsel %vm366, %v2448, 0
  %2490 = vmatprep.subr.bf16.mxu0 0
  %2491 = vmatpush1.bf16.msra.mxu0 0
  %2492 = vmatprep.subr.bf16.mxu0 0
  %2493 = vmatpush1.bf16.msra.mxu0 0
  %2494 = vmatprep.subr.bf16.mxu0 0
  %2495 = vmatpush1.bf16.msra.mxu0 0
  %2496 = vmatprep.subr.bf16.mxu0 0
  %2497 = vmatpush1.bf16.msra.mxu0 0
  %2498 = vmatprep.subr.bf16.mxu0 0
  %2499 = vmatpush1.bf16.msra.mxu0 0
  %2500 = vmatprep.subr.bf16.mxu0 0
  %2501 = vmatpush1.bf16.msra.mxu0 0
  %2502 = vmatprep.subr.bf16.mxu0 0
  %2503 = vmatpush1.bf16.msra.mxu0 %v2463
  %2504 = vmatprep.subr.bf16.mxu0 0
  %2505 = vmatpush1.bf16.msra.mxu0 %v2462
  %2506 = vmatprep.subr.bf16.mxu0 0
  %2507 = vmatpush2.bf16.msra.mxu0 0
  %2508 = vmatprep.subr.bf16.mxu0 0
  %2509 = vmatpush2.bf16.msra.mxu0 0
  %2510 = vmatprep.subr.bf16.mxu0 0
  %2511 = vmatpush2.bf16.msra.mxu0 0
  %2512 = vmatprep.subr.bf16.mxu0 0
  %2513 = vmatpush2.bf16.msra.mxu0 0
  %2514 = vmatprep.subr.bf16.mxu0 0
  %2515 = vmatpush2.bf16.msra.mxu0 0
  %2516 = vmatprep.subr.bf16.mxu0 0
  %2517 = vmatpush2.bf16.msra.mxu0 0
  %2518 = vmatprep.subr.bf16.mxu0 0
  %2519 = vmatpush2.bf16.msra.mxu0 0
  %2520 = vmatprep.subr.bf16.mxu0 0
  %2521 = vmatpush2.bf16.msra.mxu0 0
  %2522 = vmatprep.mubr.bf16.mxu0 0
  %2523 = vmatmul.mubr.bf16.gmra.mxu0 %v2467
  %v2524 = vpop.f32.mrf.mxu0
  %v2525 = vadd.f32 0.0, %v2524
  %v2526 = vpop.f32.mrf.mxu0
  %v2527 = vpop.f32.mrf.mxu0
  %v2528 = vadd.f32 0.0, %v2527
  %v2529 = vpop.f32.mrf.mxu0
  %2530 = vmatprep.mubr.bf16.mxu0 0
  %2531 = vmatmul.mubr.bf16.gmra.mxu0 %v2470
  %v2532 = vpop.f32.mrf.mxu0
  %v2533 = vadd.f32 0.0, %v2532
  %v2534 = vpop.f32.mrf.mxu0
  %v2535 = vpop.f32.mrf.mxu0
  %v2536 = vadd.f32 0.0, %v2535
  %v2537 = vpop.f32.mrf.mxu0
  %2538 = vmatprep.mubr.bf16.mxu0 0
  %2539 = vmatmul.mubr.bf16.gmra.mxu0 %v2473
  %v2540 = vpop.f32.mrf.mxu0
  %v2541 = vadd.f32 0.0, %v2540
  %v2542 = vpop.f32.mrf.mxu0
  %v2543 = vpop.f32.mrf.mxu0
  %v2544 = vadd.f32 0.0, %v2543
  %v2545 = vpop.f32.mrf.mxu0
  %2546 = vmatprep.mubr.bf16.mxu0 0
  %2547 = vmatmul.mubr.bf16.gmra.mxu0 %v2476
  %v2548 = vpop.f32.mrf.mxu0
  %v2549 = vadd.f32 0.0, %v2548
  %v2550 = vpop.f32.mrf.mxu0
  %v2551 = vpop.f32.mrf.mxu0
  %v2552 = vadd.f32 0.0, %v2551
  %v2553 = vpop.f32.mrf.mxu0
  %2554 = vmatprep.mubr.bf16.mxu0 0
  %2555 = vmatmul.mubr.bf16.gmra.mxu0 %v2479
  %v2556 = vpop.f32.mrf.mxu0
  %v2557 = vadd.f32 0.0, %v2556
  %v2558 = vpop.f32.mrf.mxu0
  %v2559 = vpop.f32.mrf.mxu0
  %v2560 = vadd.f32 0.0, %v2559
  %v2561 = vpop.f32.mrf.mxu0
  %2562 = vmatprep.mubr.bf16.mxu0 0
  %2563 = vmatmul.mubr.bf16.gmra.mxu0 %v2482
  %v2564 = vpop.f32.mrf.mxu0
  %v2565 = vadd.f32 0.0, %v2564
  %v2566 = vpop.f32.mrf.mxu0
  %v2567 = vpop.f32.mrf.mxu0
  %v2568 = vadd.f32 0.0, %v2567
  %v2569 = vpop.f32.mrf.mxu0
  %2570 = vmatprep.mubr.bf16.mxu0 0
  %2571 = vmatmul.mubr.bf16.gmra.mxu0 %v2485
  %v2572 = vpop.f32.mrf.mxu0
  %v2573 = vadd.f32 0.0, %v2572
  %v2574 = vpop.f32.mrf.mxu0
  %v2575 = vpop.f32.mrf.mxu0
  %v2576 = vadd.f32 0.0, %v2575
  %v2577 = vpop.f32.mrf.mxu0
  %2578 = vmatprep.mubr.bf16.mxu0 0
  %2579 = vmatmul.mubr.bf16.gmra.mxu0 %v2488
  %v2580 = vpop.f32.mrf.mxu0
  %v2581 = vadd.f32 0.0, %v2580
  %v2582 = vpop.f32.mrf.mxu0
  %v2583 = vpop.f32.mrf.mxu0
  %v2584 = vadd.f32 0.0, %v2583
  %v2585 = vpop.f32.mrf.mxu0
  %2586 = vdwg.mxu0
  %v2587 = vadd.f32 %v2312, %v2525
  %v2588 = vadd.f32 %v2313, %v2528
  %v2589 = vadd.f32 %v2314, %v2533
  %v2590 = vadd.f32 %v2315, %v2536
  %v2591 = vadd.f32 %v2316, %v2541
  %v2592 = vadd.f32 %v2317, %v2544
  %v2593 = vadd.f32 %v2318, %v2549
  %v2594 = vadd.f32 %v2319, %v2552
  %v2595 = vadd.f32 %v2320, %v2557
  %v2596 = vadd.f32 %v2321, %v2560
  %v2597 = vadd.f32 %v2322, %v2565
  %v2598 = vadd.f32 %v2323, %v2568
  %v2599 = vadd.f32 %v2324, %v2573
  %v2600 = vadd.f32 %v2325, %v2576
  %v2601 = vadd.f32 %v2326, %v2581
  %v2602 = vadd.f32 %v2327, %v2584
  %v2603 = vld [vmem:[%s3] sm:$0x1]
  %v2605 = vlaneseq
  %v2606 = vshrl.u32 %v2605, 7
  %v2607 = vsub.s32 0, %v2606
  %v2608 = vrot.slane %v2603, %v2607
  %v2610 = vadd.f32 %v2587, %v2608
  %v2611 = vadd.f32 %v2588, %v2608
  %v2612 = vadd.f32 %v2589, %v2608
  %v2613 = vadd.f32 %v2590, %v2608
  %v2614 = vadd.f32 %v2591, %v2608
  %v2615 = vadd.f32 %v2592, %v2608
  %v2616 = vadd.f32 %v2593, %v2608
  %v2617 = vadd.f32 %v2594, %v2608
  %v2618 = vadd.f32 %v2595, %v2608
  %v2619 = vadd.f32 %v2596, %v2608
  %v2620 = vadd.f32 %v2597, %v2608
  %v2621 = vadd.f32 %v2598, %v2608
  %v2622 = vadd.f32 %v2599, %v2608
  %v2623 = vadd.f32 %v2600, %v2608
  %v2624 = vadd.f32 %v2601, %v2608
  %v2625 = vadd.f32 %v2602, %v2608
  %v2626 = vsel %vm366, %v2610, 0.0
  %v2627 = vsel %vm366, %v2611, 0.0
  %v2628 = vadd.f32 %v2626, %v2627
  %v2629 = vsel %vm366, %v2612, 0.0
  %v2630 = vadd.f32 %v2628, %v2629
  %v2631 = vsel %vm366, %v2613, 0.0
  %v2632 = vadd.f32 %v2630, %v2631
  %v2633 = vsel %vm366, %v2614, 0.0
  %v2634 = vadd.f32 %v2632, %v2633
  %v2635 = vsel %vm366, %v2615, 0.0
  %v2636 = vadd.f32 %v2634, %v2635
  %v2637 = vsel %vm366, %v2616, 0.0
  %v2638 = vadd.f32 %v2636, %v2637
  %v2639 = vsel %vm366, %v2617, 0.0
  %v2640 = vadd.f32 %v2638, %v2639
  %v2641 = vsel %vm366, %v2618, 0.0
  %v2642 = vadd.f32 %v2640, %v2641
  %v2643 = vsel %vm366, %v2619, 0.0
  %v2644 = vadd.f32 %v2642, %v2643
  %v2645 = vsel %vm366, %v2620, 0.0
  %v2646 = vadd.f32 %v2644, %v2645
  %v2647 = vsel %vm366, %v2621, 0.0
  %v2648 = vadd.f32 %v2646, %v2647
  %v2649 = vsel %vm366, %v2622, 0.0
  %v2650 = vadd.f32 %v2648, %v2649
  %v2651 = vsel %vm366, %v2623, 0.0
  %v2652 = vadd.f32 %v2650, %v2651
  %v2653 = vsel %vm366, %v2624, 0.0
  %v2654 = vadd.f32 %v2652, %v2653
  %v2655 = vsel %vm366, %v2625, 0.0
  %v2656 = vadd.f32 %v2654, %v2655
  %v2657 = vrot.slane %v2656, 4
  %v2658 = vadd.f32 %v2656, %v2657
  %v2659 = vrot.slane %v2658, 2
  %v2660 = vadd.f32 %v2658, %v2659
  %v2661 = vrot.slane %v2660, 1
  %v2662 = vadd.f32 %v2660, %v2661
  %v2663 = vrcp.pop 128.0
  %v2664 = vmul.f32 %v2662, %v2663
  %v2665 = vsub.f32 %v2610, %v2664
  %v2666 = vsub.f32 %v2611, %v2664
  %v2667 = vsub.f32 %v2612, %v2664
  %v2668 = vsub.f32 %v2613, %v2664
  %v2669 = vsub.f32 %v2614, %v2664
  %v2670 = vsub.f32 %v2615, %v2664
  %v2671 = vsub.f32 %v2616, %v2664
  %v2672 = vsub.f32 %v2617, %v2664
  %v2673 = vsub.f32 %v2618, %v2664
  %v2674 = vsub.f32 %v2619, %v2664
  %v2675 = vsub.f32 %v2620, %v2664
  %v2676 = vsub.f32 %v2621, %v2664
  %v2677 = vsub.f32 %v2622, %v2664
  %v2678 = vsub.f32 %v2623, %v2664
  %v2679 = vsub.f32 %v2624, %v2664
  %v2680 = vsub.f32 %v2625, %v2664
  %v2681 = vmul.f32 %v2665, %v2665
  %v2682 = vmul.f32 %v2666, %v2666
  %v2683 = vmul.f32 %v2667, %v2667
  %v2684 = vmul.f32 %v2668, %v2668
  %v2685 = vmul.f32 %v2669, %v2669
  %v2686 = vmul.f32 %v2670, %v2670
  %v2687 = vmul.f32 %v2671, %v2671
  %v2688 = vmul.f32 %v2672, %v2672
  %v2689 = vmul.f32 %v2673, %v2673
  %v2690 = vmul.f32 %v2674, %v2674
  %v2691 = vmul.f32 %v2675, %v2675
  %v2692 = vmul.f32 %v2676, %v2676
  %v2693 = vmul.f32 %v2677, %v2677
  %v2694 = vmul.f32 %v2678, %v2678
  %v2695 = vmul.f32 %v2679, %v2679
  %v2696 = vmul.f32 %v2680, %v2680
  %v2697 = vsel %vm366, %v2681, 0.0
  %v2698 = vsel %vm366, %v2682, 0.0
  %v2699 = vadd.f32 %v2697, %v2698
  %v2700 = vsel %vm366, %v2683, 0.0
  %v2701 = vadd.f32 %v2699, %v2700
  %v2702 = vsel %vm366, %v2684, 0.0
  %v2703 = vadd.f32 %v2701, %v2702
  %v2704 = vsel %vm366, %v2685, 0.0
  %v2705 = vadd.f32 %v2703, %v2704
  %v2706 = vsel %vm366, %v2686, 0.0
  %v2707 = vadd.f32 %v2705, %v2706
  %v2708 = vsel %vm366, %v2687, 0.0
  %v2709 = vadd.f32 %v2707, %v2708
  %v2710 = vsel %vm366, %v2688, 0.0
  %v2711 = vadd.f32 %v2709, %v2710
  %v2712 = vsel %vm366, %v2689, 0.0
  %v2713 = vadd.f32 %v2711, %v2712
  %v2714 = vsel %vm366, %v2690, 0.0
  %v2715 = vadd.f32 %v2713, %v2714
  %v2716 = vsel %vm366, %v2691, 0.0
  %v2717 = vadd.f32 %v2715, %v2716
  %v2718 = vsel %vm366, %v2692, 0.0
  %v2719 = vadd.f32 %v2717, %v2718
  %v2720 = vsel %vm366, %v2693, 0.0
  %v2721 = vadd.f32 %v2719, %v2720
  %v2722 = vsel %vm366, %v2694, 0.0
  %v2723 = vadd.f32 %v2721, %v2722
  %v2724 = vsel %vm366, %v2695, 0.0
  %v2725 = vadd.f32 %v2723, %v2724
  %v2726 = vsel %vm366, %v2696, 0.0
  %v2727 = vadd.f32 %v2725, %v2726
  %v2728 = vrot.slane %v2727, 4
  %v2729 = vadd.f32 %v2727, %v2728
  %v2730 = vrot.slane %v2729, 2
  %v2731 = vadd.f32 %v2729, %v2730
  %v2732 = vrot.slane %v2731, 1
  %v2733 = vadd.f32 %v2731, %v2732
  %v2734 = vmul.f32 %v2733, %v2663
  %v2735 = vadd.f32 %v2734, 1e-05
  %v2736 = vrsqrt.pop %v2735
  %v2737 = vmul.f32 %v2665, %v2736
  %v2738 = vmul.f32 %v2666, %v2736
  %v2739 = vmul.f32 %v2667, %v2736
  %v2740 = vmul.f32 %v2668, %v2736
  %v2741 = vmul.f32 %v2669, %v2736
  %v2742 = vmul.f32 %v2670, %v2736
  %v2743 = vmul.f32 %v2671, %v2736
  %v2744 = vmul.f32 %v2672, %v2736
  %v2745 = vmul.f32 %v2673, %v2736
  %v2746 = vmul.f32 %v2674, %v2736
  %v2747 = vmul.f32 %v2675, %v2736
  %v2748 = vmul.f32 %v2676, %v2736
  %v2749 = vmul.f32 %v2677, %v2736
  %v2750 = vmul.f32 %v2678, %v2736
  %v2751 = vmul.f32 %v2679, %v2736
  %v2752 = vmul.f32 %v2680, %v2736
  %v2753 = vld [vmem:[%s4] sm:$0x1]
  %v2755 = vlaneseq
  %v2756 = vshrl.u32 %v2755, 7
  %v2757 = vsub.s32 0, %v2756
  %v2758 = vrot.slane %v2753, %v2757
  %v2760 = vmul.f32 %v2737, %v2758
  %v2761 = vmul.f32 %v2738, %v2758
  %v2762 = vmul.f32 %v2739, %v2758
  %v2763 = vmul.f32 %v2740, %v2758
  %v2764 = vmul.f32 %v2741, %v2758
  %v2765 = vmul.f32 %v2742, %v2758
  %v2766 = vmul.f32 %v2743, %v2758
  %v2767 = vmul.f32 %v2744, %v2758
  %v2768 = vmul.f32 %v2745, %v2758
  %v2769 = vmul.f32 %v2746, %v2758
  %v2770 = vmul.f32 %v2747, %v2758
  %v2771 = vmul.f32 %v2748, %v2758
  %v2772 = vmul.f32 %v2749, %v2758
  %v2773 = vmul.f32 %v2750, %v2758
  %v2774 = vmul.f32 %v2751, %v2758
  %v2775 = vmul.f32 %v2752, %v2758
  %v2776 = vld [vmem:[%s5] sm:$0x1]
  %v2778 = vlaneseq
  %v2779 = vshrl.u32 %v2778, 7
  %v2780 = vsub.s32 0, %v2779
  %v2781 = vrot.slane %v2776, %v2780
  %v2783 = vadd.f32 %v2760, %v2781
  %v2784 = vadd.f32 %v2761, %v2781
  %v2785 = vadd.f32 %v2762, %v2781
  %v2786 = vadd.f32 %v2763, %v2781
  %v2787 = vadd.f32 %v2764, %v2781
  %v2788 = vadd.f32 %v2765, %v2781
  %v2789 = vadd.f32 %v2766, %v2781
  %v2790 = vadd.f32 %v2767, %v2781
  %v2791 = vadd.f32 %v2768, %v2781
  %v2792 = vadd.f32 %v2769, %v2781
  %v2793 = vadd.f32 %v2770, %v2781
  %v2794 = vadd.f32 %v2771, %v2781
  %v2795 = vadd.f32 %v2772, %v2781
  %v2796 = vadd.f32 %v2773, %v2781
  %v2797 = vadd.f32 %v2774, %v2781
  %v2798 = vadd.f32 %v2775, %v2781
  %v2799 = vmax.f32 %v2783, 0.0
  %v2800 = vmax.f32 %v2784, 0.0
  %v2801 = vmax.f32 %v2785, 0.0
  %v2802 = vmax.f32 %v2786, 0.0
  %v2803 = vmax.f32 %v2787, 0.0
  %v2804 = vmax.f32 %v2788, 0.0
  %v2805 = vmax.f32 %v2789, 0.0
  %v2806 = vmax.f32 %v2790, 0.0
  %v2807 = vmax.f32 %v2791, 0.0
  %v2808 = vmax.f32 %v2792, 0.0
  %v2809 = vmax.f32 %v2793, 0.0
  %v2810 = vmax.f32 %v2794, 0.0
  %v2811 = vmax.f32 %v2795, 0.0
  %v2812 = vmax.f32 %v2796, 0.0
  %v2813 = vmax.f32 %v2797, 0.0
  %v2814 = vmax.f32 %v2798, 0.0
  %v2815 = vpack.c.bf16 %v28, %v27
  %v2816 = vpack.c.bf16 %v30, %v29
  %v2817 = vpack.c.bf16 %v32, %v31
  %v2818 = vpack.c.bf16 %v34, %v33
  %v2819 = vpack.c.bf16 %v36, %v35
  %v2820 = vpack.c.bf16 %v38, %v37
  %v2821 = vpack.c.bf16 %v40, %v39
  %v2822 = vpack.c.bf16 %v42, %v41
  %v2823 = vld [vmem:[%s6] sm:$0xf]
  %v2824 = vld [vmem:[%s6 + $0x4] sm:$0xf]
  %v2825 = vld [vmem:[%s6 + $0x8] sm:$0xf]
  %v2826 = vld [vmem:[%s6 + $0xc] sm:$0xf]
  %v2831 = vunpack.c.l.b16 %v2823
  %v2832 = vunpack.c.l.b16 %v2824
  %v2833 = vunpack.c.l.b16 %v2825
  %v2834 = vunpack.c.l.b16 %v2826
  %v2835 = vpack.c.b16 %v2832, %v2831
  %v2836 = vpack.c.b16 %v2834, %v2833
  %v2840 = vsel %vm366, %v2815, 0
  %v2843 = vsel %vm366, %v2816, 0
  %v2846 = vsel %vm366, %v2817, 0
  %v2849 = vsel %vm366, %v2818, 0
  %v2852 = vsel %vm366, %v2819, 0
  %v2855 = vsel %vm366, %v2820, 0
  %v2858 = vsel %vm366, %v2821, 0
  %v2861 = vsel %vm366, %v2822, 0
  %2863 = vmatprep.subr.bf16.mxu0 0
  %2864 = vmatpush1.bf16.msra.mxu0 0
  %2865 = vmatprep.subr.bf16.mxu0 0
  %2866 = vmatpush1.bf16.msra.mxu0 0
  %2867 = vmatprep.subr.bf16.mxu0 0
  %2868 = vmatpush1.bf16.msra.mxu0 0
  %2869 = vmatprep.subr.bf16.mxu0 0
  %2870 = vmatpush1.bf16.msra.mxu0 0
  %2871 = vmatprep.subr.bf16.mxu0 0
  %2872 = vmatpush1.bf16.msra.mxu0 0
  %2873 = vmatprep.subr.bf16.mxu0 0
  %2874 = vmatpush1.bf16.msra.mxu0 0
  %2875 = vmatprep.subr.bf16.mxu0 0
  %2876 = vmatpush1.bf16.msra.mxu0 %v2836
  %2877 = vmatprep.subr.bf16.mxu0 0
  %2878 = vmatpush1.bf16.msra.mxu0 %v2835
  %2879 = vmatprep.subr.bf16.mxu0 0
  %2880 = vmatpush2.bf16.msra.mxu0 0
  %2881 = vmatprep.subr.bf16.mxu0 0
  %2882 = vmatpush2.bf16.msra.mxu0 0
  %2883 = vmatprep.subr.bf16.mxu0 0
  %2884 = vmatpush2.bf16.msra.mxu0 0
  %2885 = vmatprep.subr.bf16.mxu0 0
  %2886 = vmatpush2.bf16.msra.mxu0 0
  %2887 = vmatprep.subr.bf16.mxu0 0
  %2888 = vmatpush2.bf16.msra.mxu0 0
  %2889 = vmatprep.subr.bf16.mxu0 0
  %2890 = vmatpush2.bf16.msra.mxu0 0
  %2891 = vmatprep.subr.bf16.mxu0 0
  %2892 = vmatpush2.bf16.msra.mxu0 0
  %2893 = vmatprep.subr.bf16.mxu0 0
  %2894 = vmatpush2.bf16.msra.mxu0 0
  %2895 = vmatprep.mubr.bf16.mxu0 0
  %2896 = vmatmul.mubr.bf16.gmra.mxu0 %v2840
  %v2897 = vpop.f32.mrf.mxu0
  %v2898 = vadd.f32 0.0, %v2897
  %v2899 = vpop.f32.mrf.mxu0
  %v2900 = vpop.f32.mrf.mxu0
  %v2901 = vadd.f32 0.0, %v2900
  %v2902 = vpop.f32.mrf.mxu0
  %2903 = vmatprep.mubr.bf16.mxu0 0
  %2904 = vmatmul.mubr.bf16.gmra.mxu0 %v2843
  %v2905 = vpop.f32.mrf.mxu0
  %v2906 = vadd.f32 0.0, %v2905
  %v2907 = vpop.f32.mrf.mxu0
  %v2908 = vpop.f32.mrf.mxu0
  %v2909 = vadd.f32 0.0, %v2908
  %v2910 = vpop.f32.mrf.mxu0
  %2911 = vmatprep.mubr.bf16.mxu0 0
  %2912 = vmatmul.mubr.bf16.gmra.mxu0 %v2846
  %v2913 = vpop.f32.mrf.mxu0
  %v2914 = vadd.f32 0.0, %v2913
  %v2915 = vpop.f32.mrf.mxu0
  %v2916 = vpop.f32.mrf.mxu0
  %v2917 = vadd.f32 0.0, %v2916
  %v2918 = vpop.f32.mrf.mxu0
  %2919 = vmatprep.mubr.bf16.mxu0 0
  %2920 = vmatmul.mubr.bf16.gmra.mxu0 %v2849
  %v2921 = vpop.f32.mrf.mxu0
  %v2922 = vadd.f32 0.0, %v2921
  %v2923 = vpop.f32.mrf.mxu0
  %v2924 = vpop.f32.mrf.mxu0
  %v2925 = vadd.f32 0.0, %v2924
  %v2926 = vpop.f32.mrf.mxu0
  %2927 = vmatprep.mubr.bf16.mxu0 0
  %2928 = vmatmul.mubr.bf16.gmra.mxu0 %v2852
  %v2929 = vpop.f32.mrf.mxu0
  %v2930 = vadd.f32 0.0, %v2929
  %v2931 = vpop.f32.mrf.mxu0
  %v2932 = vpop.f32.mrf.mxu0
  %v2933 = vadd.f32 0.0, %v2932
  %v2934 = vpop.f32.mrf.mxu0
  %2935 = vmatprep.mubr.bf16.mxu0 0
  %2936 = vmatmul.mubr.bf16.gmra.mxu0 %v2855
  %v2937 = vpop.f32.mrf.mxu0
  %v2938 = vadd.f32 0.0, %v2937
  %v2939 = vpop.f32.mrf.mxu0
  %v2940 = vpop.f32.mrf.mxu0
  %v2941 = vadd.f32 0.0, %v2940
  %v2942 = vpop.f32.mrf.mxu0
  %2943 = vmatprep.mubr.bf16.mxu0 0
  %2944 = vmatmul.mubr.bf16.gmra.mxu0 %v2858
  %v2945 = vpop.f32.mrf.mxu0
  %v2946 = vadd.f32 0.0, %v2945
  %v2947 = vpop.f32.mrf.mxu0
  %v2948 = vpop.f32.mrf.mxu0
  %v2949 = vadd.f32 0.0, %v2948
  %v2950 = vpop.f32.mrf.mxu0
  %2951 = vmatprep.mubr.bf16.mxu0 0
  %2952 = vmatmul.mubr.bf16.gmra.mxu0 %v2861
  %v2953 = vpop.f32.mrf.mxu0
  %v2954 = vadd.f32 0.0, %v2953
  %v2955 = vpop.f32.mrf.mxu0
  %v2956 = vpop.f32.mrf.mxu0
  %v2957 = vadd.f32 0.0, %v2956
  %v2958 = vpop.f32.mrf.mxu0
  %2959 = vdwg.mxu0
  %2976 = vrot.lane.b32.xlu0 %v2898, 32
  %v2977 = vpop.permute.xlu0 %2976
  %2978 = vrot.lane.b32.xlu0 %v2901, 32
  %v2979 = vpop.permute.xlu0 %2978
  %2980 = vrot.lane.b32.xlu0 %v2906, 32
  %v2981 = vpop.permute.xlu0 %2980
  %2982 = vrot.lane.b32.xlu0 %v2909, 32
  %v2983 = vpop.permute.xlu0 %2982
  %2984 = vrot.lane.b32.xlu0 %v2914, 32
  %v2985 = vpop.permute.xlu0 %2984
  %2986 = vrot.lane.b32.xlu0 %v2917, 32
  %v2987 = vpop.permute.xlu0 %2986
  %2988 = vrot.lane.b32.xlu0 %v2922, 32
  %v2989 = vpop.permute.xlu0 %2988
  %2990 = vrot.lane.b32.xlu0 %v2925, 32
  %v2991 = vpop.permute.xlu0 %2990
  %2992 = vrot.lane.b32.xlu0 %v2930, 32
  %v2993 = vpop.permute.xlu0 %2992
  %2994 = vrot.lane.b32.xlu0 %v2933, 32
  %v2995 = vpop.permute.xlu0 %2994
  %2996 = vrot.lane.b32.xlu0 %v2938, 32
  %v2997 = vpop.permute.xlu0 %2996
  %2998 = vrot.lane.b32.xlu0 %v2941, 32
  %v2999 = vpop.permute.xlu0 %2998
  %3000 = vrot.lane.b32.xlu0 %v2946, 32
  %v3001 = vpop.permute.xlu0 %3000
  %3002 = vrot.lane.b32.xlu0 %v2949, 32
  %v3003 = vpop.permute.xlu0 %3002
  %3004 = vrot.lane.b32.xlu0 %v2954, 32
  %v3005 = vpop.permute.xlu0 %3004
  %3006 = vrot.lane.b32.xlu0 %v2957, 32
  %v3007 = vpop.permute.xlu0 %3006
  %v3024 = vsel %vm366, %v2799, %v2977
  %v3025 = vsel %vm366, %v2800, %v2979
  %v3026 = vsel %vm366, %v2801, %v2981
  %v3027 = vsel %vm366, %v2802, %v2983
  %v3028 = vsel %vm366, %v2803, %v2985
  %v3029 = vsel %vm366, %v2804, %v2987
  %v3030 = vsel %vm366, %v2805, %v2989
  %v3031 = vsel %vm366, %v2806, %v2991
  %v3032 = vsel %vm366, %v2807, %v2993
  %v3033 = vsel %vm366, %v2808, %v2995
  %v3034 = vsel %vm366, %v2809, %v2997
  %v3035 = vsel %vm366, %v2810, %v2999
  %v3036 = vsel %vm366, %v2811, %v3001
  %v3037 = vsel %vm366, %v2812, %v3003
  %v3038 = vsel %vm366, %v2813, %v3005
  %v3039 = vsel %vm366, %v2814, %v3007
  %3040 = vst [vmem:[%s7] sm:$0xff] %v3024
  %3041 = vst [vmem:[%s7 + $0x8] sm:$0xff] %v3025
  %3042 = vst [vmem:[%s7 + $0x10] sm:$0xff] %v3026
  %3043 = vst [vmem:[%s7 + $0x18] sm:$0xff] %v3027
  %3044 = vst [vmem:[%s7 + $0x20] sm:$0xff] %v3028
  %3045 = vst [vmem:[%s7 + $0x28] sm:$0xff] %v3029
  %3046 = vst [vmem:[%s7 + $0x30] sm:$0xff] %v3030
  %3047 = vst [vmem:[%s7 + $0x38] sm:$0xff] %v3031
  %3048 = vst [vmem:[%s7 + $0x40] sm:$0xff] %v3032
  %3049 = vst [vmem:[%s7 + $0x48] sm:$0xff] %v3033
  %3050 = vst [vmem:[%s7 + $0x50] sm:$0xff] %v3034
  %3051 = vst [vmem:[%s7 + $0x58] sm:$0xff] %v3035
  %3052 = vst [vmem:[%s7 + $0x60] sm:$0xff] %v3036
  %3053 = vst [vmem:[%s7 + $0x68] sm:$0xff] %v3037
  %3054 = vst [vmem:[%s7 + $0x70] sm:$0xff] %v3038
  %3055 = vst [vmem:[%s7 + $0x78] sm:$0xff] %v3039
  // Predicated region
  $region30: #{ca_local_global_forward.2} parent=0 // pred_check
    _
  $region31: #{ca_local_global_forward.2} parent=0 // pred_check_branch
    %3057 = sbr.rel (0) target = $region33
  $region32: #{ca_local_global_forward.2} parent=0 // pred_region
    _
  $region33: #{ca_local_global_forward.2} parent=0 // pred_fallthru
    _
  // Predicated region
  $region34: #{ca_local_global_forward.2} parent=0 // pred_check
    _
  $region35: #{ca_local_global_forward.2} parent=0 // pred_check_branch
    %3059 = sbr.rel (0) target = $region37
  $region36: #{ca_local_global_forward.2} parent=0 // pred_region
    _
  $region37: #{ca_local_global_forward.2} parent=0 // pred_fallthru
    _

// kernel: ca_local_global_forward.3
$region0: #{ca_local_global_forward.3}
  #allocation0 [shape = 'u32[]', space=smem, size = 0x4, offset = 0x4, fixed_abs, tag = 'smem constant byte address 0x4 - core index']
  #allocation1 [shape = 'u32[144,128]{1,0:T(1,128)}', space=vmem, size = 0x12000, scoped, tag = 'internal scratch']
  %s0 = inlined_call_operand.vmem [shape: f32[128,32], index: 0, kind: input, shape index: {}]
  %s1 = inlined_call_operand.vmem [shape: f32[9,128,1], index: 1, kind: input, shape index: {}]
  %s2 = inlined_call_operand.vmem [shape: bf16[9,32,32], index: 2, kind: input, shape index: {}]
  %s3 = inlined_call_operand.vmem [shape: f32[1,32], index: 3, kind: input, shape index: {}]
  %s4 = inlined_call_operand.vmem [shape: f32[1,32], index: 4, kind: input, shape index: {}]
  %s5 = inlined_call_operand.vmem [shape: f32[1,32], index: 5, kind: input, shape index: {}]
  %s6 = inlined_call_operand.vmem [shape: bf16[32,8], index: 6, kind: input, shape index: {}]
  %s7 = inlined_call_operand.vmem [shape: f32[1,8], index: 7, kind: input, shape index: {}]
  %s8 = inlined_call_operand.vmem [shape: bf16[8,32], index: 8, kind: input, shape index: {}]
  %s9 = inlined_call_operand.vmem [shape: f32[1,32], index: 9, kind: input, shape index: {}]
  %s10 = inlined_call_operand.vmem [shape: f32[128,32], index: 10, kind: output, shape index: {}]
  %s11 = sld [smem:[#allocation0]]
  $region50: #{ca_local_global_forward.3} parent=0
    _
  %s13 = ssub.s32 1, %s11
  %s14 = scalar_select 0, %s13, %s11
  // Predicated region
  $region2: #{ca_local_global_forward.3} parent=0 // pred_check
    _
  $region3: #{ca_local_global_forward.3} parent=0 // pred_check_branch
    %16 = sbr.rel (0) target = $region5
  $region4: #{ca_local_global_forward.3} parent=0 // pred_region
    _
  $region5: #{ca_local_global_forward.3} parent=0 // pred_fallthru
    _
  // Predicated region
  $region6: #{ca_local_global_forward.3} parent=0 // pred_check
    _
  $region7: #{ca_local_global_forward.3} parent=0 // pred_check_branch
    %18 = sbr.rel (0) target = $region9
  $region8: #{ca_local_global_forward.3} parent=0 // pred_region
    _
  $region9: #{ca_local_global_forward.3} parent=0 // pred_fallthru
    _
  // Predicated region
  $region10: #{ca_local_global_forward.3} parent=0 // pred_check
    _
  $region11: #{ca_local_global_forward.3} parent=0 // pred_check_branch
    %20 = sbr.rel (0) target = $region13
  $region12: #{ca_local_global_forward.3} parent=0 // pred_region
    _
  $region13: #{ca_local_global_forward.3} parent=0 // pred_fallthru
    _
  // Predicated region
  $region14: #{ca_local_global_forward.3} parent=0 // pred_check
    _
  $region15: #{ca_local_global_forward.3} parent=0 // pred_check_branch
    %22 = sbr.rel (0) target = $region17
  $region16: #{ca_local_global_forward.3} parent=0 // pred_region
    _
  $region17: #{ca_local_global_forward.3} parent=0 // pred_fallthru
    _
  // Predicated region
  $region18: #{ca_local_global_forward.3} parent=0 // pred_check
    _
  $region19: #{ca_local_global_forward.3} parent=0 // pred_check_branch
    %24 = sbr.rel (0) target = $region21
  $region20: #{ca_local_global_forward.3} parent=0 // pred_region
    _
  $region21: #{ca_local_global_forward.3} parent=0 // pred_fallthru
    _
  // Predicated region
  $region22: #{ca_local_global_forward.3} parent=0 // pred_check
    _
  $region23: #{ca_local_global_forward.3} parent=0 // pred_check_branch
    %26 = sbr.rel (0) target = $region25
  $region24: #{ca_local_global_forward.3} parent=0 // pred_region
    _
  $region25: #{ca_local_global_forward.3} parent=0 // pred_fallthru
    _
  // Predicated region
  $region26: #{ca_local_global_forward.3} parent=0 // pred_check
    _
  $region27: #{ca_local_global_forward.3} parent=0 // pred_check_branch
    %28 = sbr.rel (0) target = $region29
  $region28: #{ca_local_global_forward.3} parent=0 // pred_region
    _
  $region29: #{ca_local_global_forward.3} parent=0 // pred_fallthru
    _
  // Predicated region
  $region30: #{ca_local_global_forward.3} parent=0 // pred_check
    _
  $region31: #{ca_local_global_forward.3} parent=0 // pred_check_branch
    %30 = sbr.rel (0) target = $region33
  $region32: #{ca_local_global_forward.3} parent=0 // pred_region
    _
  $region33: #{ca_local_global_forward.3} parent=0 // pred_fallthru
    _
  // Predicated region
  $region34: #{ca_local_global_forward.3} parent=0 // pred_check
    _
  $region35: #{ca_local_global_forward.3} parent=0 // pred_check_branch
    %32 = sbr.rel (0) target = $region37
  $region36: #{ca_local_global_forward.3} parent=0 // pred_region
    _
  $region37: #{ca_local_global_forward.3} parent=0 // pred_fallthru
    _
  // Predicated region
  $region38: #{ca_local_global_forward.3} parent=0 // pred_check
    _
  $region39: #{ca_local_global_forward.3} parent=0 // pred_check_branch
    %34 = sbr.rel (0) target = $region41
  $region40: #{ca_local_global_forward.3} parent=0 // pred_region
    _
  $region41: #{ca_local_global_forward.3} parent=0 // pred_fallthru
    _
  %v36 = vld [vmem:[%s0] sm:$0xff]
  %v37 = vld [vmem:[%s0 + $0x8] sm:$0xff]
  %v38 = vld [vmem:[%s0 + $0x10] sm:$0xff]
  %v39 = vld [vmem:[%s0 + $0x18] sm:$0xff]
  %v40 = vld [vmem:[%s0 + $0x20] sm:$0xff]
  %v41 = vld [vmem:[%s0 + $0x28] sm:$0xff]
  %v42 = vld [vmem:[%s0 + $0x30] sm:$0xff]
  %v43 = vld [vmem:[%s0 + $0x38] sm:$0xff]
  %v44 = vld [vmem:[%s0 + $0x40] sm:$0xff]
  %v45 = vld [vmem:[%s0 + $0x48] sm:$0xff]
  %v46 = vld [vmem:[%s0 + $0x50] sm:$0xff]
  %v47 = vld [vmem:[%s0 + $0x58] sm:$0xff]
  %v48 = vld [vmem:[%s0 + $0x60] sm:$0xff]
  %v49 = vld [vmem:[%s0 + $0x68] sm:$0xff]
  %v50 = vld [vmem:[%s0 + $0x70] sm:$0xff]
  %v51 = vld [vmem:[%s0 + $0x78] sm:$0xff]
  %vm67 = vcmask 1040384
  %v68 = vrot.slane %v36, 7
  %v69 = vrot.slane %v37, 7
  %v70 = vsel %vm67, %v68, %v69
  %v71 = vrot.slane %v38, 7
  %v72 = vsel %vm67, %v69, %v71
  %v73 = vrot.slane %v39, 7
  %v74 = vsel %vm67, %v71, %v73
  %v75 = vrot.slane %v40, 7
  %v76 = vsel %vm67, %v73, %v75
  %v77 = vrot.slane %v41, 7
  %v78 = vsel %vm67, %v75, %v77
  %v79 = vrot.slane %v42, 7
  %v80 = vsel %vm67, %v77, %v79
  %v81 = vrot.slane %v43, 7
  %v82 = vsel %vm67, %v79, %v81
  %v83 = vrot.slane %v44, 7
  %v84 = vsel %vm67, %v81, %v83
  %v85 = vrot.slane %v45, 7
  %v86 = vsel %vm67, %v83, %v85
  %v87 = vrot.slane %v46, 7
  %v88 = vsel %vm67, %v85, %v87
  %v89 = vrot.slane %v47, 7
  %v90 = vsel %vm67, %v87, %v89
  %v91 = vrot.slane %v48, 7
  %v92 = vsel %vm67, %v89, %v91
  %v93 = vrot.slane %v49, 7
  %v94 = vsel %vm67, %v91, %v93
  %v95 = vrot.slane %v50, 7
  %v96 = vsel %vm67, %v93, %v95
  %v112 = vsel %vm67, 0.0, %v68
  %v113 = vld [vmem:[%s1] sm:$0xff]
  %v114 = vld [vmem:[%s1 + $0x8] sm:$0xff]
  %v115 = vld [vmem:[%s1 + $0x10] sm:$0xff]
  %v116 = vld [vmem:[%s1 + $0x18] sm:$0xff]
  %v117 = vld [vmem:[%s1 + $0x20] sm:$0xff]
  %v118 = vld [vmem:[%s1 + $0x28] sm:$0xff]
  %v119 = vld [vmem:[%s1 + $0x30] sm:$0xff]
  %v120 = vld [vmem:[%s1 + $0x38] sm:$0xff]
  %v121 = vld [vmem:[%s1 + $0x40] sm:$0xff]
  %v122 = vld [vmem:[%s1 + $0x48] sm:$0xff]
  %v123 = vld [vmem:[%s1 + $0x50] sm:$0xff]
  %v124 = vld [vmem:[%s1 + $0x58] sm:$0xff]
  %v125 = vld [vmem:[%s1 + $0x60] sm:$0xff]
  %v126 = vld [vmem:[%s1 + $0x68] sm:$0xff]
  %v127 = vld [vmem:[%s1 + $0x70] sm:$0xff]
  %v128 = vld [vmem:[%s1 + $0x78] sm:$0xff]
  %130 = vset.pattern.permute.xlu0 0
  %131 = vperm.xlu0 %130, %v113
  %v132 = vpop.permute.xlu0 %131
  %135 = vset.pattern.permute.xlu0 0
  %136 = vperm.xlu0 %135, %v114
  %v137 = vpop.permute.xlu0 %136
  %140 = vset.pattern.permute.xlu0 0
  %141 = vperm.xlu0 %140, %v115
  %v142 = vpop.permute.xlu0 %141
  %145 = vset.pattern.permute.xlu0 0
  %146 = vperm.xlu0 %145, %v116
  %v147 = vpop.permute.xlu0 %146
  %150 = vset.pattern.permute.xlu0 0
  %151 = vperm.xlu0 %150, %v117
  %v152 = vpop.permute.xlu0 %151
  %155 = vset.pattern.permute.xlu0 0
  %156 = vperm.xlu0 %155, %v118
  %v157 = vpop.permute.xlu0 %156
  %160 = vset.pattern.permute.xlu0 0
  %161 = vperm.xlu0 %160, %v119
  %v162 = vpop.permute.xlu0 %161
  %165 = vset.pattern.permute.xlu0 0
  %166 = vperm.xlu0 %165, %v120
  %v167 = vpop.permute.xlu0 %166
  %170 = vset.pattern.permute.xlu0 0
  %171 = vperm.xlu0 %170, %v121
  %v172 = vpop.permute.xlu0 %171
  %175 = vset.pattern.permute.xlu0 0
  %176 = vperm.xlu0 %175, %v122
  %v177 = vpop.permute.xlu0 %176
  %180 = vset.pattern.permute.xlu0 0
  %181 = vperm.xlu0 %180, %v123
  %v182 = vpop.permute.xlu0 %181
  %185 = vset.pattern.permute.xlu0 0
  %186 = vperm.xlu0 %185, %v124
  %v187 = vpop.permute.xlu0 %186
  %190 = vset.pattern.permute.xlu0 0
  %191 = vperm.xlu0 %190, %v125
  %v192 = vpop.permute.xlu0 %191
  %195 = vset.pattern.permute.xlu0 0
  %196 = vperm.xlu0 %195, %v126
  %v197 = vpop.permute.xlu0 %196
  %200 = vset.pattern.permute.xlu0 0
  %201 = vperm.xlu0 %200, %v127
  %v202 = vpop.permute.xlu0 %201
  %205 = vset.pattern.permute.xlu0 0
  %206 = vperm.xlu0 %205, %v128
  %v207 = vpop.permute.xlu0 %206
  %v209 = vmul.f32 %v132, 0.0
  %v210 = vmul.f32 %v112, %v137
  %v211 = vmul.f32 %v70, %v142
  %v212 = vmul.f32 %v72, %v147
  %v213 = vmul.f32 %v74, %v152
  %v214 = vmul.f32 %v76, %v157
  %v215 = vmul.f32 %v78, %v162
  %v216 = vmul.f32 %v80, %v167
  %v217 = vmul.f32 %v82, %v172
  %v218 = vmul.f32 %v84, %v177
  %v219 = vmul.f32 %v86, %v182
  %v220 = vmul.f32 %v88, %v187
  %v221 = vmul.f32 %v90, %v192
  %v222 = vmul.f32 %v92, %v197
  %v223 = vmul.f32 %v94, %v202
  %v224 = vmul.f32 %v96, %v207
  %v225 = vpack.c.bf16 %v210, %v209
  %v226 = vpack.c.bf16 %v212, %v211
  %v227 = vpack.c.bf16 %v214, %v213
  %v228 = vpack.c.bf16 %v216, %v215
  %v229 = vpack.c.bf16 %v218, %v217
  %v230 = vpack.c.bf16 %v220, %v219
  %v231 = vpack.c.bf16 %v222, %v221
  %v232 = vpack.c.bf16 %v224, %v223
  %v233 = vld [vmem:[%s2] sm:$0xf]
  %v234 = vld [vmem:[%s2 + $0x4] sm:$0xf]
  %v235 = vld [vmem:[%s2 + $0x8] sm:$0xf]
  %v236 = vld [vmem:[%s2 + $0xc] sm:$0xf]
  %s237 = scalar_lea.vmem %s1, 128
  %v238 = vld [vmem:[%s237] sm:$0xff]
  %v239 = vld [vmem:[%s237 + $0x8] sm:$0xff]
  %v240 = vld [vmem:[%s237 + $0x10] sm:$0xff]
  %v241 = vld [vmem:[%s237 + $0x18] sm:$0xff]
  %v242 = vld [vmem:[%s237 + $0x20] sm:$0xff]
  %v243 = vld [vmem:[%s237 + $0x28] sm:$0xff]
  %v244 = vld [vmem:[%s237 + $0x30] sm:$0xff]
  %v245 = vld [vmem:[%s237 + $0x38] sm:$0xff]
  %v246 = vld [vmem:[%s237 + $0x40] sm:$0xff]
  %v247 = vld [vmem:[%s237 + $0x48] sm:$0xff]
  %v248 = vld [vmem:[%s237 + $0x50] sm:$0xff]
  %v249 = vld [vmem:[%s237 + $0x58] sm:$0xff]
  %v250 = vld [vmem:[%s237 + $0x60] sm:$0xff]
  %v251 = vld [vmem:[%s237 + $0x68] sm:$0xff]
  %v252 = vld [vmem:[%s237 + $0x70] sm:$0xff]
  %v253 = vld [vmem:[%s237 + $0x78] sm:$0xff]
  %255 = vset.pattern.permute.xlu0 0
  %256 = vperm.xlu0 %255, %v238
  %v257 = vpop.permute.xlu0 %256
  %260 = vset.pattern.permute.xlu0 0
  %261 = vperm.xlu0 %260, %v239
  %v262 = vpop.permute.xlu0 %261
  %265 = vset.pattern.permute.xlu0 0
  %266 = vperm.xlu0 %265, %v240
  %v267 = vpop.permute.xlu0 %266
  %270 = vset.pattern.permute.xlu0 0
  %271 = vperm.xlu0 %270, %v241
  %v272 = vpop.permute.xlu0 %271
  %275 = vset.pattern.permute.xlu0 0
  %276 = vperm.xlu0 %275, %v242
  %v277 = vpop.permute.xlu0 %276
  %280 = vset.pattern.permute.xlu0 0
  %281 = vperm.xlu0 %280, %v243
  %v282 = vpop.permute.xlu0 %281
  %285 = vset.pattern.permute.xlu0 0
  %286 = vperm.xlu0 %285, %v244
  %v287 = vpop.permute.xlu0 %286
  %290 = vset.pattern.permute.xlu0 0
  %291 = vperm.xlu0 %290, %v245
  %v292 = vpop.permute.xlu0 %291
  %295 = vset.pattern.permute.xlu0 0
  %296 = vperm.xlu0 %295, %v246
  %v297 = vpop.permute.xlu0 %296
  %300 = vset.pattern.permute.xlu0 0
  %301 = vperm.xlu0 %300, %v247
  %v302 = vpop.permute.xlu0 %301
  %305 = vset.pattern.permute.xlu0 0
  %306 = vperm.xlu0 %305, %v248
  %v307 = vpop.permute.xlu0 %306
  %310 = vset.pattern.permute.xlu0 0
  %311 = vperm.xlu0 %310, %v249
  %v312 = vpop.permute.xlu0 %311
  %315 = vset.pattern.permute.xlu0 0
  %316 = vperm.xlu0 %315, %v250
  %v317 = vpop.permute.xlu0 %316
  %320 = vset.pattern.permute.xlu0 0
  %321 = vperm.xlu0 %320, %v251
  %v322 = vpop.permute.xlu0 %321
  %325 = vset.pattern.permute.xlu0 0
  %326 = vperm.xlu0 %325, %v252
  %v327 = vpop.permute.xlu0 %326
  %330 = vset.pattern.permute.xlu0 0
  %331 = vperm.xlu0 %330, %v253
  %v332 = vpop.permute.xlu0 %331
  %v334 = vmul.f32 %v257, 0.0
  %v335 = vmul.f32 %v36, %v262
  %v336 = vmul.f32 %v37, %v267
  %v337 = vmul.f32 %v38, %v272
  %v338 = vmul.f32 %v39, %v277
  %v339 = vmul.f32 %v40, %v282
  %v340 = vmul.f32 %v41, %v287
  %v341 = vmul.f32 %v42, %v292
  %v342 = vmul.f32 %v43, %v297
  %v343 = vmul.f32 %v44, %v302
  %v344 = vmul.f32 %v45, %v307
  %v345 = vmul.f32 %v46, %v312
  %v346 = vmul.f32 %v47, %v317
  %v347 = vmul.f32 %v48, %v322
  %v348 = vmul.f32 %v49, %v327
  %v349 = vmul.f32 %v50, %v332
  %v350 = vpack.c.bf16 %v335, %v334
  %v351 = vpack.c.bf16 %v337, %v336
  %v352 = vpack.c.bf16 %v339, %v338
  %v353 = vpack.c.bf16 %v341, %v340
  %v354 = vpack.c.bf16 %v343, %v342
  %v355 = vpack.c.bf16 %v345, %v344
  %v356 = vpack.c.bf16 %v347, %v346
  %v357 = vpack.c.bf16 %v349, %v348
  %s358 = scalar_lea.vmem %s2, 16
  %v359 = vld [vmem:[%s358] sm:$0xf]
  %v360 = vld [vmem:[%s358 + $0x4] sm:$0xf]
  %v361 = vld [vmem:[%s358 + $0x8] sm:$0xf]
  %v362 = vld [vmem:[%s358 + $0xc] sm:$0xf]
  %v367 = vunpack.c.l.b16 %v359
  %v368 = vunpack.c.l.b16 %v360
  %v369 = vunpack.c.l.b16 %v361
  %v370 = vunpack.c.l.b16 %v362
  %v371 = vpack.c.b16 %v368, %v367
  %v372 = vpack.c.b16 %v370, %v369
  %vm375 = vcmask 261120
  %v377 = vsel %vm375, %v350, 0
  %v380 = vsel %vm375, %v351, 0
  %v383 = vsel %vm375, %v352, 0
  %v386 = vsel %vm375, %v353, 0
  %v389 = vsel %vm375, %v354, 0
  %v392 = vsel %vm375, %v355, 0
  %v395 = vsel %vm375, %v356, 0
  %v398 = vsel %vm375, %v357, 0
  %400 = vmatprep.subr.bf16.mxu0 0
  %401 = vmatpush1.bf16.msra.mxu0 0
  %402 = vmatprep.subr.bf16.mxu0 0
  %403 = vmatpush1.bf16.msra.mxu0 0
  %404 = vmatprep.subr.bf16.mxu0 0
  %405 = vmatpush1.bf16.msra.mxu0 0
  %406 = vmatprep.subr.bf16.mxu0 0
  %407 = vmatpush1.bf16.msra.mxu0 0
  %408 = vmatprep.subr.bf16.mxu0 0
  %409 = vmatpush1.bf16.msra.mxu0 0
  %410 = vmatprep.subr.bf16.mxu0 0
  %411 = vmatpush1.bf16.msra.mxu0 0
  %412 = vmatprep.subr.bf16.mxu0 0
  %413 = vmatpush1.bf16.msra.mxu0 %v372
  %414 = vmatprep.subr.bf16.mxu0 0
  %415 = vmatpush1.bf16.msra.mxu0 %v371
  %416 = vmatprep.subr.bf16.mxu0 0
  %417 = vmatpush2.bf16.msra.mxu0 0
  %418 = vmatprep.subr.bf16.mxu0 0
  %419 = vmatpush2.bf16.msra.mxu0 0
  %420 = vmatprep.subr.bf16.mxu0 0
  %421 = vmatpush2.bf16.msra.mxu0 0
  %422 = vmatprep.subr.bf16.mxu0 0
  %423 = vmatpush2.bf16.msra.mxu0 0
  %424 = vmatprep.subr.bf16.mxu0 0
  %425 = vmatpush2.bf16.msra.mxu0 0
  %426 = vmatprep.subr.bf16.mxu0 0
  %427 = vmatpush2.bf16.msra.mxu0 0
  %428 = vmatprep.subr.bf16.mxu0 0
  %429 = vmatpush2.bf16.msra.mxu0 0
  %430 = vmatprep.subr.bf16.mxu0 0
  %431 = vmatpush2.bf16.msra.mxu0 0
  %432 = vmatprep.mubr.bf16.mxu0 0
  %433 = vmatmul.mubr.bf16.gmra.mxu0 %v377
  %v434 = vpop.f32.mrf.mxu0
  %v435 = vadd.f32 0.0, %v434
  %v436 = vpop.f32.mrf.mxu0
  %v437 = vpop.f32.mrf.mxu0
  %v438 = vadd.f32 0.0, %v437
  %v439 = vpop.f32.mrf.mxu0
  %440 = vmatprep.mubr.bf16.mxu0 0
  %441 = vmatmul.mubr.bf16.gmra.mxu0 %v380
  %v442 = vpop.f32.mrf.mxu0
  %v443 = vadd.f32 0.0, %v442
  %v444 = vpop.f32.mrf.mxu0
  %v445 = vpop.f32.mrf.mxu0
  %v446 = vadd.f32 0.0, %v445
  %v447 = vpop.f32.mrf.mxu0
  %448 = vmatprep.mubr.bf16.mxu0 0
  %449 = vmatmul.mubr.bf16.gmra.mxu0 %v383
  %v450 = vpop.f32.mrf.mxu0
  %v451 = vadd.f32 0.0, %v450
  %v452 = vpop.f32.mrf.mxu0
  %v453 = vpop.f32.mrf.mxu0
  %v454 = vadd.f32 0.0, %v453
  %v455 = vpop.f32.mrf.mxu0
  %456 = vmatprep.mubr.bf16.mxu0 0
  %457 = vmatmul.mubr.bf16.gmra.mxu0 %v386
  %v458 = vpop.f32.mrf.mxu0
  %v459 = vadd.f32 0.0, %v458
  %v460 = vpop.f32.mrf.mxu0
  %v461 = vpop.f32.mrf.mxu0
  %v462 = vadd.f32 0.0, %v461
  %v463 = vpop.f32.mrf.mxu0
  %464 = vmatprep.mubr.bf16.mxu0 0
  %465 = vmatmul.mubr.bf16.gmra.mxu0 %v389
  %v466 = vpop.f32.mrf.mxu0
  %v467 = vadd.f32 0.0, %v466
  %v468 = vpop.f32.mrf.mxu0
  %v469 = vpop.f32.mrf.mxu0
  %v470 = vadd.f32 0.0, %v469
  %v471 = vpop.f32.mrf.mxu0
  %472 = vmatprep.mubr.bf16.mxu0 0
  %473 = vmatmul.mubr.bf16.gmra.mxu0 %v392
  %v474 = vpop.f32.mrf.mxu0
  %v475 = vadd.f32 0.0, %v474
  %v476 = vpop.f32.mrf.mxu0
  %v477 = vpop.f32.mrf.mxu0
  %v478 = vadd.f32 0.0, %v477
  %v479 = vpop.f32.mrf.mxu0
  %480 = vmatprep.mubr.bf16.mxu0 0
  %481 = vmatmul.mubr.bf16.gmra.mxu0 %v395
  %v482 = vpop.f32.mrf.mxu0
  %v483 = vadd.f32 0.0, %v482
  %v484 = vpop.f32.mrf.mxu0
  %v485 = vpop.f32.mrf.mxu0
  %v486 = vadd.f32 0.0, %v485
  %v487 = vpop.f32.mrf.mxu0
  %488 = vmatprep.mubr.bf16.mxu0 0
  %489 = vmatmul.mubr.bf16.gmra.mxu0 %v398
  %v490 = vpop.f32.mrf.mxu0
  %v491 = vadd.f32 0.0, %v490
  %v492 = vpop.f32.mrf.mxu0
  %v493 = vpop.f32.mrf.mxu0
  %v494 = vadd.f32 0.0, %v493
  %v495 = vpop.f32.mrf.mxu0
  %496 = vdwg.mxu0
  %v501 = vunpack.c.l.b16 %v233
  %v502 = vunpack.c.l.b16 %v234
  %v503 = vunpack.c.l.b16 %v235
  %v504 = vunpack.c.l.b16 %v236
  %v505 = vpack.c.b16 %v502, %v501
  %v506 = vpack.c.b16 %v504, %v503
  %v510 = vsel %vm375, %v225, 0
  %v513 = vsel %vm375, %v226, 0
  %v516 = vsel %vm375, %v227, 0
  %v519 = vsel %vm375, %v228, 0
  %v522 = vsel %vm375, %v229, 0
  %v525 = vsel %vm375, %v230, 0
  %v528 = vsel %vm375, %v231, 0
  %v531 = vsel %vm375, %v232, 0
  %533 = vmatprep.subr.bf16.mxu0 0
  %534 = vmatpush1.bf16.msra.mxu0 0
  %535 = vmatprep.subr.bf16.mxu0 0
  %536 = vmatpush1.bf16.msra.mxu0 0
  %537 = vmatprep.subr.bf16.mxu0 0
  %538 = vmatpush1.bf16.msra.mxu0 0
  %539 = vmatprep.subr.bf16.mxu0 0
  %540 = vmatpush1.bf16.msra.mxu0 0
  %541 = vmatprep.subr.bf16.mxu0 0
  %542 = vmatpush1.bf16.msra.mxu0 0
  %543 = vmatprep.subr.bf16.mxu0 0
  %544 = vmatpush1.bf16.msra.mxu0 0
  %545 = vmatprep.subr.bf16.mxu0 0
  %546 = vmatpush1.bf16.msra.mxu0 %v506
  %547 = vmatprep.subr.bf16.mxu0 0
  %548 = vmatpush1.bf16.msra.mxu0 %v505
  %549 = vmatprep.subr.bf16.mxu0 0
  %550 = vmatpush2.bf16.msra.mxu0 0
  %551 = vmatprep.subr.bf16.mxu0 0
  %552 = vmatpush2.bf16.msra.mxu0 0
  %553 = vmatprep.subr.bf16.mxu0 0
  %554 = vmatpush2.bf16.msra.mxu0 0
  %555 = vmatprep.subr.bf16.mxu0 0
  %556 = vmatpush2.bf16.msra.mxu0 0
  %557 = vmatprep.subr.bf16.mxu0 0
  %558 = vmatpush2.bf16.msra.mxu0 0
  %559 = vmatprep.subr.bf16.mxu0 0
  %560 = vmatpush2.bf16.msra.mxu0 0
  %561 = vmatprep.subr.bf16.mxu0 0
  %562 = vmatpush2.bf16.msra.mxu0 0
  %563 = vmatprep.subr.bf16.mxu0 0
  %564 = vmatpush2.bf16.msra.mxu0 0
  %565 = vmatprep.mubr.bf16.mxu0 0
  %566 = vmatmul.mubr.bf16.gmra.mxu0 %v510
  %v567 = vpop.f32.mrf.mxu0
  %v568 = vadd.f32 %v435, %v567
  %v569 = vpop.f32.mrf.mxu0
  %v570 = vpop.f32.mrf.mxu0
  %v571 = vadd.f32 %v438, %v570
  %v572 = vpop.f32.mrf.mxu0
  %573 = vmatprep.mubr.bf16.mxu0 0
  %574 = vmatmul.mubr.bf16.gmra.mxu0 %v513
  %v575 = vpop.f32.mrf.mxu0
  %v576 = vadd.f32 %v443, %v575
  %v577 = vpop.f32.mrf.mxu0
  %v578 = vpop.f32.mrf.mxu0
  %v579 = vadd.f32 %v446, %v578
  %v580 = vpop.f32.mrf.mxu0
  %581 = vmatprep.mubr.bf16.mxu0 0
  %582 = vmatmul.mubr.bf16.gmra.mxu0 %v516
  %v583 = vpop.f32.mrf.mxu0
  %v584 = vadd.f32 %v451, %v583
  %v585 = vpop.f32.mrf.mxu0
  %v586 = vpop.f32.mrf.mxu0
  %v587 = vadd.f32 %v454, %v586
  %v588 = vpop.f32.mrf.mxu0
  %589 = vmatprep.mubr.bf16.mxu0 0
  %590 = vmatmul.mubr.bf16.gmra.mxu0 %v519
  %v591 = vpop.f32.mrf.mxu0
  %v592 = vadd.f32 %v459, %v591
  %v593 = vpop.f32.mrf.mxu0
  %v594 = vpop.f32.mrf.mxu0
  %v595 = vadd.f32 %v462, %v594
  %v596 = vpop.f32.mrf.mxu0
  %597 = vmatprep.mubr.bf16.mxu0 0
  %598 = vmatmul.mubr.bf16.gmra.mxu0 %v522
  %v599 = vpop.f32.mrf.mxu0
  %v600 = vadd.f32 %v467, %v599
  %v601 = vpop.f32.mrf.mxu0
  %v602 = vpop.f32.mrf.mxu0
  %v603 = vadd.f32 %v470, %v602
  %v604 = vpop.f32.mrf.mxu0
  %605 = vmatprep.mubr.bf16.mxu0 0
  %606 = vmatmul.mubr.bf16.gmra.mxu0 %v525
  %v607 = vpop.f32.mrf.mxu0
  %v608 = vadd.f32 %v475, %v607
  %v609 = vpop.f32.mrf.mxu0
  %v610 = vpop.f32.mrf.mxu0
  %v611 = vadd.f32 %v478, %v610
  %v612 = vpop.f32.mrf.mxu0
  %613 = vmatprep.mubr.bf16.mxu0 0
  %614 = vmatmul.mubr.bf16.gmra.mxu0 %v528
  %v615 = vpop.f32.mrf.mxu0
  %v616 = vadd.f32 %v483, %v615
  %v617 = vpop.f32.mrf.mxu0
  %v618 = vpop.f32.mrf.mxu0
  %v619 = vadd.f32 %v486, %v618
  %v620 = vpop.f32.mrf.mxu0
  %621 = vmatprep.mubr.bf16.mxu0 0
  %622 = vmatmul.mubr.bf16.gmra.mxu0 %v531
  %v623 = vpop.f32.mrf.mxu0
  %v624 = vadd.f32 %v491, %v623
  %v625 = vpop.f32.mrf.mxu0
  %v626 = vpop.f32.mrf.mxu0
  %v627 = vadd.f32 %v494, %v626
  %v628 = vpop.f32.mrf.mxu0
  %629 = vdwg.mxu0
  %vm631 = vcmask 1046528
  %v632 = vrot.slane %v36, 1
  %v633 = vrot.slane %v37, 1
  %v634 = vsel %vm631, %v632, %v633
  %v635 = vrot.slane %v38, 1
  %v636 = vsel %vm631, %v633, %v635
  %v637 = vrot.slane %v39, 1
  %v638 = vsel %vm631, %v635, %v637
  %v639 = vrot.slane %v40, 1
  %v640 = vsel %vm631, %v637, %v639
  %v641 = vrot.slane %v41, 1
  %v642 = vsel %vm631, %v639, %v641
  %v643 = vrot.slane %v42, 1
  %v644 = vsel %vm631, %v641, %v643
  %v645 = vrot.slane %v43, 1
  %v646 = vsel %vm631, %v643, %v645
  %v647 = vrot.slane %v44, 1
  %v648 = vsel %vm631, %v645, %v647
  %v649 = vrot.slane %v45, 1
  %v650 = vsel %vm631, %v647, %v649
  %v651 = vrot.slane %v46, 1
  %v652 = vsel %vm631, %v649, %v651
  %v653 = vrot.slane %v47, 1
  %v654 = vsel %vm631, %v651, %v653
  %v655 = vrot.slane %v48, 1
  %v656 = vsel %vm631, %v653, %v655
  %v657 = vrot.slane %v49, 1
  %v658 = vsel %vm631, %v655, %v657
  %v659 = vrot.slane %v50, 1
  %v660 = vsel %vm631, %v657, %v659
  %v661 = vrot.slane %v51, 1
  %v662 = vsel %vm631, %v659, %v661
  %v679 = vsel %vm631, 0.0, %v632
  %s680 = scalar_lea.vmem %s1, 256
  %v681 = vld [vmem:[%s680] sm:$0xff]
  %v682 = vld [vmem:[%s680 + $0x8] sm:$0xff]
  %v683 = vld [vmem:[%s680 + $0x10] sm:$0xff]
  %v684 = vld [vmem:[%s680 + $0x18] sm:$0xff]
  %v685 = vld [vmem:[%s680 + $0x20] sm:$0xff]
  %v686 = vld [vmem:[%s680 + $0x28] sm:$0xff]
  %v687 = vld [vmem:[%s680 + $0x30] sm:$0xff]
  %v688 = vld [vmem:[%s680 + $0x38] sm:$0xff]
  %v689 = vld [vmem:[%s680 + $0x40] sm:$0xff]
  %v690 = vld [vmem:[%s680 + $0x48] sm:$0xff]
  %v691 = vld [vmem:[%s680 + $0x50] sm:$0xff]
  %v692 = vld [vmem:[%s680 + $0x58] sm:$0xff]
  %v693 = vld [vmem:[%s680 + $0x60] sm:$0xff]
  %v694 = vld [vmem:[%s680 + $0x68] sm:$0xff]
  %v695 = vld [vmem:[%s680 + $0x70] sm:$0xff]
  %v696 = vld [vmem:[%s680 + $0x78] sm:$0xff]
  %698 = vset.pattern.permute.xlu0 0
  %699 = vperm.xlu0 %698, %v681
  %v700 = vpop.permute.xlu0 %699
  %703 = vset.pattern.permute.xlu0 0
  %704 = vperm.xlu0 %703, %v682
  %v705 = vpop.permute.xlu0 %704
  %708 = vset.pattern.permute.xlu0 0
  %709 = vperm.xlu0 %708, %v683
  %v710 = vpop.permute.xlu0 %709
  %713 = vset.pattern.permute.xlu0 0
  %714 = vperm.xlu0 %713, %v684
  %v715 = vpop.permute.xlu0 %714
  %718 = vset.pattern.permute.xlu0 0
  %719 = vperm.xlu0 %718, %v685
  %v720 = vpop.permute.xlu0 %719
  %723 = vset.pattern.permute.xlu0 0
  %724 = vperm.xlu0 %723, %v686
  %v725 = vpop.permute.xlu0 %724
  %728 = vset.pattern.permute.xlu0 0
  %729 = vperm.xlu0 %728, %v687
  %v730 = vpop.permute.xlu0 %729
  %733 = vset.pattern.permute.xlu0 0
  %734 = vperm.xlu0 %733, %v688
  %v735 = vpop.permute.xlu0 %734
  %738 = vset.pattern.permute.xlu0 0
  %739 = vperm.xlu0 %738, %v689
  %v740 = vpop.permute.xlu0 %739
  %743 = vset.pattern.permute.xlu0 0
  %744 = vperm.xlu0 %743, %v690
  %v745 = vpop.permute.xlu0 %744
  %748 = vset.pattern.permute.xlu0 0
  %749 = vperm.xlu0 %748, %v691
  %v750 = vpop.permute.xlu0 %749
  %753 = vset.pattern.permute.xlu0 0
  %754 = vperm.xlu0 %753, %v692
  %v755 = vpop.permute.xlu0 %754
  %758 = vset.pattern.permute.xlu0 0
  %759 = vperm.xlu0 %758, %v693
  %v760 = vpop.permute.xlu0 %759
  %763 = vset.pattern.permute.xlu0 0
  %764 = vperm.xlu0 %763, %v694
  %v765 = vpop.permute.xlu0 %764
  %768 = vset.pattern.permute.xlu0 0
  %769 = vperm.xlu0 %768, %v695
  %v770 = vpop.permute.xlu0 %769
  %773 = vset.pattern.permute.xlu0 0
  %774 = vperm.xlu0 %773, %v696
  %v775 = vpop.permute.xlu0 %774
  %v777 = vmul.f32 %v679, %v700
  %v778 = vmul.f32 %v634, %v705
  %v779 = vmul.f32 %v636, %v710
  %v780 = vmul.f32 %v638, %v715
  %v781 = vmul.f32 %v640, %v720
  %v782 = vmul.f32 %v642, %v725
  %v783 = vmul.f32 %v644, %v730
  %v784 = vmul.f32 %v646, %v735
  %v785 = vmul.f32 %v648, %v740
  %v786 = vmul.f32 %v650, %v745
  %v787 = vmul.f32 %v652, %v750
  %v788 = vmul.f32 %v654, %v755
  %v789 = vmul.f32 %v656, %v760
  %v790 = vmul.f32 %v658, %v765
  %v791 = vmul.f32 %v660, %v770
  %v792 = vmul.f32 %v662, %v775
  %v793 = vpack.c.bf16 %v778, %v777
  %v794 = vpack.c.bf16 %v780, %v779
  %v795 = vpack.c.bf16 %v782, %v781
  %v796 = vpack.c.bf16 %v784, %v783
  %v797 = vpack.c.bf16 %v786, %v785
  %v798 = vpack.c.bf16 %v788, %v787
  %v799 = vpack.c.bf16 %v790, %v789
  %v800 = vpack.c.bf16 %v792, %v791
  %s801 = scalar_lea.vmem %s2, 32
  %v802 = vld [vmem:[%s801] sm:$0xf]
  %v803 = vld [vmem:[%s801 + $0x4] sm:$0xf]
  %v804 = vld [vmem:[%s801 + $0x8] sm:$0xf]
  %v805 = vld [vmem:[%s801 + $0xc] sm:$0xf]
  %v810 = vunpack.c.l.b16 %v802
  %v811 = vunpack.c.l.b16 %v803
  %v812 = vunpack.c.l.b16 %v804
  %v813 = vunpack.c.l.b16 %v805
  %v814 = vpack.c.b16 %v811, %v810
  %v815 = vpack.c.b16 %v813, %v812
  %v819 = vsel %vm375, %v793, 0
  %v822 = vsel %vm375, %v794, 0
  %v825 = vsel %vm375, %v795, 0
  %v828 = vsel %vm375, %v796, 0
  %v831 = vsel %vm375, %v797, 0
  %v834 = vsel %vm375, %v798, 0
  %v837 = vsel %vm375, %v799, 0
  %v840 = vsel %vm375, %v800, 0
  %842 = vmatprep.subr.bf16.mxu0 0
  %843 = vmatpush1.bf16.msra.mxu0 0
  %844 = vmatprep.subr.bf16.mxu0 0
  %845 = vmatpush1.bf16.msra.mxu0 0
  %846 = vmatprep.subr.bf16.mxu0 0
  %847 = vmatpush1.bf16.msra.mxu0 0
  %848 = vmatprep.subr.bf16.mxu0 0
  %849 = vmatpush1.bf16.msra.mxu0 0
  %850 = vmatprep.subr.bf16.mxu0 0
  %851 = vmatpush1.bf16.msra.mxu0 0
  %852 = vmatprep.subr.bf16.mxu0 0
  %853 = vmatpush1.bf16.msra.mxu0 0
  %854 = vmatprep.subr.bf16.mxu0 0
  %855 = vmatpush1.bf16.msra.mxu0 %v815
  %856 = vmatprep.subr.bf16.mxu0 0
  %857 = vmatpush1.bf16.msra.mxu0 %v814
  %858 = vmatprep.subr.bf16.mxu0 0
  %859 = vmatpush2.bf16.msra.mxu0 0
  %860 = vmatprep.subr.bf16.mxu0 0
  %861 = vmatpush2.bf16.msra.mxu0 0
  %862 = vmatprep.subr.bf16.mxu0 0
  %863 = vmatpush2.bf16.msra.mxu0 0
  %864 = vmatprep.subr.bf16.mxu0 0
  %865 = vmatpush2.bf16.msra.mxu0 0
  %866 = vmatprep.subr.bf16.mxu0 0
  %867 = vmatpush2.bf16.msra.mxu0 0
  %868 = vmatprep.subr.bf16.mxu0 0
  %869 = vmatpush2.bf16.msra.mxu0 0
  %870 = vmatprep.subr.bf16.mxu0 0
  %871 = vmatpush2.bf16.msra.mxu0 0
  %872 = vmatprep.subr.bf16.mxu0 0
  %873 = vmatpush2.bf16.msra.mxu0 0
  %874 = vmatprep.mubr.bf16.mxu0 0
  %875 = vmatmul.mubr.bf16.gmra.mxu0 %v819
  %v876 = vpop.f32.mrf.mxu0
  %v877 = vadd.f32 0.0, %v876
  %v878 = vpop.f32.mrf.mxu0
  %v879 = vpop.f32.mrf.mxu0
  %v880 = vadd.f32 0.0, %v879
  %v881 = vpop.f32.mrf.mxu0
  %882 = vmatprep.mubr.bf16.mxu0 0
  %883 = vmatmul.mubr.bf16.gmra.mxu0 %v822
  %v884 = vpop.f32.mrf.mxu0
  %v885 = vadd.f32 0.0, %v884
  %v886 = vpop.f32.mrf.mxu0
  %v887 = vpop.f32.mrf.mxu0
  %v888 = vadd.f32 0.0, %v887
  %v889 = vpop.f32.mrf.mxu0
  %890 = vmatprep.mubr.bf16.mxu0 0
  %891 = vmatmul.mubr.bf16.gmra.mxu0 %v825
  %v892 = vpop.f32.mrf.mxu0
  %v893 = vadd.f32 0.0, %v892
  %v894 = vpop.f32.mrf.mxu0
  %v895 = vpop.f32.mrf.mxu0
  %v896 = vadd.f32 0.0, %v895
  %v897 = vpop.f32.mrf.mxu0
  %898 = vmatprep.mubr.bf16.mxu0 0
  %899 = vmatmul.mubr.bf16.gmra.mxu0 %v828
  %v900 = vpop.f32.mrf.mxu0
  %v901 = vadd.f32 0.0, %v900
  %v902 = vpop.f32.mrf.mxu0
  %v903 = vpop.f32.mrf.mxu0
  %v904 = vadd.f32 0.0, %v903
  %v905 = vpop.f32.mrf.mxu0
  %906 = vmatprep.mubr.bf16.mxu0 0
  %907 = vmatmul.mubr.bf16.gmra.mxu0 %v831
  %v908 = vpop.f32.mrf.mxu0
  %v909 = vadd.f32 0.0, %v908
  %v910 = vpop.f32.mrf.mxu0
  %v911 = vpop.f32.mrf.mxu0
  %v912 = vadd.f32 0.0, %v911
  %v913 = vpop.f32.mrf.mxu0
  %914 = vmatprep.mubr.bf16.mxu0 0
  %915 = vmatmul.mubr.bf16.gmra.mxu0 %v834
  %v916 = vpop.f32.mrf.mxu0
  %v917 = vadd.f32 0.0, %v916
  %v918 = vpop.f32.mrf.mxu0
  %v919 = vpop.f32.mrf.mxu0
  %v920 = vadd.f32 0.0, %v919
  %v921 = vpop.f32.mrf.mxu0
  %922 = vmatprep.mubr.bf16.mxu0 0
  %923 = vmatmul.mubr.bf16.gmra.mxu0 %v837
  %v924 = vpop.f32.mrf.mxu0
  %v925 = vadd.f32 0.0, %v924
  %v926 = vpop.f32.mrf.mxu0
  %v927 = vpop.f32.mrf.mxu0
  %v928 = vadd.f32 0.0, %v927
  %v929 = vpop.f32.mrf.mxu0
  %930 = vmatprep.mubr.bf16.mxu0 0
  %931 = vmatmul.mubr.bf16.gmra.mxu0 %v840
  %v932 = vpop.f32.mrf.mxu0
  %v933 = vadd.f32 0.0, %v932
  %v934 = vpop.f32.mrf.mxu0
  %v935 = vpop.f32.mrf.mxu0
  %v936 = vadd.f32 0.0, %v935
  %v937 = vpop.f32.mrf.mxu0
  %938 = vdwg.mxu0
  %v939 = vadd.f32 %v568, %v877
  %v940 = vadd.f32 %v571, %v880
  %v941 = vadd.f32 %v576, %v885
  %v942 = vadd.f32 %v579, %v888
  %v943 = vadd.f32 %v584, %v893
  %v944 = vadd.f32 %v587, %v896
  %v945 = vadd.f32 %v592, %v901
  %v946 = vadd.f32 %v595, %v904
  %v947 = vadd.f32 %v600, %v909
  %v948 = vadd.f32 %v603, %v912
  %v949 = vadd.f32 %v608, %v917
  %v950 = vadd.f32 %v611, %v920
  %v951 = vadd.f32 %v616, %v925
  %v952 = vadd.f32 %v619, %v928
  %v953 = vadd.f32 %v624, %v933
  %v954 = vadd.f32 %v627, %v936
  %v955 = vrot.slane %v51, 7
  %v956 = vsel %vm67, %v95, %v955
  %s958 = scalar_lea.vmem %s1, 384
  %v959 = vld [vmem:[%s958] sm:$0xff]
  %v960 = vld [vmem:[%s958 + $0x8] sm:$0xff]
  %v961 = vld [vmem:[%s958 + $0x10] sm:$0xff]
  %v962 = vld [vmem:[%s958 + $0x18] sm:$0xff]
  %v963 = vld [vmem:[%s958 + $0x20] sm:$0xff]
  %v964 = vld [vmem:[%s958 + $0x28] sm:$0xff]
  %v965 = vld [vmem:[%s958 + $0x30] sm:$0xff]
  %v966 = vld [vmem:[%s958 + $0x38] sm:$0xff]
  %v967 = vld [vmem:[%s958 + $0x40] sm:$0xff]
  %v968 = vld [vmem:[%s958 + $0x48] sm:$0xff]
  %v969 = vld [vmem:[%s958 + $0x50] sm:$0xff]
  %v970 = vld [vmem:[%s958 + $0x58] sm:$0xff]
  %v971 = vld [vmem:[%s958 + $0x60] sm:$0xff]
  %v972 = vld [vmem:[%s958 + $0x68] sm:$0xff]
  %v973 = vld [vmem:[%s958 + $0x70] sm:$0xff]
  %v974 = vld [vmem:[%s958 + $0x78] sm:$0xff]
  %976 = vset.pattern.permute.xlu0 0
  %977 = vperm.xlu0 %976, %v959
  %v978 = vpop.permute.xlu0 %977
  %981 = vset.pattern.permute.xlu0 0
  %982 = vperm.xlu0 %981, %v960
  %v983 = vpop.permute.xlu0 %982
  %986 = vset.pattern.permute.xlu0 0
  %987 = vperm.xlu0 %986, %v961
  %v988 = vpop.permute.xlu0 %987
  %991 = vset.pattern.permute.xlu0 0
  %992 = vperm.xlu0 %991, %v962
  %v993 = vpop.permute.xlu0 %992
  %996 = vset.pattern.permute.xlu0 0
  %997 = vperm.xlu0 %996, %v963
  %v998 = vpop.permute.xlu0 %997
  %1001 = vset.pattern.permute.xlu0 0
  %1002 = vperm.xlu0 %1001, %v964
  %v1003 = vpop.permute.xlu0 %1002
  %1006 = vset.pattern.permute.xlu0 0
  %1007 = vperm.xlu0 %1006, %v965
  %v1008 = vpop.permute.xlu0 %1007
  %1011 = vset.pattern.permute.xlu0 0
  %1012 = vperm.xlu0 %1011, %v966
  %v1013 = vpop.permute.xlu0 %1012
  %1016 = vset.pattern.permute.xlu0 0
  %1017 = vperm.xlu0 %1016, %v967
  %v1018 = vpop.permute.xlu0 %1017
  %1021 = vset.pattern.permute.xlu0 0
  %1022 = vperm.xlu0 %1021, %v968
  %v1023 = vpop.permute.xlu0 %1022
  %1026 = vset.pattern.permute.xlu0 0
  %1027 = vperm.xlu0 %1026, %v969
  %v1028 = vpop.permute.xlu0 %1027
  %1031 = vset.pattern.permute.xlu0 0
  %1032 = vperm.xlu0 %1031, %v970
  %v1033 = vpop.permute.xlu0 %1032
  %1036 = vset.pattern.permute.xlu0 0
  %1037 = vperm.xlu0 %1036, %v971
  %v1038 = vpop.permute.xlu0 %1037
  %1041 = vset.pattern.permute.xlu0 0
  %1042 = vperm.xlu0 %1041, %v972
  %v1043 = vpop.permute.xlu0 %1042
  %1046 = vset.pattern.permute.xlu0 0
  %1047 = vperm.xlu0 %1046, %v973
  %v1048 = vpop.permute.xlu0 %1047
  %1051 = vset.pattern.permute.xlu0 0
  %1052 = vperm.xlu0 %1051, %v974
  %v1053 = vpop.permute.xlu0 %1052
  %v1055 = vmul.f32 %v112, %v978
  %v1056 = vmul.f32 %v70, %v983
  %v1057 = vmul.f32 %v72, %v988
  %v1058 = vmul.f32 %v74, %v993
  %v1059 = vmul.f32 %v76, %v998
  %v1060 = vmul.f32 %v78, %v1003
  %v1061 = vmul.f32 %v80, %v1008
  %v1062 = vmul.f32 %v82, %v1013
  %v1063 = vmul.f32 %v84, %v1018
  %v1064 = vmul.f32 %v86, %v1023
  %v1065 = vmul.f32 %v88, %v1028
  %v1066 = vmul.f32 %v90, %v1033
  %v1067 = vmul.f32 %v92, %v1038
  %v1068 = vmul.f32 %v94, %v1043
  %v1069 = vmul.f32 %v96, %v1048
  %v1070 = vmul.f32 %v956, %v1053
  %v1071 = vpack.c.bf16 %v1056, %v1055
  %v1072 = vpack.c.bf16 %v1058, %v1057
  %v1073 = vpack.c.bf16 %v1060, %v1059
  %v1074 = vpack.c.bf16 %v1062, %v1061
  %v1075 = vpack.c.bf16 %v1064, %v1063
  %v1076 = vpack.c.bf16 %v1066, %v1065
  %v1077 = vpack.c.bf16 %v1068, %v1067
  %v1078 = vpack.c.bf16 %v1070, %v1069
  %s1079 = scalar_lea.vmem %s2, 48
  %v1080 = vld [vmem:[%s1079] sm:$0xf]
  %v1081 = vld [vmem:[%s1079 + $0x4] sm:$0xf]
  %v1082 = vld [vmem:[%s1079 + $0x8] sm:$0xf]
  %v1083 = vld [vmem:[%s1079 + $0xc] sm:$0xf]
  %v1088 = vunpack.c.l.b16 %v1080
  %v1089 = vunpack.c.l.b16 %v1081
  %v1090 = vunpack.c.l.b16 %v1082
  %v1091 = vunpack.c.l.b16 %v1083
  %v1092 = vpack.c.b16 %v1089, %v1088
  %v1093 = vpack.c.b16 %v1091, %v1090
  %v1097 = vsel %vm375, %v1071, 0
  %v1100 = vsel %vm375, %v1072, 0
  %v1103 = vsel %vm375, %v1073, 0
  %v1106 = vsel %vm375, %v1074, 0
  %v1109 = vsel %vm375, %v1075, 0
  %v1112 = vsel %vm375, %v1076, 0
  %v1115 = vsel %vm375, %v1077, 0
  %v1118 = vsel %vm375, %v1078, 0
  %1120 = vmatprep.subr.bf16.mxu0 0
  %1121 = vmatpush1.bf16.msra.mxu0 0
  %1122 = vmatprep.subr.bf16.mxu0 0
  %1123 = vmatpush1.bf16.msra.mxu0 0
  %1124 = vmatprep.subr.bf16.mxu0 0
  %1125 = vmatpush1.bf16.msra.mxu0 0
  %1126 = vmatprep.subr.bf16.mxu0 0
  %1127 = vmatpush1.bf16.msra.mxu0 0
  %1128 = vmatprep.subr.bf16.mxu0 0
  %1129 = vmatpush1.bf16.msra.mxu0 0
  %1130 = vmatprep.subr.bf16.mxu0 0
  %1131 = vmatpush1.bf16.msra.mxu0 0
  %1132 = vmatprep.subr.bf16.mxu0 0
  %1133 = vmatpush1.bf16.msra.mxu0 %v1093
  %1134 = vmatprep.subr.bf16.mxu0 0
  %1135 = vmatpush1.bf16.msra.mxu0 %v1092
  %1136 = vmatprep.subr.bf16.mxu0 0
  %1137 = vmatpush2.bf16.msra.mxu0 0
  %1138 = vmatprep.subr.bf16.mxu0 0
  %1139 = vmatpush2.bf16.msra.mxu0 0
  %1140 = vmatprep.subr.bf16.mxu0 0
  %1141 = vmatpush2.bf16.msra.mxu0 0
  %1142 = vmatprep.subr.bf16.mxu0 0
  %1143 = vmatpush2.bf16.msra.mxu0 0
  %1144 = vmatprep.subr.bf16.mxu0 0
  %1145 = vmatpush2.bf16.msra.mxu0 0
  %1146 = vmatprep.subr.bf16.mxu0 0
  %1147 = vmatpush2.bf16.msra.mxu0 0
  %1148 = vmatprep.subr.bf16.mxu0 0
  %1149 = vmatpush2.bf16.msra.mxu0 0
  %1150 = vmatprep.subr.bf16.mxu0 0
  %1151 = vmatpush2.bf16.msra.mxu0 0
  %1152 = vmatprep.mubr.bf16.mxu0 0
  %1153 = vmatmul.mubr.bf16.gmra.mxu0 %v1097
  %v1154 = vpop.f32.mrf.mxu0
  %v1155 = vadd.f32 0.0, %v1154
  %v1156 = vpop.f32.mrf.mxu0
  %v1157 = vpop.f32.mrf.mxu0
  %v1158 = vadd.f32 0.0, %v1157
  %v1159 = vpop.f32.mrf.mxu0
  %1160 = vmatprep.mubr.bf16.mxu0 0
  %1161 = vmatmul.mubr.bf16.gmra.mxu0 %v1100
  %v1162 = vpop.f32.mrf.mxu0
  %v1163 = vadd.f32 0.0, %v1162
  %v1164 = vpop.f32.mrf.mxu0
  %v1165 = vpop.f32.mrf.mxu0
  %v1166 = vadd.f32 0.0, %v1165
  %v1167 = vpop.f32.mrf.mxu0
  %1168 = vmatprep.mubr.bf16.mxu0 0
  %1169 = vmatmul.mubr.bf16.gmra.mxu0 %v1103
  %v1170 = vpop.f32.mrf.mxu0
  %v1171 = vadd.f32 0.0, %v1170
  %v1172 = vpop.f32.mrf.mxu0
  %v1173 = vpop.f32.mrf.mxu0
  %v1174 = vadd.f32 0.0, %v1173
  %v1175 = vpop.f32.mrf.mxu0
  %1176 = vmatprep.mubr.bf16.mxu0 0
  %1177 = vmatmul.mubr.bf16.gmra.mxu0 %v1106
  %v1178 = vpop.f32.mrf.mxu0
  %v1179 = vadd.f32 0.0, %v1178
  %v1180 = vpop.f32.mrf.mxu0
  %v1181 = vpop.f32.mrf.mxu0
  %v1182 = vadd.f32 0.0, %v1181
  %v1183 = vpop.f32.mrf.mxu0
  %1184 = vmatprep.mubr.bf16.mxu0 0
  %1185 = vmatmul.mubr.bf16.gmra.mxu0 %v1109
  %v1186 = vpop.f32.mrf.mxu0
  %v1187 = vadd.f32 0.0, %v1186
  %v1188 = vpop.f32.mrf.mxu0
  %v1189 = vpop.f32.mrf.mxu0
  %v1190 = vadd.f32 0.0, %v1189
  %v1191 = vpop.f32.mrf.mxu0
  %1192 = vmatprep.mubr.bf16.mxu0 0
  %1193 = vmatmul.mubr.bf16.gmra.mxu0 %v1112
  %v1194 = vpop.f32.mrf.mxu0
  %v1195 = vadd.f32 0.0, %v1194
  %v1196 = vpop.f32.mrf.mxu0
  %v1197 = vpop.f32.mrf.mxu0
  %v1198 = vadd.f32 0.0, %v1197
  %v1199 = vpop.f32.mrf.mxu0
  %1200 = vmatprep.mubr.bf16.mxu0 0
  %1201 = vmatmul.mubr.bf16.gmra.mxu0 %v1115
  %v1202 = vpop.f32.mrf.mxu0
  %v1203 = vadd.f32 0.0, %v1202
  %v1204 = vpop.f32.mrf.mxu0
  %v1205 = vpop.f32.mrf.mxu0
  %v1206 = vadd.f32 0.0, %v1205
  %v1207 = vpop.f32.mrf.mxu0
  %1208 = vmatprep.mubr.bf16.mxu0 0
  %1209 = vmatmul.mubr.bf16.gmra.mxu0 %v1118
  %v1210 = vpop.f32.mrf.mxu0
  %v1211 = vadd.f32 0.0, %v1210
  %v1212 = vpop.f32.mrf.mxu0
  %v1213 = vpop.f32.mrf.mxu0
  %v1214 = vadd.f32 0.0, %v1213
  %v1215 = vpop.f32.mrf.mxu0
  %1216 = vdwg.mxu0
  %v1217 = vadd.f32 %v939, %v1155
  %v1218 = vadd.f32 %v940, %v1158
  %v1219 = vadd.f32 %v941, %v1163
  %v1220 = vadd.f32 %v942, %v1166
  %v1221 = vadd.f32 %v943, %v1171
  %v1222 = vadd.f32 %v944, %v1174
  %v1223 = vadd.f32 %v945, %v1179
  %v1224 = vadd.f32 %v946, %v1182
  %v1225 = vadd.f32 %v947, %v1187
  %v1226 = vadd.f32 %v948, %v1190
  %v1227 = vadd.f32 %v949, %v1195
  %v1228 = vadd.f32 %v950, %v1198
  %v1229 = vadd.f32 %v951, %v1203
  %v1230 = vadd.f32 %v952, %v1206
  %v1231 = vadd.f32 %v953, %v1211
  %v1232 = vadd.f32 %v954, %v1214
  %s1233 = scalar_lea.vmem %s1, 512
  %v1234 = vld [vmem:[%s1233] sm:$0xff]
  %v1235 = vld [vmem:[%s1233 + $0x8] sm:$0xff]
  %v1236 = vld [vmem:[%s1233 + $0x10] sm:$0xff]
  %v1237 = vld [vmem:[%s1233 + $0x18] sm:$0xff]
  %v1238 = vld [vmem:[%s1233 + $0x20] sm:$0xff]
  %v1239 = vld [vmem:[%s1233 + $0x28] sm:$0xff]
  %v1240 = vld [vmem:[%s1233 + $0x30] sm:$0xff]
  %v1241 = vld [vmem:[%s1233 + $0x38] sm:$0xff]
  %v1242 = vld [vmem:[%s1233 + $0x40] sm:$0xff]
  %v1243 = vld [vmem:[%s1233 + $0x48] sm:$0xff]
  %v1244 = vld [vmem:[%s1233 + $0x50] sm:$0xff]
  %v1245 = vld [vmem:[%s1233 + $0x58] sm:$0xff]
  %v1246 = vld [vmem:[%s1233 + $0x60] sm:$0xff]
  %v1247 = vld [vmem:[%s1233 + $0x68] sm:$0xff]
  %v1248 = vld [vmem:[%s1233 + $0x70] sm:$0xff]
  %v1249 = vld [vmem:[%s1233 + $0x78] sm:$0xff]
  %1251 = vset.pattern.permute.xlu0 0
  %1252 = vperm.xlu0 %1251, %v1234
  %v1253 = vpop.permute.xlu0 %1252
  %1256 = vset.pattern.permute.xlu0 0
  %1257 = vperm.xlu0 %1256, %v1235
  %v1258 = vpop.permute.xlu0 %1257
  %1261 = vset.pattern.permute.xlu0 0
  %1262 = vperm.xlu0 %1261, %v1236
  %v1263 = vpop.permute.xlu0 %1262
  %1266 = vset.pattern.permute.xlu0 0
  %1267 = vperm.xlu0 %1266, %v1237
  %v1268 = vpop.permute.xlu0 %1267
  %1271 = vset.pattern.permute.xlu0 0
  %1272 = vperm.xlu0 %1271, %v1238
  %v1273 = vpop.permute.xlu0 %1272
  %1276 = vset.pattern.permute.xlu0 0
  %1277 = vperm.xlu0 %1276, %v1239
  %v1278 = vpop.permute.xlu0 %1277
  %1281 = vset.pattern.permute.xlu0 0
  %1282 = vperm.xlu0 %1281, %v1240
  %v1283 = vpop.permute.xlu0 %1282
  %1286 = vset.pattern.permute.xlu0 0
  %1287 = vperm.xlu0 %1286, %v1241
  %v1288 = vpop.permute.xlu0 %1287
  %1291 = vset.pattern.permute.xlu0 0
  %1292 = vperm.xlu0 %1291, %v1242
  %v1293 = vpop.permute.xlu0 %1292
  %1296 = vset.pattern.permute.xlu0 0
  %1297 = vperm.xlu0 %1296, %v1243
  %v1298 = vpop.permute.xlu0 %1297
  %1301 = vset.pattern.permute.xlu0 0
  %1302 = vperm.xlu0 %1301, %v1244
  %v1303 = vpop.permute.xlu0 %1302
  %1306 = vset.pattern.permute.xlu0 0
  %1307 = vperm.xlu0 %1306, %v1245
  %v1308 = vpop.permute.xlu0 %1307
  %1311 = vset.pattern.permute.xlu0 0
  %1312 = vperm.xlu0 %1311, %v1246
  %v1313 = vpop.permute.xlu0 %1312
  %1316 = vset.pattern.permute.xlu0 0
  %1317 = vperm.xlu0 %1316, %v1247
  %v1318 = vpop.permute.xlu0 %1317
  %1321 = vset.pattern.permute.xlu0 0
  %1322 = vperm.xlu0 %1321, %v1248
  %v1323 = vpop.permute.xlu0 %1322
  %1326 = vset.pattern.permute.xlu0 0
  %1327 = vperm.xlu0 %1326, %v1249
  %v1328 = vpop.permute.xlu0 %1327
  %v1330 = vmul.f32 %v36, %v1253
  %v1331 = vmul.f32 %v37, %v1258
  %v1332 = vmul.f32 %v38, %v1263
  %v1333 = vmul.f32 %v39, %v1268
  %v1334 = vmul.f32 %v40, %v1273
  %v1335 = vmul.f32 %v41, %v1278
  %v1336 = vmul.f32 %v42, %v1283
  %v1337 = vmul.f32 %v43, %v1288
  %v1338 = vmul.f32 %v44, %v1293
  %v1339 = vmul.f32 %v45, %v1298
  %v1340 = vmul.f32 %v46, %v1303
  %v1341 = vmul.f32 %v47, %v1308
  %v1342 = vmul.f32 %v48, %v1313
  %v1343 = vmul.f32 %v49, %v1318
  %v1344 = vmul.f32 %v50, %v1323
  %v1345 = vmul.f32 %v51, %v1328
  %v1346 = vpack.c.bf16 %v1331, %v1330
  %v1347 = vpack.c.bf16 %v1333, %v1332
  %v1348 = vpack.c.bf16 %v1335, %v1334
  %v1349 = vpack.c.bf16 %v1337, %v1336
  %v1350 = vpack.c.bf16 %v1339, %v1338
  %v1351 = vpack.c.bf16 %v1341, %v1340
  %v1352 = vpack.c.bf16 %v1343, %v1342
  %v1353 = vpack.c.bf16 %v1345, %v1344
  %s1354 = scalar_lea.vmem %s2, 64
  %v1355 = vld [vmem:[%s1354] sm:$0xf]
  %v1356 = vld [vmem:[%s1354 + $0x4] sm:$0xf]
  %v1357 = vld [vmem:[%s1354 + $0x8] sm:$0xf]
  %v1358 = vld [vmem:[%s1354 + $0xc] sm:$0xf]
  %v1363 = vunpack.c.l.b16 %v1355
  %v1364 = vunpack.c.l.b16 %v1356
  %v1365 = vunpack.c.l.b16 %v1357
  %v1366 = vunpack.c.l.b16 %v1358
  %v1367 = vpack.c.b16 %v1364, %v1363
  %v1368 = vpack.c.b16 %v1366, %v1365
  %v1372 = vsel %vm375, %v1346, 0
  %v1375 = vsel %vm375, %v1347, 0
  %v1378 = vsel %vm375, %v1348, 0
  %v1381 = vsel %vm375, %v1349, 0
  %v1384 = vsel %vm375, %v1350, 0
  %v1387 = vsel %vm375, %v1351, 0
  %v1390 = vsel %vm375, %v1352, 0
  %v1393 = vsel %vm375, %v1353, 0
  %1395 = vmatprep.subr.bf16.mxu0 0
  %1396 = vmatpush1.bf16.msra.mxu0 0
  %1397 = vmatprep.subr.bf16.mxu0 0
  %1398 = vmatpush1.bf16.msra.mxu0 0
  %1399 = vmatprep.subr.bf16.mxu0 0
  %1400 = vmatpush1.bf16.msra.mxu0 0
  %1401 = vmatprep.subr.bf16.mxu0 0
  %1402 = vmatpush1.bf16.msra.mxu0 0
  %1403 = vmatprep.subr.bf16.mxu0 0
  %1404 = vmatpush1.bf16.msra.mxu0 0
  %1405 = vmatprep.subr.bf16.mxu0 0
  %1406 = vmatpush1.bf16.msra.mxu0 0
  %1407 = vmatprep.subr.bf16.mxu0 0
  %1408 = vmatpush1.bf16.msra.mxu0 %v1368
  %1409 = vmatprep.subr.bf16.mxu0 0
  %1410 = vmatpush1.bf16.msra.mxu0 %v1367
  %1411 = vmatprep.subr.bf16.mxu0 0
  %1412 = vmatpush2.bf16.msra.mxu0 0
  %1413 = vmatprep.subr.bf16.mxu0 0
  %1414 = vmatpush2.bf16.msra.mxu0 0
  %1415 = vmatprep.subr.bf16.mxu0 0
  %1416 = vmatpush2.bf16.msra.mxu0 0
  %1417 = vmatprep.subr.bf16.mxu0 0
  %1418 = vmatpush2.bf16.msra.mxu0 0
  %1419 = vmatprep.subr.bf16.mxu0 0
  %1420 = vmatpush2.bf16.msra.mxu0 0
  %1421 = vmatprep.subr.bf16.mxu0 0
  %1422 = vmatpush2.bf16.msra.mxu0 0
  %1423 = vmatprep.subr.bf16.mxu0 0
  %1424 = vmatpush2.bf16.msra.mxu0 0
  %1425 = vmatprep.subr.bf16.mxu0 0
  %1426 = vmatpush2.bf16.msra.mxu0 0
  %1427 = vmatprep.mubr.bf16.mxu0 0
  %1428 = vmatmul.mubr.bf16.gmra.mxu0 %v1372
  %v1429 = vpop.f32.mrf.mxu0
  %v1430 = vadd.f32 0.0, %v1429
  %v1431 = vpop.f32.mrf.mxu0
  %v1432 = vpop.f32.mrf.mxu0
  %v1433 = vadd.f32 0.0, %v1432
  %v1434 = vpop.f32.mrf.mxu0
  %1435 = vmatprep.mubr.bf16.mxu0 0
  %1436 = vmatmul.mubr.bf16.gmra.mxu0 %v1375
  %v1437 = vpop.f32.mrf.mxu0
  %v1438 = vadd.f32 0.0, %v1437
  %v1439 = vpop.f32.mrf.mxu0
  %v1440 = vpop.f32.mrf.mxu0
  %v1441 = vadd.f32 0.0, %v1440
  %v1442 = vpop.f32.mrf.mxu0
  %1443 = vmatprep.mubr.bf16.mxu0 0
  %1444 = vmatmul.mubr.bf16.gmra.mxu0 %v1378
  %v1445 = vpop.f32.mrf.mxu0
  %v1446 = vadd.f32 0.0, %v1445
  %v1447 = vpop.f32.mrf.mxu0
  %v1448 = vpop.f32.mrf.mxu0
  %v1449 = vadd.f32 0.0, %v1448
  %v1450 = vpop.f32.mrf.mxu0
  %1451 = vmatprep.mubr.bf16.mxu0 0
  %1452 = vmatmul.mubr.bf16.gmra.mxu0 %v1381
  %v1453 = vpop.f32.mrf.mxu0
  %v1454 = vadd.f32 0.0, %v1453
  %v1455 = vpop.f32.mrf.mxu0
  %v1456 = vpop.f32.mrf.mxu0
  %v1457 = vadd.f32 0.0, %v1456
  %v1458 = vpop.f32.mrf.mxu0
  %1459 = vmatprep.mubr.bf16.mxu0 0
  %1460 = vmatmul.mubr.bf16.gmra.mxu0 %v1384
  %v1461 = vpop.f32.mrf.mxu0
  %v1462 = vadd.f32 0.0, %v1461
  %v1463 = vpop.f32.mrf.mxu0
  %v1464 = vpop.f32.mrf.mxu0
  %v1465 = vadd.f32 0.0, %v1464
  %v1466 = vpop.f32.mrf.mxu0
  %1467 = vmatprep.mubr.bf16.mxu0 0
  %1468 = vmatmul.mubr.bf16.gmra.mxu0 %v1387
  %v1469 = vpop.f32.mrf.mxu0
  %v1470 = vadd.f32 0.0, %v1469
  %v1471 = vpop.f32.mrf.mxu0
  %v1472 = vpop.f32.mrf.mxu0
  %v1473 = vadd.f32 0.0, %v1472
  %v1474 = vpop.f32.mrf.mxu0
  %1475 = vmatprep.mubr.bf16.mxu0 0
  %1476 = vmatmul.mubr.bf16.gmra.mxu0 %v1390
  %v1477 = vpop.f32.mrf.mxu0
  %v1478 = vadd.f32 0.0, %v1477
  %v1479 = vpop.f32.mrf.mxu0
  %v1480 = vpop.f32.mrf.mxu0
  %v1481 = vadd.f32 0.0, %v1480
  %v1482 = vpop.f32.mrf.mxu0
  %1483 = vmatprep.mubr.bf16.mxu0 0
  %1484 = vmatmul.mubr.bf16.gmra.mxu0 %v1393
  %v1485 = vpop.f32.mrf.mxu0
  %v1486 = vadd.f32 0.0, %v1485
  %v1487 = vpop.f32.mrf.mxu0
  %v1488 = vpop.f32.mrf.mxu0
  %v1489 = vadd.f32 0.0, %v1488
  %v1490 = vpop.f32.mrf.mxu0
  %1491 = vdwg.mxu0
  %v1492 = vadd.f32 %v1217, %v1430
  %v1493 = vadd.f32 %v1218, %v1433
  %v1494 = vadd.f32 %v1219, %v1438
  %v1495 = vadd.f32 %v1220, %v1441
  %v1496 = vadd.f32 %v1221, %v1446
  %v1497 = vadd.f32 %v1222, %v1449
  %v1498 = vadd.f32 %v1223, %v1454
  %v1499 = vadd.f32 %v1224, %v1457
  %v1500 = vadd.f32 %v1225, %v1462
  %v1501 = vadd.f32 %v1226, %v1465
  %v1502 = vadd.f32 %v1227, %v1470
  %v1503 = vadd.f32 %v1228, %v1473
  %v1504 = vadd.f32 %v1229, %v1478
  %v1505 = vadd.f32 %v1230, %v1481
  %v1506 = vadd.f32 %v1231, %v1486
  %v1507 = vadd.f32 %v1232, %v1489
  %v1509 = vsel %vm631, %v661, 0.0
  %s1510 = scalar_lea.vmem %s1, 640
  %v1511 = vld [vmem:[%s1510] sm:$0xff]
  %v1512 = vld [vmem:[%s1510 + $0x8] sm:$0xff]
  %v1513 = vld [vmem:[%s1510 + $0x10] sm:$0xff]
  %v1514 = vld [vmem:[%s1510 + $0x18] sm:$0xff]
  %v1515 = vld [vmem:[%s1510 + $0x20] sm:$0xff]
  %v1516 = vld [vmem:[%s1510 + $0x28] sm:$0xff]
  %v1517 = vld [vmem:[%s1510 + $0x30] sm:$0xff]
  %v1518 = vld [vmem:[%s1510 + $0x38] sm:$0xff]
  %v1519 = vld [vmem:[%s1510 + $0x40] sm:$0xff]
  %v1520 = vld [vmem:[%s1510 + $0x48] sm:$0xff]
  %v1521 = vld [vmem:[%s1510 + $0x50] sm:$0xff]
  %v1522 = vld [vmem:[%s1510 + $0x58] sm:$0xff]
  %v1523 = vld [vmem:[%s1510 + $0x60] sm:$0xff]
  %v1524 = vld [vmem:[%s1510 + $0x68] sm:$0xff]
  %v1525 = vld [vmem:[%s1510 + $0x70] sm:$0xff]
  %v1526 = vld [vmem:[%s1510 + $0x78] sm:$0xff]
  %1528 = vset.pattern.permute.xlu0 0
  %1529 = vperm.xlu0 %1528, %v1511
  %v1530 = vpop.permute.xlu0 %1529
  %1533 = vset.pattern.permute.xlu0 0
  %1534 = vperm.xlu0 %1533, %v1512
  %v1535 = vpop.permute.xlu0 %1534
  %1538 = vset.pattern.permute.xlu0 0
  %1539 = vperm.xlu0 %1538, %v1513
  %v1540 = vpop.permute.xlu0 %1539
  %1543 = vset.pattern.permute.xlu0 0
  %1544 = vperm.xlu0 %1543, %v1514
  %v1545 = vpop.permute.xlu0 %1544
  %1548 = vset.pattern.permute.xlu0 0
  %1549 = vperm.xlu0 %1548, %v1515
  %v1550 = vpop.permute.xlu0 %1549
  %1553 = vset.pattern.permute.xlu0 0
  %1554 = vperm.xlu0 %1553, %v1516
  %v1555 = vpop.permute.xlu0 %1554
  %1558 = vset.pattern.permute.xlu0 0
  %1559 = vperm.xlu0 %1558, %v1517
  %v1560 = vpop.permute.xlu0 %1559
  %1563 = vset.pattern.permute.xlu0 0
  %1564 = vperm.xlu0 %1563, %v1518
  %v1565 = vpop.permute.xlu0 %1564
  %1568 = vset.pattern.permute.xlu0 0
  %1569 = vperm.xlu0 %1568, %v1519
  %v1570 = vpop.permute.xlu0 %1569
  %1573 = vset.pattern.permute.xlu0 0
  %1574 = vperm.xlu0 %1573, %v1520
  %v1575 = vpop.permute.xlu0 %1574
  %1578 = vset.pattern.permute.xlu0 0
  %1579 = vperm.xlu0 %1578, %v1521
  %v1580 = vpop.permute.xlu0 %1579
  %1583 = vset.pattern.permute.xlu0 0
  %1584 = vperm.xlu0 %1583, %v1522
  %v1585 = vpop.permute.xlu0 %1584
  %1588 = vset.pattern.permute.xlu0 0
  %1589 = vperm.xlu0 %1588, %v1523
  %v1590 = vpop.permute.xlu0 %1589
  %1593 = vset.pattern.permute.xlu0 0
  %1594 = vperm.xlu0 %1593, %v1524
  %v1595 = vpop.permute.xlu0 %1594
  %1598 = vset.pattern.permute.xlu0 0
  %1599 = vperm.xlu0 %1598, %v1525
  %v1600 = vpop.permute.xlu0 %1599
  %1603 = vset.pattern.permute.xlu0 0
  %1604 = vperm.xlu0 %1603, %v1526
  %v1605 = vpop.permute.xlu0 %1604
  %v1607 = vmul.f32 %v634, %v1530
  %v1608 = vmul.f32 %v636, %v1535
  %v1609 = vmul.f32 %v638, %v1540
  %v1610 = vmul.f32 %v640, %v1545
  %v1611 = vmul.f32 %v642, %v1550
  %v1612 = vmul.f32 %v644, %v1555
  %v1613 = vmul.f32 %v646, %v1560
  %v1614 = vmul.f32 %v648, %v1565
  %v1615 = vmul.f32 %v650, %v1570
  %v1616 = vmul.f32 %v652, %v1575
  %v1617 = vmul.f32 %v654, %v1580
  %v1618 = vmul.f32 %v656, %v1585
  %v1619 = vmul.f32 %v658, %v1590
  %v1620 = vmul.f32 %v660, %v1595
  %v1621 = vmul.f32 %v662, %v1600
  %v1622 = vmul.f32 %v1509, %v1605
  %v1623 = vpack.c.bf16 %v1608, %v1607
  %v1624 = vpack.c.bf16 %v1610, %v1609
  %v1625 = vpack.c.bf16 %v1612, %v1611
  %v1626 = vpack.c.bf16 %v1614, %v1613
  %v1627 = vpack.c.bf16 %v1616, %v1615
  %v1628 = vpack.c.bf16 %v1618, %v1617
  %v1629 = vpack.c.bf16 %v1620, %v1619
  %v1630 = vpack.c.bf16 %v1622, %v1621
  %s1631 = scalar_lea.vmem %s2, 80
  %v1632 = vld [vmem:[%s1631] sm:$0xf]
  %v1633 = vld [vmem:[%s1631 + $0x4] sm:$0xf]
  %v1634 = vld [vmem:[%s1631 + $0x8] sm:$0xf]
  %v1635 = vld [vmem:[%s1631 + $0xc] sm:$0xf]
  %v1640 = vunpack.c.l.b16 %v1632
  %v1641 = vunpack.c.l.b16 %v1633
  %v1642 = vunpack.c.l.b16 %v1634
  %v1643 = vunpack.c.l.b16 %v1635
  %v1644 = vpack.c.b16 %v1641, %v1640
  %v1645 = vpack.c.b16 %v1643, %v1642
  %v1649 = vsel %vm375, %v1623, 0
  %v1652 = vsel %vm375, %v1624, 0
  %v1655 = vsel %vm375, %v1625, 0
  %v1658 = vsel %vm375, %v1626, 0
  %v1661 = vsel %vm375, %v1627, 0
  %v1664 = vsel %vm375, %v1628, 0
  %v1667 = vsel %vm375, %v1629, 0
  %v1670 = vsel %vm375, %v1630, 0
  %1672 = vmatprep.subr.bf16.mxu0 0
  %1673 = vmatpush1.bf16.msra.mxu0 0
  %1674 = vmatprep.subr.bf16.mxu0 0
  %1675 = vmatpush1.bf16.msra.mxu0 0
  %1676 = vmatprep.subr.bf16.mxu0 0
  %1677 = vmatpush1.bf16.msra.mxu0 0
  %1678 = vmatprep.subr.bf16.mxu0 0
  %1679 = vmatpush1.bf16.msra.mxu0 0
  %1680 = vmatprep.subr.bf16.mxu0 0
  %1681 = vmatpush1.bf16.msra.mxu0 0
  %1682 = vmatprep.subr.bf16.mxu0 0
  %1683 = vmatpush1.bf16.msra.mxu0 0
  %1684 = vmatprep.subr.bf16.mxu0 0
  %1685 = vmatpush1.bf16.msra.mxu0 %v1645
  %1686 = vmatprep.subr.bf16.mxu0 0
  %1687 = vmatpush1.bf16.msra.mxu0 %v1644
  %1688 = vmatprep.subr.bf16.mxu0 0
  %1689 = vmatpush2.bf16.msra.mxu0 0
  %1690 = vmatprep.subr.bf16.mxu0 0
  %1691 = vmatpush2.bf16.msra.mxu0 0
  %1692 = vmatprep.subr.bf16.mxu0 0
  %1693 = vmatpush2.bf16.msra.mxu0 0
  %1694 = vmatprep.subr.bf16.mxu0 0
  %1695 = vmatpush2.bf16.msra.mxu0 0
  %1696 = vmatprep.subr.bf16.mxu0 0
  %1697 = vmatpush2.bf16.msra.mxu0 0
  %1698 = vmatprep.subr.bf16.mxu0 0
  %1699 = vmatpush2.bf16.msra.mxu0 0
  %1700 = vmatprep.subr.bf16.mxu0 0
  %1701 = vmatpush2.bf16.msra.mxu0 0
  %1702 = vmatprep.subr.bf16.mxu0 0
  %1703 = vmatpush2.bf16.msra.mxu0 0
  %1704 = vmatprep.mubr.bf16.mxu0 0
  %1705 = vmatmul.mubr.bf16.gmra.mxu0 %v1649
  %v1706 = vpop.f32.mrf.mxu0
  %v1707 = vadd.f32 0.0, %v1706
  %v1708 = vpop.f32.mrf.mxu0
  %v1709 = vpop.f32.mrf.mxu0
  %v1710 = vadd.f32 0.0, %v1709
  %v1711 = vpop.f32.mrf.mxu0
  %1712 = vmatprep.mubr.bf16.mxu0 0
  %1713 = vmatmul.mubr.bf16.gmra.mxu0 %v1652
  %v1714 = vpop.f32.mrf.mxu0
  %v1715 = vadd.f32 0.0, %v1714
  %v1716 = vpop.f32.mrf.mxu0
  %v1717 = vpop.f32.mrf.mxu0
  %v1718 = vadd.f32 0.0, %v1717
  %v1719 = vpop.f32.mrf.mxu0
  %1720 = vmatprep.mubr.bf16.mxu0 0
  %1721 = vmatmul.mubr.bf16.gmra.mxu0 %v1655
  %v1722 = vpop.f32.mrf.mxu0
  %v1723 = vadd.f32 0.0, %v1722
  %v1724 = vpop.f32.mrf.mxu0
  %v1725 = vpop.f32.mrf.mxu0
  %v1726 = vadd.f32 0.0, %v1725
  %v1727 = vpop.f32.mrf.mxu0
  %1728 = vmatprep.mubr.bf16.mxu0 0
  %1729 = vmatmul.mubr.bf16.gmra.mxu0 %v1658
  %v1730 = vpop.f32.mrf.mxu0
  %v1731 = vadd.f32 0.0, %v1730
  %v1732 = vpop.f32.mrf.mxu0
  %v1733 = vpop.f32.mrf.mxu0
  %v1734 = vadd.f32 0.0, %v1733
  %v1735 = vpop.f32.mrf.mxu0
  %1736 = vmatprep.mubr.bf16.mxu0 0
  %1737 = vmatmul.mubr.bf16.gmra.mxu0 %v1661
  %v1738 = vpop.f32.mrf.mxu0
  %v1739 = vadd.f32 0.0, %v1738
  %v1740 = vpop.f32.mrf.mxu0
  %v1741 = vpop.f32.mrf.mxu0
  %v1742 = vadd.f32 0.0, %v1741
  %v1743 = vpop.f32.mrf.mxu0
  %1744 = vmatprep.mubr.bf16.mxu0 0
  %1745 = vmatmul.mubr.bf16.gmra.mxu0 %v1664
  %v1746 = vpop.f32.mrf.mxu0
  %v1747 = vadd.f32 0.0, %v1746
  %v1748 = vpop.f32.mrf.mxu0
  %v1749 = vpop.f32.mrf.mxu0
  %v1750 = vadd.f32 0.0, %v1749
  %v1751 = vpop.f32.mrf.mxu0
  %1752 = vmatprep.mubr.bf16.mxu0 0
  %1753 = vmatmul.mubr.bf16.gmra.mxu0 %v1667
  %v1754 = vpop.f32.mrf.mxu0
  %v1755 = vadd.f32 0.0, %v1754
  %v1756 = vpop.f32.mrf.mxu0
  %v1757 = vpop.f32.mrf.mxu0
  %v1758 = vadd.f32 0.0, %v1757
  %v1759 = vpop.f32.mrf.mxu0
  %1760 = vmatprep.mubr.bf16.mxu0 0
  %1761 = vmatmul.mubr.bf16.gmra.mxu0 %v1670
  %v1762 = vpop.f32.mrf.mxu0
  %v1763 = vadd.f32 0.0, %v1762
  %v1764 = vpop.f32.mrf.mxu0
  %v1765 = vpop.f32.mrf.mxu0
  %v1766 = vadd.f32 0.0, %v1765
  %v1767 = vpop.f32.mrf.mxu0
  %1768 = vdwg.mxu0
  %v1769 = vadd.f32 %v1492, %v1707
  %v1770 = vadd.f32 %v1493, %v1710
  %v1771 = vadd.f32 %v1494, %v1715
  %v1772 = vadd.f32 %v1495, %v1718
  %v1773 = vadd.f32 %v1496, %v1723
  %v1774 = vadd.f32 %v1497, %v1726
  %v1775 = vadd.f32 %v1498, %v1731
  %v1776 = vadd.f32 %v1499, %v1734
  %v1777 = vadd.f32 %v1500, %v1739
  %v1778 = vadd.f32 %v1501, %v1742
  %v1779 = vadd.f32 %v1502, %v1747
  %v1780 = vadd.f32 %v1503, %v1750
  %v1781 = vadd.f32 %v1504, %v1755
  %v1782 = vadd.f32 %v1505, %v1758
  %v1783 = vadd.f32 %v1506, %v1763
  %v1784 = vadd.f32 %v1507, %v1766
  %v1786 = vsel %vm67, %v955, 0.0
  %s1787 = scalar_lea.vmem %s1, 768
  %v1788 = vld [vmem:[%s1787] sm:$0xff]
  %v1789 = vld [vmem:[%s1787 + $0x8] sm:$0xff]
  %v1790 = vld [vmem:[%s1787 + $0x10] sm:$0xff]
  %v1791 = vld [vmem:[%s1787 + $0x18] sm:$0xff]
  %v1792 = vld [vmem:[%s1787 + $0x20] sm:$0xff]
  %v1793 = vld [vmem:[%s1787 + $0x28] sm:$0xff]
  %v1794 = vld [vmem:[%s1787 + $0x30] sm:$0xff]
  %v1795 = vld [vmem:[%s1787 + $0x38] sm:$0xff]
  %v1796 = vld [vmem:[%s1787 + $0x40] sm:$0xff]
  %v1797 = vld [vmem:[%s1787 + $0x48] sm:$0xff]
  %v1798 = vld [vmem:[%s1787 + $0x50] sm:$0xff]
  %v1799 = vld [vmem:[%s1787 + $0x58] sm:$0xff]
  %v1800 = vld [vmem:[%s1787 + $0x60] sm:$0xff]
  %v1801 = vld [vmem:[%s1787 + $0x68] sm:$0xff]
  %v1802 = vld [vmem:[%s1787 + $0x70] sm:$0xff]
  %v1803 = vld [vmem:[%s1787 + $0x78] sm:$0xff]
  %1805 = vset.pattern.permute.xlu0 0
  %1806 = vperm.xlu0 %1805, %v1788
  %v1807 = vpop.permute.xlu0 %1806
  %1810 = vset.pattern.permute.xlu0 0
  %1811 = vperm.xlu0 %1810, %v1789
  %v1812 = vpop.permute.xlu0 %1811
  %1815 = vset.pattern.permute.xlu0 0
  %1816 = vperm.xlu0 %1815, %v1790
  %v1817 = vpop.permute.xlu0 %1816
  %1820 = vset.pattern.permute.xlu0 0
  %1821 = vperm.xlu0 %1820, %v1791
  %v1822 = vpop.permute.xlu0 %1821
  %1825 = vset.pattern.permute.xlu0 0
  %1826 = vperm.xlu0 %1825, %v1792
  %v1827 = vpop.permute.xlu0 %1826
  %1830 = vset.pattern.permute.xlu0 0
  %1831 = vperm.xlu0 %1830, %v1793
  %v1832 = vpop.permute.xlu0 %1831
  %1835 = vset.pattern.permute.xlu0 0
  %1836 = vperm.xlu0 %1835, %v1794
  %v1837 = vpop.permute.xlu0 %1836
  %1840 = vset.pattern.permute.xlu0 0
  %1841 = vperm.xlu0 %1840, %v1795
  %v1842 = vpop.permute.xlu0 %1841
  %1845 = vset.pattern.permute.xlu0 0
  %1846 = vperm.xlu0 %1845, %v1796
  %v1847 = vpop.permute.xlu0 %1846
  %1850 = vset.pattern.permute.xlu0 0
  %1851 = vperm.xlu0 %1850, %v1797
  %v1852 = vpop.permute.xlu0 %1851
  %1855 = vset.pattern.permute.xlu0 0
  %1856 = vperm.xlu0 %1855, %v1798
  %v1857 = vpop.permute.xlu0 %1856
  %1860 = vset.pattern.permute.xlu0 0
  %1861 = vperm.xlu0 %1860, %v1799
  %v1862 = vpop.permute.xlu0 %1861
  %1865 = vset.pattern.permute.xlu0 0
  %1866 = vperm.xlu0 %1865, %v1800
  %v1867 = vpop.permute.xlu0 %1866
  %1870 = vset.pattern.permute.xlu0 0
  %1871 = vperm.xlu0 %1870, %v1801
  %v1872 = vpop.permute.xlu0 %1871
  %1875 = vset.pattern.permute.xlu0 0
  %1876 = vperm.xlu0 %1875, %v1802
  %v1877 = vpop.permute.xlu0 %1876
  %1880 = vset.pattern.permute.xlu0 0
  %1881 = vperm.xlu0 %1880, %v1803
  %v1882 = vpop.permute.xlu0 %1881
  %v1884 = vmul.f32 %v70, %v1807
  %v1885 = vmul.f32 %v72, %v1812
  %v1886 = vmul.f32 %v74, %v1817
  %v1887 = vmul.f32 %v76, %v1822
  %v1888 = vmul.f32 %v78, %v1827
  %v1889 = vmul.f32 %v80, %v1832
  %v1890 = vmul.f32 %v82, %v1837
  %v1891 = vmul.f32 %v84, %v1842
  %v1892 = vmul.f32 %v86, %v1847
  %v1893 = vmul.f32 %v88, %v1852
  %v1894 = vmul.f32 %v90, %v1857
  %v1895 = vmul.f32 %v92, %v1862
  %v1896 = vmul.f32 %v94, %v1867
  %v1897 = vmul.f32 %v96, %v1872
  %v1898 = vmul.f32 %v956, %v1877
  %v1899 = vmul.f32 %v1786, %v1882
  %v1900 = vpack.c.bf16 %v1885, %v1884
  %v1901 = vpack.c.bf16 %v1887, %v1886
  %v1902 = vpack.c.bf16 %v1889, %v1888
  %v1903 = vpack.c.bf16 %v1891, %v1890
  %v1904 = vpack.c.bf16 %v1893, %v1892
  %v1905 = vpack.c.bf16 %v1895, %v1894
  %v1906 = vpack.c.bf16 %v1897, %v1896
  %v1907 = vpack.c.bf16 %v1899, %v1898
  %s1908 = scalar_lea.vmem %s2, 96
  %v1909 = vld [vmem:[%s1908] sm:$0xf]
  %v1910 = vld [vmem:[%s1908 + $0x4] sm:$0xf]
  %v1911 = vld [vmem:[%s1908 + $0x8] sm:$0xf]
  %v1912 = vld [vmem:[%s1908 + $0xc] sm:$0xf]
  %v1917 = vunpack.c.l.b16 %v1909
  %v1918 = vunpack.c.l.b16 %v1910
  %v1919 = vunpack.c.l.b16 %v1911
  %v1920 = vunpack.c.l.b16 %v1912
  %v1921 = vpack.c.b16 %v1918, %v1917
  %v1922 = vpack.c.b16 %v1920, %v1919
  %v1926 = vsel %vm375, %v1900, 0
  %v1929 = vsel %vm375, %v1901, 0
  %v1932 = vsel %vm375, %v1902, 0
  %v1935 = vsel %vm375, %v1903, 0
  %v1938 = vsel %vm375, %v1904, 0
  %v1941 = vsel %vm375, %v1905, 0
  %v1944 = vsel %vm375, %v1906, 0
  %v1947 = vsel %vm375, %v1907, 0
  %1949 = vmatprep.subr.bf16.mxu0 0
  %1950 = vmatpush1.bf16.msra.mxu0 0
  %1951 = vmatprep.subr.bf16.mxu0 0
  %1952 = vmatpush1.bf16.msra.mxu0 0
  %1953 = vmatprep.subr.bf16.mxu0 0
  %1954 = vmatpush1.bf16.msra.mxu0 0
  %1955 = vmatprep.subr.bf16.mxu0 0
  %1956 = vmatpush1.bf16.msra.mxu0 0
  %1957 = vmatprep.subr.bf16.mxu0 0
  %1958 = vmatpush1.bf16.msra.mxu0 0
  %1959 = vmatprep.subr.bf16.mxu0 0
  %1960 = vmatpush1.bf16.msra.mxu0 0
  %1961 = vmatprep.subr.bf16.mxu0 0
  %1962 = vmatpush1.bf16.msra.mxu0 %v1922
  %1963 = vmatprep.subr.bf16.mxu0 0
  %1964 = vmatpush1.bf16.msra.mxu0 %v1921
  %1965 = vmatprep.subr.bf16.mxu0 0
  %1966 = vmatpush2.bf16.msra.mxu0 0
  %1967 = vmatprep.subr.bf16.mxu0 0
  %1968 = vmatpush2.bf16.msra.mxu0 0
  %1969 = vmatprep.subr.bf16.mxu0 0
  %1970 = vmatpush2.bf16.msra.mxu0 0
  %1971 = vmatprep.subr.bf16.mxu0 0
  %1972 = vmatpush2.bf16.msra.mxu0 0
  %1973 = vmatprep.subr.bf16.mxu0 0
  %1974 = vmatpush2.bf16.msra.mxu0 0
  %1975 = vmatprep.subr.bf16.mxu0 0
  %1976 = vmatpush2.bf16.msra.mxu0 0
  %1977 = vmatprep.subr.bf16.mxu0 0
  %1978 = vmatpush2.bf16.msra.mxu0 0
  %1979 = vmatprep.subr.bf16.mxu0 0
  %1980 = vmatpush2.bf16.msra.mxu0 0
  %1981 = vmatprep.mubr.bf16.mxu0 0
  %1982 = vmatmul.mubr.bf16.gmra.mxu0 %v1926
  %v1983 = vpop.f32.mrf.mxu0
  %v1984 = vadd.f32 0.0, %v1983
  %v1985 = vpop.f32.mrf.mxu0
  %v1986 = vpop.f32.mrf.mxu0
  %v1987 = vadd.f32 0.0, %v1986
  %v1988 = vpop.f32.mrf.mxu0
  %1989 = vmatprep.mubr.bf16.mxu0 0
  %1990 = vmatmul.mubr.bf16.gmra.mxu0 %v1929
  %v1991 = vpop.f32.mrf.mxu0
  %v1992 = vadd.f32 0.0, %v1991
  %v1993 = vpop.f32.mrf.mxu0
  %v1994 = vpop.f32.mrf.mxu0
  %v1995 = vadd.f32 0.0, %v1994
  %v1996 = vpop.f32.mrf.mxu0
  %1997 = vmatprep.mubr.bf16.mxu0 0
  %1998 = vmatmul.mubr.bf16.gmra.mxu0 %v1932
  %v1999 = vpop.f32.mrf.mxu0
  %v2000 = vadd.f32 0.0, %v1999
  %v2001 = vpop.f32.mrf.mxu0
  %v2002 = vpop.f32.mrf.mxu0
  %v2003 = vadd.f32 0.0, %v2002
  %v2004 = vpop.f32.mrf.mxu0
  %2005 = vmatprep.mubr.bf16.mxu0 0
  %2006 = vmatmul.mubr.bf16.gmra.mxu0 %v1935
  %v2007 = vpop.f32.mrf.mxu0
  %v2008 = vadd.f32 0.0, %v2007
  %v2009 = vpop.f32.mrf.mxu0
  %v2010 = vpop.f32.mrf.mxu0
  %v2011 = vadd.f32 0.0, %v2010
  %v2012 = vpop.f32.mrf.mxu0
  %2013 = vmatprep.mubr.bf16.mxu0 0
  %2014 = vmatmul.mubr.bf16.gmra.mxu0 %v1938
  %v2015 = vpop.f32.mrf.mxu0
  %v2016 = vadd.f32 0.0, %v2015
  %v2017 = vpop.f32.mrf.mxu0
  %v2018 = vpop.f32.mrf.mxu0
  %v2019 = vadd.f32 0.0, %v2018
  %v2020 = vpop.f32.mrf.mxu0
  %2021 = vmatprep.mubr.bf16.mxu0 0
  %2022 = vmatmul.mubr.bf16.gmra.mxu0 %v1941
  %v2023 = vpop.f32.mrf.mxu0
  %v2024 = vadd.f32 0.0, %v2023
  %v2025 = vpop.f32.mrf.mxu0
  %v2026 = vpop.f32.mrf.mxu0
  %v2027 = vadd.f32 0.0, %v2026
  %v2028 = vpop.f32.mrf.mxu0
  %2029 = vmatprep.mubr.bf16.mxu0 0
  %2030 = vmatmul.mubr.bf16.gmra.mxu0 %v1944
  %v2031 = vpop.f32.mrf.mxu0
  %v2032 = vadd.f32 0.0, %v2031
  %v2033 = vpop.f32.mrf.mxu0
  %v2034 = vpop.f32.mrf.mxu0
  %v2035 = vadd.f32 0.0, %v2034
  %v2036 = vpop.f32.mrf.mxu0
  %2037 = vmatprep.mubr.bf16.mxu0 0
  %2038 = vmatmul.mubr.bf16.gmra.mxu0 %v1947
  %v2039 = vpop.f32.mrf.mxu0
  %v2040 = vadd.f32 0.0, %v2039
  %v2041 = vpop.f32.mrf.mxu0
  %v2042 = vpop.f32.mrf.mxu0
  %v2043 = vadd.f32 0.0, %v2042
  %v2044 = vpop.f32.mrf.mxu0
  %2045 = vdwg.mxu0
  %v2046 = vadd.f32 %v1769, %v1984
  %v2047 = vadd.f32 %v1770, %v1987
  %v2048 = vadd.f32 %v1771, %v1992
  %v2049 = vadd.f32 %v1772, %v1995
  %v2050 = vadd.f32 %v1773, %v2000
  %v2051 = vadd.f32 %v1774, %v2003
  %v2052 = vadd.f32 %v1775, %v2008
  %v2053 = vadd.f32 %v1776, %v2011
  %v2054 = vadd.f32 %v1777, %v2016
  %v2055 = vadd.f32 %v1778, %v2019
  %v2056 = vadd.f32 %v1779, %v2024
  %v2057 = vadd.f32 %v1780, %v2027
  %v2058 = vadd.f32 %v1781, %v2032
  %v2059 = vadd.f32 %v1782, %v2035
  %v2060 = vadd.f32 %v1783, %v2040
  %v2061 = vadd.f32 %v1784, %v2043
  %s2062 = scalar_lea.vmem %s1, 896
  %v2063 = vld [vmem:[%s2062] sm:$0xff]
  %v2064 = vld [vmem:[%s2062 + $0x8] sm:$0xff]
  %v2065 = vld [vmem:[%s2062 + $0x10] sm:$0xff]
  %v2066 = vld [vmem:[%s2062 + $0x18] sm:$0xff]
  %v2067 = vld [vmem:[%s2062 + $0x20] sm:$0xff]
  %v2068 = vld [vmem:[%s2062 + $0x28] sm:$0xff]
  %v2069 = vld [vmem:[%s2062 + $0x30] sm:$0xff]
  %v2070 = vld [vmem:[%s2062 + $0x38] sm:$0xff]
  %v2071 = vld [vmem:[%s2062 + $0x40] sm:$0xff]
  %v2072 = vld [vmem:[%s2062 + $0x48] sm:$0xff]
  %v2073 = vld [vmem:[%s2062 + $0x50] sm:$0xff]
  %v2074 = vld [vmem:[%s2062 + $0x58] sm:$0xff]
  %v2075 = vld [vmem:[%s2062 + $0x60] sm:$0xff]
  %v2076 = vld [vmem:[%s2062 + $0x68] sm:$0xff]
  %v2077 = vld [vmem:[%s2062 + $0x70] sm:$0xff]
  %v2078 = vld [vmem:[%s2062 + $0x78] sm:$0xff]
  %2080 = vset.pattern.permute.xlu0 0
  %2081 = vperm.xlu0 %2080, %v2063
  %v2082 = vpop.permute.xlu0 %2081
  %2085 = vset.pattern.permute.xlu0 0
  %2086 = vperm.xlu0 %2085, %v2064
  %v2087 = vpop.permute.xlu0 %2086
  %2090 = vset.pattern.permute.xlu0 0
  %2091 = vperm.xlu0 %2090, %v2065
  %v2092 = vpop.permute.xlu0 %2091
  %2095 = vset.pattern.permute.xlu0 0
  %2096 = vperm.xlu0 %2095, %v2066
  %v2097 = vpop.permute.xlu0 %2096
  %2100 = vset.pattern.permute.xlu0 0
  %2101 = vperm.xlu0 %2100, %v2067
  %v2102 = vpop.permute.xlu0 %2101
  %2105 = vset.pattern.permute.xlu0 0
  %2106 = vperm.xlu0 %2105, %v2068
  %v2107 = vpop.permute.xlu0 %2106
  %2110 = vset.pattern.permute.xlu0 0
  %2111 = vperm.xlu0 %2110, %v2069
  %v2112 = vpop.permute.xlu0 %2111
  %2115 = vset.pattern.permute.xlu0 0
  %2116 = vperm.xlu0 %2115, %v2070
  %v2117 = vpop.permute.xlu0 %2116
  %2120 = vset.pattern.permute.xlu0 0
  %2121 = vperm.xlu0 %2120, %v2071
  %v2122 = vpop.permute.xlu0 %2121
  %2125 = vset.pattern.permute.xlu0 0
  %2126 = vperm.xlu0 %2125, %v2072
  %v2127 = vpop.permute.xlu0 %2126
  %2130 = vset.pattern.permute.xlu0 0
  %2131 = vperm.xlu0 %2130, %v2073
  %v2132 = vpop.permute.xlu0 %2131
  %2135 = vset.pattern.permute.xlu0 0
  %2136 = vperm.xlu0 %2135, %v2074
  %v2137 = vpop.permute.xlu0 %2136
  %2140 = vset.pattern.permute.xlu0 0
  %2141 = vperm.xlu0 %2140, %v2075
  %v2142 = vpop.permute.xlu0 %2141
  %2145 = vset.pattern.permute.xlu0 0
  %2146 = vperm.xlu0 %2145, %v2076
  %v2147 = vpop.permute.xlu0 %2146
  %2150 = vset.pattern.permute.xlu0 0
  %2151 = vperm.xlu0 %2150, %v2077
  %v2152 = vpop.permute.xlu0 %2151
  %2155 = vset.pattern.permute.xlu0 0
  %2156 = vperm.xlu0 %2155, %v2078
  %v2157 = vpop.permute.xlu0 %2156
  %v2159 = vmul.f32 %v37, %v2082
  %v2160 = vmul.f32 %v38, %v2087
  %v2161 = vmul.f32 %v39, %v2092
  %v2162 = vmul.f32 %v40, %v2097
  %v2163 = vmul.f32 %v41, %v2102
  %v2164 = vmul.f32 %v42, %v2107
  %v2165 = vmul.f32 %v43, %v2112
  %v2166 = vmul.f32 %v44, %v2117
  %v2167 = vmul.f32 %v45, %v2122
  %v2168 = vmul.f32 %v46, %v2127
  %v2169 = vmul.f32 %v47, %v2132
  %v2170 = vmul.f32 %v48, %v2137
  %v2171 = vmul.f32 %v49, %v2142
  %v2172 = vmul.f32 %v50, %v2147
  %v2173 = vmul.f32 %v51, %v2152
  %v2174 = vmul.f32 %v2157, 0.0
  %v2175 = vpack.c.bf16 %v2160, %v2159
  %v2176 = vpack.c.bf16 %v2162, %v2161
  %v2177 = vpack.c.bf16 %v2164, %v2163
  %v2178 = vpack.c.bf16 %v2166, %v2165
  %v2179 = vpack.c.bf16 %v2168, %v2167
  %v2180 = vpack.c.bf16 %v2170, %v2169
  %v2181 = vpack.c.bf16 %v2172, %v2171
  %v2182 = vpack.c.bf16 %v2174, %v2173
  %s2183 = scalar_lea.vmem %s2, 112
  %v2184 = vld [vmem:[%s2183] sm:$0xf]
  %v2185 = vld [vmem:[%s2183 + $0x4] sm:$0xf]
  %v2186 = vld [vmem:[%s2183 + $0x8] sm:$0xf]
  %v2187 = vld [vmem:[%s2183 + $0xc] sm:$0xf]
  %v2192 = vunpack.c.l.b16 %v2184
  %v2193 = vunpack.c.l.b16 %v2185
  %v2194 = vunpack.c.l.b16 %v2186
  %v2195 = vunpack.c.l.b16 %v2187
  %v2196 = vpack.c.b16 %v2193, %v2192
  %v2197 = vpack.c.b16 %v2195, %v2194
  %v2201 = vsel %vm375, %v2175, 0
  %v2204 = vsel %vm375, %v2176, 0
  %v2207 = vsel %vm375, %v2177, 0
  %v2210 = vsel %vm375, %v2178, 0
  %v2213 = vsel %vm375, %v2179, 0
  %v2216 = vsel %vm375, %v2180, 0
  %v2219 = vsel %vm375, %v2181, 0
  %v2222 = vsel %vm375, %v2182, 0
  %2224 = vmatprep.subr.bf16.mxu0 0
  %2225 = vmatpush1.bf16.msra.mxu0 0
  %2226 = vmatprep.subr.bf16.mxu0 0
  %2227 = vmatpush1.bf16.msra.mxu0 0
  %2228 = vmatprep.subr.bf16.mxu0 0
  %2229 = vmatpush1.bf16.msra.mxu0 0
  %2230 = vmatprep.subr.bf16.mxu0 0
  %2231 = vmatpush1.bf16.msra.mxu0 0
  %2232 = vmatprep.subr.bf16.mxu0 0
  %2233 = vmatpush1.bf16.msra.mxu0 0
  %2234 = vmatprep.subr.bf16.mxu0 0
  %2235 = vmatpush1.bf16.msra.mxu0 0
  %2236 = vmatprep.subr.bf16.mxu0 0
  %2237 = vmatpush1.bf16.msra.mxu0 %v2197
  %2238 = vmatprep.subr.bf16.mxu0 0
  %2239 = vmatpush1.bf16.msra.mxu0 %v2196
  %2240 = vmatprep.subr.bf16.mxu0 0
  %2241 = vmatpush2.bf16.msra.mxu0 0
  %2242 = vmatprep.subr.bf16.mxu0 0
  %2243 = vmatpush2.bf16.msra.mxu0 0
  %2244 = vmatprep.subr.bf16.mxu0 0
  %2245 = vmatpush2.bf16.msra.mxu0 0
  %2246 = vmatprep.subr.bf16.mxu0 0
  %2247 = vmatpush2.bf16.msra.mxu0 0
  %2248 = vmatprep.subr.bf16.mxu0 0
  %2249 = vmatpush2.bf16.msra.mxu0 0
  %2250 = vmatprep.subr.bf16.mxu0 0
  %2251 = vmatpush2.bf16.msra.mxu0 0
  %2252 = vmatprep.subr.bf16.mxu0 0
  %2253 = vmatpush2.bf16.msra.mxu0 0
  %2254 = vmatprep.subr.bf16.mxu0 0
  %2255 = vmatpush2.bf16.msra.mxu0 0
  %2256 = vmatprep.mubr.bf16.mxu0 0
  %2257 = vmatmul.mubr.bf16.gmra.mxu0 %v2201
  %v2258 = vpop.f32.mrf.mxu0
  %v2259 = vadd.f32 0.0, %v2258
  %v2260 = vpop.f32.mrf.mxu0
  %v2261 = vpop.f32.mrf.mxu0
  %v2262 = vadd.f32 0.0, %v2261
  %v2263 = vpop.f32.mrf.mxu0
  %2264 = vmatprep.mubr.bf16.mxu0 0
  %2265 = vmatmul.mubr.bf16.gmra.mxu0 %v2204
  %v2266 = vpop.f32.mrf.mxu0
  %v2267 = vadd.f32 0.0, %v2266
  %v2268 = vpop.f32.mrf.mxu0
  %v2269 = vpop.f32.mrf.mxu0
  %v2270 = vadd.f32 0.0, %v2269
  %v2271 = vpop.f32.mrf.mxu0
  %2272 = vmatprep.mubr.bf16.mxu0 0
  %2273 = vmatmul.mubr.bf16.gmra.mxu0 %v2207
  %v2274 = vpop.f32.mrf.mxu0
  %v2275 = vadd.f32 0.0, %v2274
  %v2276 = vpop.f32.mrf.mxu0
  %v2277 = vpop.f32.mrf.mxu0
  %v2278 = vadd.f32 0.0, %v2277
  %v2279 = vpop.f32.mrf.mxu0
  %2280 = vmatprep.mubr.bf16.mxu0 0
  %2281 = vmatmul.mubr.bf16.gmra.mxu0 %v2210
  %v2282 = vpop.f32.mrf.mxu0
  %v2283 = vadd.f32 0.0, %v2282
  %v2284 = vpop.f32.mrf.mxu0
  %v2285 = vpop.f32.mrf.mxu0
  %v2286 = vadd.f32 0.0, %v2285
  %v2287 = vpop.f32.mrf.mxu0
  %2288 = vmatprep.mubr.bf16.mxu0 0
  %2289 = vmatmul.mubr.bf16.gmra.mxu0 %v2213
  %v2290 = vpop.f32.mrf.mxu0
  %v2291 = vadd.f32 0.0, %v2290
  %v2292 = vpop.f32.mrf.mxu0
  %v2293 = vpop.f32.mrf.mxu0
  %v2294 = vadd.f32 0.0, %v2293
  %v2295 = vpop.f32.mrf.mxu0
  %2296 = vmatprep.mubr.bf16.mxu0 0
  %2297 = vmatmul.mubr.bf16.gmra.mxu0 %v2216
  %v2298 = vpop.f32.mrf.mxu0
  %v2299 = vadd.f32 0.0, %v2298
  %v2300 = vpop.f32.mrf.mxu0
  %v2301 = vpop.f32.mrf.mxu0
  %v2302 = vadd.f32 0.0, %v2301
  %v2303 = vpop.f32.mrf.mxu0
  %2304 = vmatprep.mubr.bf16.mxu0 0
  %2305 = vmatmul.mubr.bf16.gmra.mxu0 %v2219
  %v2306 = vpop.f32.mrf.mxu0
  %v2307 = vadd.f32 0.0, %v2306
  %v2308 = vpop.f32.mrf.mxu0
  %v2309 = vpop.f32.mrf.mxu0
  %v2310 = vadd.f32 0.0, %v2309
  %v2311 = vpop.f32.mrf.mxu0
  %2312 = vmatprep.mubr.bf16.mxu0 0
  %2313 = vmatmul.mubr.bf16.gmra.mxu0 %v2222
  %v2314 = vpop.f32.mrf.mxu0
  %v2315 = vadd.f32 0.0, %v2314
  %v2316 = vpop.f32.mrf.mxu0
  %v2317 = vpop.f32.mrf.mxu0
  %v2318 = vadd.f32 0.0, %v2317
  %v2319 = vpop.f32.mrf.mxu0
  %2320 = vdwg.mxu0
  %v2321 = vadd.f32 %v2046, %v2259
  %v2322 = vadd.f32 %v2047, %v2262
  %v2323 = vadd.f32 %v2048, %v2267
  %v2324 = vadd.f32 %v2049, %v2270
  %v2325 = vadd.f32 %v2050, %v2275
  %v2326 = vadd.f32 %v2051, %v2278
  %v2327 = vadd.f32 %v2052, %v2283
  %v2328 = vadd.f32 %v2053, %v2286
  %v2329 = vadd.f32 %v2054, %v2291
  %v2330 = vadd.f32 %v2055, %v2294
  %v2331 = vadd.f32 %v2056, %v2299
  %v2332 = vadd.f32 %v2057, %v2302
  %v2333 = vadd.f32 %v2058, %v2307
  %v2334 = vadd.f32 %v2059, %v2310
  %v2335 = vadd.f32 %v2060, %v2315
  %v2336 = vadd.f32 %v2061, %v2318
  %s2337 = scalar_lea.vmem %s1, 1024
  %v2338 = vld [vmem:[%s2337] sm:$0xff]
  %v2339 = vld [vmem:[%s2337 + $0x8] sm:$0xff]
  %v2340 = vld [vmem:[%s2337 + $0x10] sm:$0xff]
  %v2341 = vld [vmem:[%s2337 + $0x18] sm:$0xff]
  %v2342 = vld [vmem:[%s2337 + $0x20] sm:$0xff]
  %v2343 = vld [vmem:[%s2337 + $0x28] sm:$0xff]
  %v2344 = vld [vmem:[%s2337 + $0x30] sm:$0xff]
  %v2345 = vld [vmem:[%s2337 + $0x38] sm:$0xff]
  %v2346 = vld [vmem:[%s2337 + $0x40] sm:$0xff]
  %v2347 = vld [vmem:[%s2337 + $0x48] sm:$0xff]
  %v2348 = vld [vmem:[%s2337 + $0x50] sm:$0xff]
  %v2349 = vld [vmem:[%s2337 + $0x58] sm:$0xff]
  %v2350 = vld [vmem:[%s2337 + $0x60] sm:$0xff]
  %v2351 = vld [vmem:[%s2337 + $0x68] sm:$0xff]
  %v2352 = vld [vmem:[%s2337 + $0x70] sm:$0xff]
  %v2353 = vld [vmem:[%s2337 + $0x78] sm:$0xff]
  %2355 = vset.pattern.permute.xlu0 0
  %2356 = vperm.xlu0 %2355, %v2338
  %v2357 = vpop.permute.xlu0 %2356
  %2360 = vset.pattern.permute.xlu0 0
  %2361 = vperm.xlu0 %2360, %v2339
  %v2362 = vpop.permute.xlu0 %2361
  %2365 = vset.pattern.permute.xlu0 0
  %2366 = vperm.xlu0 %2365, %v2340
  %v2367 = vpop.permute.xlu0 %2366
  %2370 = vset.pattern.permute.xlu0 0
  %2371 = vperm.xlu0 %2370, %v2341
  %v2372 = vpop.permute.xlu0 %2371
  %2375 = vset.pattern.permute.xlu0 0
  %2376 = vperm.xlu0 %2375, %v2342
  %v2377 = vpop.permute.xlu0 %2376
  %2380 = vset.pattern.permute.xlu0 0
  %2381 = vperm.xlu0 %2380, %v2343
  %v2382 = vpop.permute.xlu0 %2381
  %2385 = vset.pattern.permute.xlu0 0
  %2386 = vperm.xlu0 %2385, %v2344
  %v2387 = vpop.permute.xlu0 %2386
  %2390 = vset.pattern.permute.xlu0 0
  %2391 = vperm.xlu0 %2390, %v2345
  %v2392 = vpop.permute.xlu0 %2391
  %2395 = vset.pattern.permute.xlu0 0
  %2396 = vperm.xlu0 %2395, %v2346
  %v2397 = vpop.permute.xlu0 %2396
  %2400 = vset.pattern.permute.xlu0 0
  %2401 = vperm.xlu0 %2400, %v2347
  %v2402 = vpop.permute.xlu0 %2401
  %2405 = vset.pattern.permute.xlu0 0
  %2406 = vperm.xlu0 %2405, %v2348
  %v2407 = vpop.permute.xlu0 %2406
  %2410 = vset.pattern.permute.xlu0 0
  %2411 = vperm.xlu0 %2410, %v2349
  %v2412 = vpop.permute.xlu0 %2411
  %2415 = vset.pattern.permute.xlu0 0
  %2416 = vperm.xlu0 %2415, %v2350
  %v2417 = vpop.permute.xlu0 %2416
  %2420 = vset.pattern.permute.xlu0 0
  %2421 = vperm.xlu0 %2420, %v2351
  %v2422 = vpop.permute.xlu0 %2421
  %2425 = vset.pattern.permute.xlu0 0
  %2426 = vperm.xlu0 %2425, %v2352
  %v2427 = vpop.permute.xlu0 %2426
  %2430 = vset.pattern.permute.xlu0 0
  %2431 = vperm.xlu0 %2430, %v2353
  %v2432 = vpop.permute.xlu0 %2431
  %v2434 = vmul.f32 %v636, %v2357
  %v2435 = vmul.f32 %v638, %v2362
  %v2436 = vmul.f32 %v640, %v2367
  %v2437 = vmul.f32 %v642, %v2372
  %v2438 = vmul.f32 %v644, %v2377
  %v2439 = vmul.f32 %v646, %v2382
  %v2440 = vmul.f32 %v648, %v2387
  %v2441 = vmul.f32 %v650, %v2392
  %v2442 = vmul.f32 %v652, %v2397
  %v2443 = vmul.f32 %v654, %v2402
  %v2444 = vmul.f32 %v656, %v2407
  %v2445 = vmul.f32 %v658, %v2412
  %v2446 = vmul.f32 %v660, %v2417
  %v2447 = vmul.f32 %v662, %v2422
  %v2448 = vmul.f32 %v1509, %v2427
  %v2449 = vmul.f32 %v2432, 0.0
  %v2450 = vpack.c.bf16 %v2435, %v2434
  %v2451 = vpack.c.bf16 %v2437, %v2436
  %v2452 = vpack.c.bf16 %v2439, %v2438
  %v2453 = vpack.c.bf16 %v2441, %v2440
  %v2454 = vpack.c.bf16 %v2443, %v2442
  %v2455 = vpack.c.bf16 %v2445, %v2444
  %v2456 = vpack.c.bf16 %v2447, %v2446
  %v2457 = vpack.c.bf16 %v2449, %v2448
  %s2458 = scalar_lea.vmem %s2, 128
  %v2459 = vld [vmem:[%s2458] sm:$0xf]
  %v2460 = vld [vmem:[%s2458 + $0x4] sm:$0xf]
  %v2461 = vld [vmem:[%s2458 + $0x8] sm:$0xf]
  %v2462 = vld [vmem:[%s2458 + $0xc] sm:$0xf]
  %v2467 = vunpack.c.l.b16 %v2459
  %v2468 = vunpack.c.l.b16 %v2460
  %v2469 = vunpack.c.l.b16 %v2461
  %v2470 = vunpack.c.l.b16 %v2462
  %v2471 = vpack.c.b16 %v2468, %v2467
  %v2472 = vpack.c.b16 %v2470, %v2469
  %v2476 = vsel %vm375, %v2450, 0
  %v2479 = vsel %vm375, %v2451, 0
  %v2482 = vsel %vm375, %v2452, 0
  %v2485 = vsel %vm375, %v2453, 0
  %v2488 = vsel %vm375, %v2454, 0
  %v2491 = vsel %vm375, %v2455, 0
  %v2494 = vsel %vm375, %v2456, 0
  %v2497 = vsel %vm375, %v2457, 0
  %2499 = vmatprep.subr.bf16.mxu0 0
  %2500 = vmatpush1.bf16.msra.mxu0 0
  %2501 = vmatprep.subr.bf16.mxu0 0
  %2502 = vmatpush1.bf16.msra.mxu0 0
  %2503 = vmatprep.subr.bf16.mxu0 0
  %2504 = vmatpush1.bf16.msra.mxu0 0
  %2505 = vmatprep.subr.bf16.mxu0 0
  %2506 = vmatpush1.bf16.msra.mxu0 0
  %2507 = vmatprep.subr.bf16.mxu0 0
  %2508 = vmatpush1.bf16.msra.mxu0 0
  %2509 = vmatprep.subr.bf16.mxu0 0
  %2510 = vmatpush1.bf16.msra.mxu0 0
  %2511 = vmatprep.subr.bf16.mxu0 0
  %2512 = vmatpush1.bf16.msra.mxu0 %v2472
  %2513 = vmatprep.subr.bf16.mxu0 0
  %2514 = vmatpush1.bf16.msra.mxu0 %v2471
  %2515 = vmatprep.subr.bf16.mxu0 0
  %2516 = vmatpush2.bf16.msra.mxu0 0
  %2517 = vmatprep.subr.bf16.mxu0 0
  %2518 = vmatpush2.bf16.msra.mxu0 0
  %2519 = vmatprep.subr.bf16.mxu0 0
  %2520 = vmatpush2.bf16.msra.mxu0 0
  %2521 = vmatprep.subr.bf16.mxu0 0
  %2522 = vmatpush2.bf16.msra.mxu0 0
  %2523 = vmatprep.subr.bf16.mxu0 0
  %2524 = vmatpush2.bf16.msra.mxu0 0
  %2525 = vmatprep.subr.bf16.mxu0 0
  %2526 = vmatpush2.bf16.msra.mxu0 0
  %2527 = vmatprep.subr.bf16.mxu0 0
  %2528 = vmatpush2.bf16.msra.mxu0 0
  %2529 = vmatprep.subr.bf16.mxu0 0
  %2530 = vmatpush2.bf16.msra.mxu0 0
  %2531 = vmatprep.mubr.bf16.mxu0 0
  %2532 = vmatmul.mubr.bf16.gmra.mxu0 %v2476
  %v2533 = vpop.f32.mrf.mxu0
  %v2534 = vadd.f32 0.0, %v2533
  %v2535 = vpop.f32.mrf.mxu0
  %v2536 = vpop.f32.mrf.mxu0
  %v2537 = vadd.f32 0.0, %v2536
  %v2538 = vpop.f32.mrf.mxu0
  %2539 = vmatprep.mubr.bf16.mxu0 0
  %2540 = vmatmul.mubr.bf16.gmra.mxu0 %v2479
  %v2541 = vpop.f32.mrf.mxu0
  %v2542 = vadd.f32 0.0, %v2541
  %v2543 = vpop.f32.mrf.mxu0
  %v2544 = vpop.f32.mrf.mxu0
  %v2545 = vadd.f32 0.0, %v2544
  %v2546 = vpop.f32.mrf.mxu0
  %2547 = vmatprep.mubr.bf16.mxu0 0
  %2548 = vmatmul.mubr.bf16.gmra.mxu0 %v2482
  %v2549 = vpop.f32.mrf.mxu0
  %v2550 = vadd.f32 0.0, %v2549
  %v2551 = vpop.f32.mrf.mxu0
  %v2552 = vpop.f32.mrf.mxu0
  %v2553 = vadd.f32 0.0, %v2552
  %v2554 = vpop.f32.mrf.mxu0
  %2555 = vmatprep.mubr.bf16.mxu0 0
  %2556 = vmatmul.mubr.bf16.gmra.mxu0 %v2485
  %v2557 = vpop.f32.mrf.mxu0
  %v2558 = vadd.f32 0.0, %v2557
  %v2559 = vpop.f32.mrf.mxu0
  %v2560 = vpop.f32.mrf.mxu0
  %v2561 = vadd.f32 0.0, %v2560
  %v2562 = vpop.f32.mrf.mxu0
  %2563 = vmatprep.mubr.bf16.mxu0 0
  %2564 = vmatmul.mubr.bf16.gmra.mxu0 %v2488
  %v2565 = vpop.f32.mrf.mxu0
  %v2566 = vadd.f32 0.0, %v2565
  %v2567 = vpop.f32.mrf.mxu0
  %v2568 = vpop.f32.mrf.mxu0
  %v2569 = vadd.f32 0.0, %v2568
  %v2570 = vpop.f32.mrf.mxu0
  %2571 = vmatprep.mubr.bf16.mxu0 0
  %2572 = vmatmul.mubr.bf16.gmra.mxu0 %v2491
  %v2573 = vpop.f32.mrf.mxu0
  %v2574 = vadd.f32 0.0, %v2573
  %v2575 = vpop.f32.mrf.mxu0
  %v2576 = vpop.f32.mrf.mxu0
  %v2577 = vadd.f32 0.0, %v2576
  %v2578 = vpop.f32.mrf.mxu0
  %2579 = vmatprep.mubr.bf16.mxu0 0
  %2580 = vmatmul.mubr.bf16.gmra.mxu0 %v2494
  %v2581 = vpop.f32.mrf.mxu0
  %v2582 = vadd.f32 0.0, %v2581
  %v2583 = vpop.f32.mrf.mxu0
  %v2584 = vpop.f32.mrf.mxu0
  %v2585 = vadd.f32 0.0, %v2584
  %v2586 = vpop.f32.mrf.mxu0
  %2587 = vmatprep.mubr.bf16.mxu0 0
  %2588 = vmatmul.mubr.bf16.gmra.mxu0 %v2497
  %v2589 = vpop.f32.mrf.mxu0
  %v2590 = vadd.f32 0.0, %v2589
  %v2591 = vpop.f32.mrf.mxu0
  %v2592 = vpop.f32.mrf.mxu0
  %v2593 = vadd.f32 0.0, %v2592
  %v2594 = vpop.f32.mrf.mxu0
  %2595 = vdwg.mxu0
  %v2596 = vadd.f32 %v2321, %v2534
  %v2597 = vadd.f32 %v2322, %v2537
  %v2598 = vadd.f32 %v2323, %v2542
  %v2599 = vadd.f32 %v2324, %v2545
  %v2600 = vadd.f32 %v2325, %v2550
  %v2601 = vadd.f32 %v2326, %v2553
  %v2602 = vadd.f32 %v2327, %v2558
  %v2603 = vadd.f32 %v2328, %v2561
  %v2604 = vadd.f32 %v2329, %v2566
  %v2605 = vadd.f32 %v2330, %v2569
  %v2606 = vadd.f32 %v2331, %v2574
  %v2607 = vadd.f32 %v2332, %v2577
  %v2608 = vadd.f32 %v2333, %v2582
  %v2609 = vadd.f32 %v2334, %v2585
  %v2610 = vadd.f32 %v2335, %v2590
  %v2611 = vadd.f32 %v2336, %v2593
  %v2612 = vld [vmem:[%s3] sm:$0x1]
  %v2614 = vlaneseq
  %v2615 = vshrl.u32 %v2614, 7
  %v2616 = vsub.s32 0, %v2615
  %v2617 = vrot.slane %v2612, %v2616
  %v2619 = vadd.f32 %v2596, %v2617
  %v2620 = vadd.f32 %v2597, %v2617
  %v2621 = vadd.f32 %v2598, %v2617
  %v2622 = vadd.f32 %v2599, %v2617
  %v2623 = vadd.f32 %v2600, %v2617
  %v2624 = vadd.f32 %v2601, %v2617
  %v2625 = vadd.f32 %v2602, %v2617
  %v2626 = vadd.f32 %v2603, %v2617
  %v2627 = vadd.f32 %v2604, %v2617
  %v2628 = vadd.f32 %v2605, %v2617
  %v2629 = vadd.f32 %v2606, %v2617
  %v2630 = vadd.f32 %v2607, %v2617
  %v2631 = vadd.f32 %v2608, %v2617
  %v2632 = vadd.f32 %v2609, %v2617
  %v2633 = vadd.f32 %v2610, %v2617
  %v2634 = vadd.f32 %v2611, %v2617
  %v2635 = vsel %vm375, %v2619, 0.0
  %v2636 = vsel %vm375, %v2620, 0.0
  %v2637 = vadd.f32 %v2635, %v2636
  %v2638 = vsel %vm375, %v2621, 0.0
  %v2639 = vadd.f32 %v2637, %v2638
  %v2640 = vsel %vm375, %v2622, 0.0
  %v2641 = vadd.f32 %v2639, %v2640
  %v2642 = vsel %vm375, %v2623, 0.0
  %v2643 = vadd.f32 %v2641, %v2642
  %v2644 = vsel %vm375, %v2624, 0.0
  %v2645 = vadd.f32 %v2643, %v2644
  %v2646 = vsel %vm375, %v2625, 0.0
  %v2647 = vadd.f32 %v2645, %v2646
  %v2648 = vsel %vm375, %v2626, 0.0
  %v2649 = vadd.f32 %v2647, %v2648
  %v2650 = vsel %vm375, %v2627, 0.0
  %v2651 = vadd.f32 %v2649, %v2650
  %v2652 = vsel %vm375, %v2628, 0.0
  %v2653 = vadd.f32 %v2651, %v2652
  %v2654 = vsel %vm375, %v2629, 0.0
  %v2655 = vadd.f32 %v2653, %v2654
  %v2656 = vsel %vm375, %v2630, 0.0
  %v2657 = vadd.f32 %v2655, %v2656
  %v2658 = vsel %vm375, %v2631, 0.0
  %v2659 = vadd.f32 %v2657, %v2658
  %v2660 = vsel %vm375, %v2632, 0.0
  %v2661 = vadd.f32 %v2659, %v2660
  %v2662 = vsel %vm375, %v2633, 0.0
  %v2663 = vadd.f32 %v2661, %v2662
  %v2664 = vsel %vm375, %v2634, 0.0
  %v2665 = vadd.f32 %v2663, %v2664
  %v2666 = vrot.slane %v2665, 4
  %v2667 = vadd.f32 %v2665, %v2666
  %v2668 = vrot.slane %v2667, 2
  %v2669 = vadd.f32 %v2667, %v2668
  %v2670 = vrot.slane %v2669, 1
  %v2671 = vadd.f32 %v2669, %v2670
  %v2672 = vrcp.pop 128.0
  %v2673 = vmul.f32 %v2671, %v2672
  %v2674 = vsub.f32 %v2619, %v2673
  %v2675 = vsub.f32 %v2620, %v2673
  %v2676 = vsub.f32 %v2621, %v2673
  %v2677 = vsub.f32 %v2622, %v2673
  %v2678 = vsub.f32 %v2623, %v2673
  %v2679 = vsub.f32 %v2624, %v2673
  %v2680 = vsub.f32 %v2625, %v2673
  %v2681 = vsub.f32 %v2626, %v2673
  %v2682 = vsub.f32 %v2627, %v2673
  %v2683 = vsub.f32 %v2628, %v2673
  %v2684 = vsub.f32 %v2629, %v2673
  %v2685 = vsub.f32 %v2630, %v2673
  %v2686 = vsub.f32 %v2631, %v2673
  %v2687 = vsub.f32 %v2632, %v2673
  %v2688 = vsub.f32 %v2633, %v2673
  %v2689 = vsub.f32 %v2634, %v2673
  %v2690 = vmul.f32 %v2674, %v2674
  %v2691 = vmul.f32 %v2675, %v2675
  %v2692 = vmul.f32 %v2676, %v2676
  %v2693 = vmul.f32 %v2677, %v2677
  %v2694 = vmul.f32 %v2678, %v2678
  %v2695 = vmul.f32 %v2679, %v2679
  %v2696 = vmul.f32 %v2680, %v2680
  %v2697 = vmul.f32 %v2681, %v2681
  %v2698 = vmul.f32 %v2682, %v2682
  %v2699 = vmul.f32 %v2683, %v2683
  %v2700 = vmul.f32 %v2684, %v2684
  %v2701 = vmul.f32 %v2685, %v2685
  %v2702 = vmul.f32 %v2686, %v2686
  %v2703 = vmul.f32 %v2687, %v2687
  %v2704 = vmul.f32 %v2688, %v2688
  %v2705 = vmul.f32 %v2689, %v2689
  %v2706 = vsel %vm375, %v2690, 0.0
  %v2707 = vsel %vm375, %v2691, 0.0
  %v2708 = vadd.f32 %v2706, %v2707
  %v2709 = vsel %vm375, %v2692, 0.0
  %v2710 = vadd.f32 %v2708, %v2709
  %v2711 = vsel %vm375, %v2693, 0.0
  %v2712 = vadd.f32 %v2710, %v2711
  %v2713 = vsel %vm375, %v2694, 0.0
  %v2714 = vadd.f32 %v2712, %v2713
  %v2715 = vsel %vm375, %v2695, 0.0
  %v2716 = vadd.f32 %v2714, %v2715
  %v2717 = vsel %vm375, %v2696, 0.0
  %v2718 = vadd.f32 %v2716, %v2717
  %v2719 = vsel %vm375, %v2697, 0.0
  %v2720 = vadd.f32 %v2718, %v2719
  %v2721 = vsel %vm375, %v2698, 0.0
  %v2722 = vadd.f32 %v2720, %v2721
  %v2723 = vsel %vm375, %v2699, 0.0
  %v2724 = vadd.f32 %v2722, %v2723
  %v2725 = vsel %vm375, %v2700, 0.0
  %v2726 = vadd.f32 %v2724, %v2725
  %v2727 = vsel %vm375, %v2701, 0.0
  %v2728 = vadd.f32 %v2726, %v2727
  %v2729 = vsel %vm375, %v2702, 0.0
  %v2730 = vadd.f32 %v2728, %v2729
  %v2731 = vsel %vm375, %v2703, 0.0
  %v2732 = vadd.f32 %v2730, %v2731
  %v2733 = vsel %vm375, %v2704, 0.0
  %v2734 = vadd.f32 %v2732, %v2733
  %v2735 = vsel %vm375, %v2705, 0.0
  %v2736 = vadd.f32 %v2734, %v2735
  %v2737 = vrot.slane %v2736, 4
  %v2738 = vadd.f32 %v2736, %v2737
  %v2739 = vrot.slane %v2738, 2
  %v2740 = vadd.f32 %v2738, %v2739
  %v2741 = vrot.slane %v2740, 1
  %v2742 = vadd.f32 %v2740, %v2741
  %v2743 = vmul.f32 %v2742, %v2672
  %v2744 = vadd.f32 %v2743, 1e-05
  %v2745 = vrsqrt.pop %v2744
  %v2746 = vmul.f32 %v2674, %v2745
  %v2747 = vmul.f32 %v2675, %v2745
  %v2748 = vmul.f32 %v2676, %v2745
  %v2749 = vmul.f32 %v2677, %v2745
  %v2750 = vmul.f32 %v2678, %v2745
  %v2751 = vmul.f32 %v2679, %v2745
  %v2752 = vmul.f32 %v2680, %v2745
  %v2753 = vmul.f32 %v2681, %v2745
  %v2754 = vmul.f32 %v2682, %v2745
  %v2755 = vmul.f32 %v2683, %v2745
  %v2756 = vmul.f32 %v2684, %v2745
  %v2757 = vmul.f32 %v2685, %v2745
  %v2758 = vmul.f32 %v2686, %v2745
  %v2759 = vmul.f32 %v2687, %v2745
  %v2760 = vmul.f32 %v2688, %v2745
  %v2761 = vmul.f32 %v2689, %v2745
  %v2762 = vld [vmem:[%s4] sm:$0x1]
  %v2764 = vlaneseq
  %v2765 = vshrl.u32 %v2764, 7
  %v2766 = vsub.s32 0, %v2765
  %v2767 = vrot.slane %v2762, %v2766
  %v2769 = vmul.f32 %v2746, %v2767
  %v2770 = vmul.f32 %v2747, %v2767
  %v2771 = vmul.f32 %v2748, %v2767
  %v2772 = vmul.f32 %v2749, %v2767
  %v2773 = vmul.f32 %v2750, %v2767
  %v2774 = vmul.f32 %v2751, %v2767
  %v2775 = vmul.f32 %v2752, %v2767
  %v2776 = vmul.f32 %v2753, %v2767
  %v2777 = vmul.f32 %v2754, %v2767
  %v2778 = vmul.f32 %v2755, %v2767
  %v2779 = vmul.f32 %v2756, %v2767
  %v2780 = vmul.f32 %v2757, %v2767
  %v2781 = vmul.f32 %v2758, %v2767
  %v2782 = vmul.f32 %v2759, %v2767
  %v2783 = vmul.f32 %v2760, %v2767
  %v2784 = vmul.f32 %v2761, %v2767
  %v2785 = vld [vmem:[%s5] sm:$0x1]
  %v2787 = vlaneseq
  %v2788 = vshrl.u32 %v2787, 7
  %v2789 = vsub.s32 0, %v2788
  %v2790 = vrot.slane %v2785, %v2789
  %v2792 = vadd.f32 %v2769, %v2790
  %v2793 = vadd.f32 %v2770, %v2790
  %v2794 = vadd.f32 %v2771, %v2790
  %v2795 = vadd.f32 %v2772, %v2790
  %v2796 = vadd.f32 %v2773, %v2790
  %v2797 = vadd.f32 %v2774, %v2790
  %v2798 = vadd.f32 %v2775, %v2790
  %v2799 = vadd.f32 %v2776, %v2790
  %v2800 = vadd.f32 %v2777, %v2790
  %v2801 = vadd.f32 %v2778, %v2790
  %v2802 = vadd.f32 %v2779, %v2790
  %v2803 = vadd.f32 %v2780, %v2790
  %v2804 = vadd.f32 %v2781, %v2790
  %v2805 = vadd.f32 %v2782, %v2790
  %v2806 = vadd.f32 %v2783, %v2790
  %v2807 = vadd.f32 %v2784, %v2790
  %v2808 = vmax.f32 %v2792, 0.0
  %v2809 = vmax.f32 %v2793, 0.0
  %v2810 = vmax.f32 %v2794, 0.0
  %v2811 = vmax.f32 %v2795, 0.0
  %v2812 = vmax.f32 %v2796, 0.0
  %v2813 = vmax.f32 %v2797, 0.0
  %v2814 = vmax.f32 %v2798, 0.0
  %v2815 = vmax.f32 %v2799, 0.0
  %v2816 = vmax.f32 %v2800, 0.0
  %v2817 = vmax.f32 %v2801, 0.0
  %v2818 = vmax.f32 %v2802, 0.0
  %v2819 = vmax.f32 %v2803, 0.0
  %v2820 = vmax.f32 %v2804, 0.0
  %v2821 = vmax.f32 %v2805, 0.0
  %v2822 = vmax.f32 %v2806, 0.0
  %v2823 = vmax.f32 %v2807, 0.0
  %v2824 = vsel %vm375, %v2808, -inf
  %v2825 = vsel %vm375, %v2809, -inf
  %v2826 = vsel %vm375, %v2810, -inf
  %v2827 = vsel %vm375, %v2811, -inf
  %v2828 = vsel %vm375, %v2812, -inf
  %v2829 = vmax.f32 %v2824, %v2828
  %v2830 = vsel %vm375, %v2813, -inf
  %v2831 = vmax.f32 %v2825, %v2830
  %v2832 = vsel %vm375, %v2814, -inf
  %v2833 = vmax.f32 %v2826, %v2832
  %v2834 = vsel %vm375, %v2815, -inf
  %v2835 = vmax.f32 %v2827, %v2834
  %v2836 = vmax.f32 %v2829, %v2831
  %v2837 = vmax.f32 %v2833, %v2835
  %v2838 = vmax.f32 %v2836, %v2837
  %v2839 = vrot.slane %v2838, 4
  %v2840 = vmax.f32 %v2838, %v2839
  %v2841 = vrot.slane %v2840, 2
  %v2842 = vmax.f32 %v2840, %v2841
  %v2843 = vrot.slane %v2842, 1
  %v2844 = vmax.f32 %v2842, %v2843
  %v2845 = vsel %vm375, %v2816, -inf
  %v2846 = vsel %vm375, %v2817, -inf
  %v2847 = vsel %vm375, %v2818, -inf
  %v2848 = vsel %vm375, %v2819, -inf
  %v2849 = vsel %vm375, %v2820, -inf
  %v2850 = vmax.f32 %v2845, %v2849
  %v2851 = vsel %vm375, %v2821, -inf
  %v2852 = vmax.f32 %v2846, %v2851
  %v2853 = vsel %vm375, %v2822, -inf
  %v2854 = vmax.f32 %v2847, %v2853
  %v2855 = vsel %vm375, %v2823, -inf
  %v2856 = vmax.f32 %v2848, %v2855
  %v2857 = vmax.f32 %v2850, %v2852
  %v2858 = vmax.f32 %v2854, %v2856
  %v2859 = vmax.f32 %v2857, %v2858
  %v2860 = vrot.slane %v2859, 4
  %v2861 = vmax.f32 %v2859, %v2860
  %v2862 = vrot.slane %v2861, 2
  %v2863 = vmax.f32 %v2861, %v2862
  %v2864 = vrot.slane %v2863, 1
  %v2865 = vmax.f32 %v2863, %v2864
  %v2866 = vsel %vm375, %v2808, 0.0
  %v2867 = vsel %vm375, %v2809, 0.0
  %v2868 = vadd.f32 %v2866, %v2867
  %v2869 = vsel %vm375, %v2810, 0.0
  %v2870 = vadd.f32 %v2868, %v2869
  %v2871 = vsel %vm375, %v2811, 0.0
  %v2872 = vadd.f32 %v2870, %v2871
  %v2873 = vsel %vm375, %v2812, 0.0
  %v2874 = vadd.f32 %v2872, %v2873
  %v2875 = vsel %vm375, %v2813, 0.0
  %v2876 = vadd.f32 %v2874, %v2875
  %v2877 = vsel %vm375, %v2814, 0.0
  %v2878 = vadd.f32 %v2876, %v2877
  %v2879 = vsel %vm375, %v2815, 0.0
  %v2880 = vadd.f32 %v2878, %v2879
  %v2881 = vrot.slane %v2880, 4
  %v2882 = vadd.f32 %v2880, %v2881
  %v2883 = vrot.slane %v2882, 2
  %v2884 = vadd.f32 %v2882, %v2883
  %v2885 = vrot.slane %v2884, 1
  %v2886 = vadd.f32 %v2884, %v2885
  %v2887 = vrcp.pop 64.0
  %v2888 = vmul.f32 %v2886, %v2887
  %v2889 = vsel %vm375, %v2816, 0.0
  %v2890 = vsel %vm375, %v2817, 0.0
  %v2891 = vadd.f32 %v2889, %v2890
  %v2892 = vsel %vm375, %v2818, 0.0
  %v2893 = vadd.f32 %v2891, %v2892
  %v2894 = vsel %vm375, %v2819, 0.0
  %v2895 = vadd.f32 %v2893, %v2894
  %v2896 = vsel %vm375, %v2820, 0.0
  %v2897 = vadd.f32 %v2895, %v2896
  %v2898 = vsel %vm375, %v2821, 0.0
  %v2899 = vadd.f32 %v2897, %v2898
  %v2900 = vsel %vm375, %v2822, 0.0
  %v2901 = vadd.f32 %v2899, %v2900
  %v2902 = vsel %vm375, %v2823, 0.0
  %v2903 = vadd.f32 %v2901, %v2902
  %v2904 = vrot.slane %v2903, 4
  %v2905 = vadd.f32 %v2903, %v2904
  %v2906 = vrot.slane %v2905, 2
  %v2907 = vadd.f32 %v2905, %v2906
  %v2908 = vrot.slane %v2907, 1
  %v2909 = vadd.f32 %v2907, %v2908
  %v2910 = vmul.f32 %v2909, %v2887
  %v2911 = vsel %vm67, %v2844, %v2865
  %vm2912 = vcmask 1041408
  %v2913 = vsel %vm2912, %v2911, %v2888
  %vm2914 = vcmask 1042432
  %v2915 = vsel %vm2914, %v2913, %v2910
  %v2916 = vpack.c.bf16 %v2915, %v2915
  %v2917 = vld [vmem:[%s6] sm:$0xf]
  %v2918 = vld [vmem:[%s6 + $0x4] sm:$0xf]
  %v2919 = vld [vmem:[%s6 + $0x8] sm:$0xf]
  %v2920 = vld [vmem:[%s6 + $0xc] sm:$0xf]
  %v2921 = vld [vmem:[%s7] sm:$0x1]
  %v2923 = vlaneseq
  %v2924 = vshrl.u32 %v2923, 7
  %v2925 = vsub.s32 0, %v2924
  %v2926 = vrot.slane %v2921, %v2925
  %v2932 = vunpack.c.l.b16 %v2917
  %v2933 = vunpack.c.l.b16 %v2918
  %v2934 = vunpack.c.l.b16 %v2919
  %v2935 = vunpack.c.l.b16 %v2920
  %v2936 = vpack.c.b16 %v2933, %v2932
  %v2937 = vpack.c.b16 %v2935, %v2934
  %v2941 = vsel %vm375, %v2916, 0
  %2943 = vmatprep.subr.bf16.mxu0 0
  %2944 = vmatpush1.bf16.msra.mxu0 0
  %2945 = vmatprep.subr.bf16.mxu0 0
  %2946 = vmatpush1.bf16.msra.mxu0 0
  %2947 = vmatprep.subr.bf16.mxu0 0
  %2948 = vmatpush1.bf16.msra.mxu0 0
  %2949 = vmatprep.subr.bf16.mxu0 0
  %2950 = vmatpush1.bf16.msra.mxu0 0
  %2951 = vmatprep.subr.bf16.mxu0 0
  %2952 = vmatpush1.bf16.msra.mxu0 0
  %2953 = vmatprep.subr.bf16.mxu0 0
  %2954 = vmatpush1.bf16.msra.mxu0 0
  %2955 = vmatprep.subr.bf16.mxu0 0
  %2956 = vmatpush1.bf16.msra.mxu0 %v2937
  %2957 = vmatprep.subr.bf16.mxu0 0
  %2958 = vmatpush1.bf16.msra.mxu0 %v2936
  %2959 = vmatprep.subr.bf16.mxu0 0
  %2960 = vmatpush2.bf16.msra.mxu0 0
  %2961 = vmatprep.subr.bf16.mxu0 0
  %2962 = vmatpush2.bf16.msra.mxu0 0
  %2963 = vmatprep.subr.bf16.mxu0 0
  %2964 = vmatpush2.bf16.msra.mxu0 0
  %2965 = vmatprep.subr.bf16.mxu0 0
  %2966 = vmatpush2.bf16.msra.mxu0 0
  %2967 = vmatprep.subr.bf16.mxu0 0
  %2968 = vmatpush2.bf16.msra.mxu0 0
  %2969 = vmatprep.subr.bf16.mxu0 0
  %2970 = vmatpush2.bf16.msra.mxu0 0
  %2971 = vmatprep.subr.bf16.mxu0 0
  %2972 = vmatpush2.bf16.msra.mxu0 0
  %2973 = vmatprep.subr.bf16.mxu0 0
  %2974 = vmatpush2.bf16.msra.mxu0 0
  %2975 = vmatprep.mubr.bf16.mxu0 0
  %2976 = vmatmul.mubr.bf16.gmra.mxu0 %v2941
  %v2977 = vpop.f32.mrf.mxu0
  %v2978 = vadd.f32 %v2926, %v2977
  %v2979 = vpop.f32.mrf.mxu0
  %v2980 = vpop.f32.mrf.mxu0
  %v2981 = vpop.f32.mrf.mxu0
  %2982 = vdwg.mxu0
  %v2983 = vmax.f32 %v2978, 0.0
  %v2984 = vpack.c.bf16 %v2983, %v2983
  %v2985 = vld [vmem:[%s8] sm:$0xf]
  %v2986 = vld [vmem:[%s9] sm:$0x1]
  %v2988 = vlaneseq
  %v2989 = vshrl.u32 %v2988, 7
  %v2990 = vsub.s32 0, %v2989
  %v2991 = vrot.slane %v2986, %v2990
  %vm2993 = vcmask 64512
  %v2995 = vsel %vm2993, %v2984, 0
  %vm2997 = vcmask 1043456
  %v2999 = vsel %vm2997, %v2985, 0
  %3001 = vmatprep.subr.bf16.mxu0 0
  %3002 = vmatpush1.bf16.msra.mxu0 0
  %3003 = vmatprep.subr.bf16.mxu0 0
  %3004 = vmatpush1.bf16.msra.mxu0 0
  %3005 = vmatprep.subr.bf16.mxu0 0
  %3006 = vmatpush1.bf16.msra.mxu0 0
  %3007 = vmatprep.subr.bf16.mxu0 0
  %3008 = vmatpush1.bf16.msra.mxu0 0
  %3009 = vmatprep.subr.bf16.mxu0 0
  %3010 = vmatpush1.bf16.msra.mxu0 0
  %3011 = vmatprep.subr.bf16.mxu0 0
  %3012 = vmatpush1.bf16.msra.mxu0 0
  %3013 = vmatprep.subr.bf16.mxu0 0
  %3014 = vmatpush1.bf16.msra.mxu0 0
  %3015 = vmatprep.subr.bf16.mxu0 0
  %3016 = vmatpush1.bf16.msra.mxu0 %v2999
  %3017 = vmatprep.subr.bf16.mxu0 0
  %3018 = vmatpush2.bf16.msra.mxu0 0
  %3019 = vmatprep.subr.bf16.mxu0 0
  %3020 = vmatpush2.bf16.msra.mxu0 0
  %3021 = vmatprep.subr.bf16.mxu0 0
  %3022 = vmatpush2.bf16.msra.mxu0 0
  %3023 = vmatprep.subr.bf16.mxu0 0
  %3024 = vmatpush2.bf16.msra.mxu0 0
  %3025 = vmatprep.subr.bf16.mxu0 0
  %3026 = vmatpush2.bf16.msra.mxu0 0
  %3027 = vmatprep.subr.bf16.mxu0 0
  %3028 = vmatpush2.bf16.msra.mxu0 0
  %3029 = vmatprep.subr.bf16.mxu0 0
  %3030 = vmatpush2.bf16.msra.mxu0 0
  %3031 = vmatprep.subr.bf16.mxu0 0
  %3032 = vmatpush2.bf16.msra.mxu0 0
  %3033 = vmatprep.mubr.bf16.mxu0 0
  %3034 = vmatmul.mubr.bf16.gmra.mxu0 %v2995
  %v3035 = vpop.f32.mrf.mxu0
  %v3036 = vadd.f32 %v2991, %v3035
  %v3037 = vpop.f32.mrf.mxu0
  %v3038 = vpop.f32.mrf.mxu0
  %v3039 = vpop.f32.mrf.mxu0
  %3040 = vdwg.mxu0
  %v3042 = vrot.slane %v3036, 2
  %v3044 = vadd.f32 %v3036, %v3042
  %v3045 = vxor.u32 %v3044, 2147483648
  %v3046 = vmul.f32 %v3045, 1.442695
  %v3047 = vpow.pop %v3046
  %v3048 = vadd.f32 %v3047, 1.0
  %v3049 = vrcp.pop %v3048
  %v3050 = vmul.f32 1.0, %v3049
  %v3051 = vlaneseq
  %v3052 = vshrl.u32 %v3051, 7
  %v3053 = vsub.s32 0, %v3052
  %v3054 = vrot.slane %v3050, %v3053
  %v3055 = vlaneseq
  %v3056 = vshrl.u32 %v3055, 7
  %v3057 = vsub.s32 1, %v3056
  %v3058 = vrot.slane %v3050, %v3057
  %v3059 = vmul.f32 %v2808, %v3054
  %v3060 = vmul.f32 %v2809, %v3054
  %v3061 = vmul.f32 %v2810, %v3054
  %v3062 = vmul.f32 %v2811, %v3054
  %v3063 = vmul.f32 %v2812, %v3054
  %v3064 = vmul.f32 %v2813, %v3054
  %v3065 = vmul.f32 %v2814, %v3054
  %v3066 = vmul.f32 %v2815, %v3054
  %v3067 = vmul.f32 %v2816, %v3058
  %v3068 = vmul.f32 %v2817, %v3058
  %v3069 = vmul.f32 %v2818, %v3058
  %v3070 = vmul.f32 %v2819, %v3058
  %v3071 = vmul.f32 %v2820, %v3058
  %v3072 = vmul.f32 %v2821, %v3058
  %v3073 = vmul.f32 %v2822, %v3058
  %v3074 = vmul.f32 %v2823, %v3058
  %3075 = vst.msk [vmem:[%s10] sm:$0xff] %vm375, %v3059
  %3076 = vst.msk [vmem:[%s10 + $0x8] sm:$0xff] %vm375, %v3060
  %3077 = vst.msk [vmem:[%s10 + $0x10] sm:$0xff] %vm375, %v3061
  %3078 = vst.msk [vmem:[%s10 + $0x18] sm:$0xff] %vm375, %v3062
  %3079 = vst.msk [vmem:[%s10 + $0x20] sm:$0xff] %vm375, %v3063
  %3080 = vst.msk [vmem:[%s10 + $0x28] sm:$0xff] %vm375, %v3064
  %3081 = vst.msk [vmem:[%s10 + $0x30] sm:$0xff] %vm375, %v3065
  %3082 = vst.msk [vmem:[%s10 + $0x38] sm:$0xff] %vm375, %v3066
  %3083 = vst.msk [vmem:[%s10 + $0x40] sm:$0xff] %vm375, %v3067
  %3084 = vst.msk [vmem:[%s10 + $0x48] sm:$0xff] %vm375, %v3068
  %3085 = vst.msk [vmem:[%s10 + $0x50] sm:$0xff] %vm375, %v3069
  %3086 = vst.msk [vmem:[%s10 + $0x58] sm:$0xff] %vm375, %v3070
  %3087 = vst.msk [vmem:[%s10 + $0x60] sm:$0xff] %vm375, %v3071
  %3088 = vst.msk [vmem:[%s10 + $0x68] sm:$0xff] %vm375, %v3072
  %3089 = vst.msk [vmem:[%s10 + $0x70] sm:$0xff] %vm375, %v3073
  %3090 = vst.msk [vmem:[%s10 + $0x78] sm:$0xff] %vm375, %v3074
  // Predicated region
  $region42: #{ca_local_global_forward.3} parent=0 // pred_check
    _
  $region43: #{ca_local_global_forward.3} parent=0 // pred_check_branch
    %3092 = sbr.rel (0) target = $region45
  $region44: #{ca_local_global_forward.3} parent=0 // pred_region
    _
  $region45: #{ca_local_global_forward.3} parent=0 // pred_fallthru
    _
  // Predicated region
  $region46: #{ca_local_global_forward.3} parent=0 // pred_check
    _
  $region47: #{ca_local_global_forward.3} parent=0 // pred_check_branch
    %3094 = sbr.rel (0) target = $region49
  $region48: #{ca_local_global_forward.3} parent=0 // pred_region
    _
  $region49: #{ca_local_global_forward.3} parent=0 // pred_fallthru
    _

</llo_original>
